<compile_context>
chip_gen: v5e
topology: v5e:2x2
jax: 0.10.0
libtpu: 0.0.40
codegen_flags: <defaults>
</compile_context>

<pallas_src>
import functools

import numpy as np
import jax
import jax.numpy as jnp
from jax import lax
from jax.experimental import pallas as pl
from jax.experimental.pallas import tpu as pltpu

# ----------------- synthetic config (replaces utils.get_global_config()) -----
N_ENT = 32            # entities
N_REL = 4             # relations (2*N_REL = 8 incl. inverse)
R2 = 2 * N_REL
H_DIM = 32            # hidden dim
KG_N_LAYER = 2        # cfg.kg_layer
N_EDGE = 64           # every node has exactly 2 incoming edges
COMP_OP = "mul"       # cfg.comp_op
PRED_REL_W = True     # cfg.pred_rel_w
OUT_CHANNEL = 4       # cfg.out_channel
KER_SZ = 3            # cfg.ker_sz
K_H, K_W = 4, 8       # k_h * k_w == h_dim (ConvE reshape)
PHI_HID = 200         # Measure_F MLP hidden sizes ([200, 200])
PHI_PAD = 256         # lane-padded hidden width (zero padding, identical output)
BS = 4                # query batch size

N_BLK = 2 * KG_N_LAYER            # packed CompLayer blocks: (layer, view)
PK = N_BLK * H_DIM                # packed feature width == 128 == vreg lane width

HO = 2 * K_H - KER_SZ + 1
WO = K_W - KER_SZ + 1
CONV_FLAT = HO * WO * OUT_CHANNEL
CONV_PAD = 256                    # lane-padded ConvE feature width


# ======================= kernel 1: query-independent aggregation =============
def _aggregate_kernel(
    ent0_ref, w_pack_ref, b_pack_ref,
    src_oh_ref, dst_oh_ref, dst_oh_t_ref, rel_oh_ref, rel_pack_ref,
    sum_mat_ref, expand_mat_ref, neigh_w_blk_ref, collapse_ref,
    w1_ref, b1_ref, w2_ref, b2_ref, w3p_ref, b3p_ref, w3q_ref, b3q_ref,
    rel_cat_ref, rel_w_ref,
    ent_out_ref, pred_rel_ref, corr_ref,
):
    f32 = jnp.float32
    dot = functools.partial(jnp.dot, preferred_element_type=jnp.float32)

    ent0 = ent0_ref[...]                                    # (N, D)
    src_oh = src_oh_ref[...]                                # (E, N)
    dst_oh = dst_oh_ref[...]                                # (E, N)
    dst_oh_t = dst_oh_t_ref[...]                            # (N, E), host transposed

    # aggragate_emb: S/L (common/private) projections packed per (layer, view)
    # block into one lane-dense (N, 4*D = 128) tensor.  Dropout/BN = identity.
    cp = dot(ent0, w_pack_ref[...]) + b_pack_ref[...]       # (N, PK)

    # Edge endpoint / relation gathers for ALL four CompLayer paths at once.
    u = dot(src_oh, cp)                                     # ent[src]    (E, PK)
    v = dot(dst_oh, cp)                                     # ent[dst]    (E, PK)
    r = dot(rel_oh_ref[...], rel_pack_ref[...])             # rel[rel_id] (E, PK)

    comp = u * r                                            # comp_op == 'mul'
    # e_dot_v per 32-lane block -> (E, 4) logits (static block-sum matmul).
    logit = dot(comp * v, sum_mat_ref[...])                 # (E, N_BLK)

    # edge_softmax over incoming edges of each dst node, per block, per-edge
    # form: subtracting a per-block global max is mathematically identical and
    # avoids any (E, N) intermediate or in-kernel transpose.
    mx = jnp.max(logit, axis=0, keepdims=True)              # (1, N_BLK)
    e = jnp.exp(logit - mx)                                 # (E, N_BLK)
    den_n = dot(dst_oh_t, e)                                # per-dst sums (N, N_BLK)
    den_e = dot(dst_oh, den_n)                              # back to edges (E, N_BLK)
    w = e * pl.reciprocal(jnp.maximum(den_e, f32(1e-30)), approx=True)
    # TODO(synk): dgl.sampling.select_topk(kg, 15, 'weight', edge_dir='in')
    # omitted; identity here because every node's in-degree (=2) is <= 15.
    w_full = dot(w, expand_mat_ref[...])                    # (E, PK)

    # weighted segment-sum + per-block neigh_w + tanh (BatchNorm identity).
    neigh = dot(dst_oh_t, w_full * comp)                    # (N, PK)
    comp_out = jnp.tanh(dot(neigh, neigh_w_blk_ref[...]))   # (N, PK)

    # ent_emb = ent0 + sum over all (layer, view) blocks.
    ent_out_ref[...] = ent0 + dot(comp_out, collapse_ref[...])       # (N, D)

    # pred_rel_w: concat(rel_emb_list, dim=1) @ rel_w
    pred_rel_ref[...] = dot(rel_cat_ref[...], rel_w_ref[...])        # (2R, D)

    # Measure_F (phi/psi fused block-diagonally; LAST layer only -- earlier corr
    # values are overwritten in the reference loop) + compute_corr.
    h1 = jnp.maximum(dot(comp_out, w1_ref[...]) + b1_ref[...], f32(0.0))  # (N, 512)
    h2 = jnp.maximum(dot(h1, w2_ref[...]) + b2_ref[...], f32(0.0))        # (N, 512)
    y1 = dot(h2, w3p_ref[...]) + b3p_ref[...]               # (N, 1)
    y2 = dot(h2, w3q_ref[...]) + b3q_ref[...]               # (N, 1)
    x1 = y1 - jnp.mean(y1, axis=0, keepdims=True)
    x2 = y2 - jnp.mean(y2, axis=0, keepdims=True)
    cov = jnp.mean(x1 * x2, axis=0, keepdims=True)          # (1, 1)
    v1 = jnp.mean(x1 * x1, axis=0, keepdims=True)
    v2 = jnp.mean(x2 * x2, axis=0, keepdims=True)
    corr_ref[...] = jnp.abs(cov) / (jnp.sqrt(v1 * v2) + f32(1e-12))   # plain (1,1) store


# ======================= kernel 2: per-query ConvE predictor =================
def _predict_kernel(hr_oh_ref, emb_cat_ref, ent_acc_ref,
                    conv_eff_ref, fc_wt_ref, fc_b_ref, score_ref):
    f32 = jnp.float32
    dot = functools.partial(jnp.dot, preferred_element_type=jnp.float32)

    # head / rel gathers as ONE GEMM against the block-stacked
    # [[ent_acc, 0], [0, pred_rel]] table: hr = [head | rel]  (bs, 2*D).
    hr = dot(hr_oh_ref[...], emb_cat_ref[...])

    # TODO(synk): ConvE class body is not in the provided source; this is the
    # canonical SE-GNN ConvE (stack->conv->relu->fc->relu->ent matmul->sigmoid)
    # with eval-mode BatchNorms treated as identity and no conv bias.  The
    # stack/reshape/im2col/conv is folded into conv_eff (2D, 256 lane-padded).
    x = jnp.maximum(dot(hr, conv_eff_ref[...]), f32(0.0))               # (bs, 256)
    h = jnp.maximum(dot(x, fc_wt_ref[...]) + fc_b_ref[...], f32(0.0))   # (bs, D)

    # logits = h @ ent_acc^T; MXU consumes the transposed operand directly.
    logits = lax.dot_general(h, ent_acc_ref[...],
                             dimension_numbers=(((1,), (1,)), ((), ())),
                             preferred_element_type=jnp.float32)        # (bs, N)
    # exact, overflow-safe sigmoid on the user-visible scores.
    score_ref[...] = f32(0.5) * (jnp.tanh(f32(0.5) * logits) + f32(1.0))


# ----------------------------- parameter preprocessing ------------------------
def _build_im2col_matrix():
    """Static 0/1 matrix mapping hr = concat([head, rel]) -> im2col patches.

    Output shape (2*H_DIM, Ho*Wo*K*K), patches flattened in (i, j, ki, kj) order.
    Matches torch: cat([head, rel], 1) -> transpose(2,1) -> reshape(bs,1,2kh,kw).
    """
    d2 = 2 * H_DIM
    hw = 2 * K_H * K_W
    perm = np.zeros((d2, hw), np.float32)
    for f in range(hw):
        perm[(f // 2) + (f % 2) * H_DIM, f] = 1.0          # interleave head/rel
    gather = np.zeros((hw, HO * WO * KER_SZ * KER_SZ), np.float32)
    for i in range(HO):
        for j in range(WO):
            for ki in range(KER_SZ):
                for kj in range(KER_SZ):
                    src = (i + ki) * K_W + (j + kj)
                    dst = ((i * WO + j) * KER_SZ + ki) * KER_SZ + kj
                    gather[src, dst] = 1.0
    return perm @ gather                                   # (2D, HoWo*K2)


_IM2COL = _build_im2col_matrix()


def preprocess_params(params):
    """One-time host-side packing / padding of parameters into kernel layouts."""
    f32 = jnp.float32
    L, D = KG_N_LAYER, H_DIM
    PH = PHI_PAD
    hp = lax.Precision.HIGHEST

    p = {}
    p["ent0"] = params["ent_emb"].astype(f32)

    # S/L projection packed as column blocks [S, L] per layer -> (D, PK).
    s_wT, l_wT = params["S_w"].T, params["L_w"].T
    s_b, l_b = params["S_b"], params["L_b"]
    p["w_pack"] = jnp.concatenate([s_wT, l_wT] * L, axis=1).astype(f32)       # (D, PK)
    p["b_pack"] = jnp.concatenate([s_b, l_b] * L, axis=0).reshape(1, PK).astype(f32)

    # relation tables per block (layer l serves both of its views) -> (2R, PK).
    p["rel_pack"] = jnp.concatenate(
        [params["rel_embs"][b // 2] for b in range(N_BLK)], axis=1).astype(f32)

    # block-diagonal neigh_w (layer l's CompLayer weight for both its views).
    neigh_blk = np.zeros((PK, PK), np.float32)
    for b in range(N_BLK):
        neigh_blk[b * D:(b + 1) * D, b * D:(b + 1) * D] = np.asarray(
            params["neigh_w"][b // 2])
    p["neigh_w_blk"] = jnp.asarray(neigh_blk)

    # static block-sum / block-broadcast / block-collapse matrices.
    sum_mat = np.zeros((PK, N_BLK), np.float32)
    expand_mat = np.zeros((N_BLK, PK), np.float32)
    collapse = np.zeros((PK, D), np.float32)
    for j in range(PK):
        sum_mat[j, j // D] = 1.0
        expand_mat[j // D, j] = 1.0
        collapse[j, j % D] = 1.0
    p["sum_mat"] = jnp.asarray(sum_mat)
    p["expand_mat"] = jnp.asarray(expand_mat)
    p["collapse_mat"] = jnp.asarray(collapse)

    # Measure_F phi/psi fused block-diagonally, hidden 200 zero-padded to 256.
    (pw1, pb1), (pw2, pb2), (pw3, pb3) = params["mea"]["phi"]
    (qw1, qb1), (qw2, qb2), (qw3, qb3) = params["mea"]["psi"]
    b_phi, b_psi = 2 * (L - 1), 2 * (L - 1) + 1     # last layer's common/private blocks
    w1 = np.zeros((PK, 2 * PH), np.float32)
    b1 = np.zeros((1, 2 * PH), np.float32)
    w2 = np.zeros((2 * PH, 2 * PH), np.float32)
    b2 = np.zeros((1, 2 * PH), np.float32)
    w1[b_phi * D:(b_phi + 1) * D, :PHI_HID] = np.asarray(pw1).T
    w1[b_psi * D:(b_psi + 1) * D, PH:PH + PHI_HID] = np.asarray(qw1).T
    b1[0, :PHI_HID] = np.asarray(pb1)
    b1[0, PH:PH + PHI_HID] = np.asarray(qb1)
    w2[:PHI_HID, :PHI_HID] = np.asarray(pw2).T
    w2[PH:PH + PHI_HID, PH:PH + PHI_HID] = np.asarray(qw2).T
    b2[0, :PHI_HID] = np.asarray(pb2)
    b2[0, PH:PH + PHI_HID] = np.asarray(qb2)
    w3p = np.zeros((2 * PH, 1), np.float32)
    w3q = np.zeros((2 * PH, 1), np.float32)
    w3p[:PHI_HID, :] = np.asarray(pw3).T
    w3q[PH:PH + PHI_HID, :] = np.asarray(qw3).T
    b3p = np.asarray(pb3).reshape(1, 1).astype(np.float32)
    b3q = np.asarray(qb3).reshape(1, 1).astype(np.float32)
    p["w1_blk"], p["b1_blk"] = jnp.asarray(w1), jnp.asarray(b1)
    p["w2_blk"], p["b2_blk"] = jnp.asarray(w2), jnp.asarray(b2)
    p["w3_phi"], p["b3_phi"] = jnp.asarray(w3p), jnp.asarray(b3p)
    p["w3_psi"], p["b3_psi"] = jnp.asarray(w3q), jnp.asarray(b3q)

    # pred_rel_w operands.
    p["rel_cat"] = jnp.concatenate(params["rel_embs"], axis=1).astype(f32)   # (2R, L*D)
    p["rel_w"] = params["rel_w"].astype(f32)

    # ConvE: fold stack/reshape/im2col/conv into one (2D, CONV_PAD) matrix.
    wflat = params["conv_w"].reshape(OUT_CHANNEL, KER_SZ * KER_SZ).T          # (K2, C)
    im2col = jnp.asarray(_IM2COL).reshape(2 * H_DIM, HO * WO, KER_SZ * KER_SZ)
    conv_eff = jnp.einsum("dpk,kc->dpc", im2col, wflat,
                          precision=hp).reshape(2 * H_DIM, CONV_FLAT)
    p["conv_eff_pad"] = jnp.zeros((2 * H_DIM, CONV_PAD), f32).at[:, :CONV_FLAT].set(conv_eff)
    # fc columns: permute from torch flatten order (c, i, j) to ours (i, j, c),
    # then zero-pad the contraction dim to CONV_PAD.
    fc_w_perm = (params["fc_w"].reshape(H_DIM, OUT_CHANNEL, HO * WO)
                 .transpose(0, 2, 1).reshape(H_DIM, CONV_FLAT))
    p["fc_wT_pad"] = jnp.zeros((CONV_PAD, H_DIM), f32).at[:CONV_FLAT, :].set(fc_w_perm.T)
    p["fc_b"] = params["fc_b"].reshape(1, -1).astype(f32)
    return p


# ----------------------------- model parameters -------------------------------
def init_params(key):
    keys = jax.random.split(key, 40)
    it = iter(keys)

    def nrm(shape, scale=0.1):
        return (scale * jax.random.normal(next(it), shape)).astype(jnp.float32)

    p = {}
    p["ent_emb"] = nrm((N_ENT, H_DIM))
    p["rel_embs"] = [nrm((R2, H_DIM)) for _ in range(KG_N_LAYER)]
    p["neigh_w"] = [nrm((H_DIM, H_DIM)) for _ in range(KG_N_LAYER)]   # CompLayer.neigh_w
    p["rel_w"] = nrm((H_DIM * KG_N_LAYER, H_DIM))                     # pred_rel_w
    p["S_w"], p["S_b"] = nrm((H_DIM, H_DIM)), nrm((H_DIM,))
    p["L_w"], p["L_b"] = nrm((H_DIM, H_DIM)), nrm((H_DIM,))

    mea = {}
    for net in ("phi", "psi"):
        dims = [H_DIM, PHI_HID, PHI_HID, 1]
        mea[net] = [(nrm((dims[i + 1], dims[i])), nrm((dims[i + 1],))) for i in range(3)]
    p["mea"] = mea

    p["conv_w"] = nrm((OUT_CHANNEL, 1, KER_SZ, KER_SZ))
    p["fc_w"] = nrm((H_DIM, CONV_FLAT))
    p["fc_b"] = nrm((H_DIM,))
    return p


def build_graph():
    # deterministic KG: every node has exactly 2 incoming edges
    dst = jnp.repeat(jnp.arange(N_ENT), 2)
    src = (dst * 7 + jnp.tile(jnp.array([1, 13]), N_ENT)) % N_ENT
    rel_id = jnp.arange(N_EDGE) % R2
    src_oh = jax.nn.one_hot(src, N_ENT, dtype=jnp.float32)        # (E, N)
    dst_oh = jax.nn.one_hot(dst, N_ENT, dtype=jnp.float32)        # (E, N)
    dst_oh_t = jnp.transpose(dst_oh)                              # (N, E) host-side
    rel_oh = jax.nn.one_hot(rel_id, R2, dtype=jnp.float32)        # (E, 2R)
    return src_oh, dst_oh, dst_oh_t, rel_oh


# ----------------------------- DSGNet forward ---------------------------------
def aggregate_emb(prep, graph):
    """Query-independent aggregation (GNN, pred_rel, corr).  Run once & cache."""
    src_oh, dst_oh, dst_oh_t, rel_oh = graph
    args = (prep["ent0"], prep["w_pack"], prep["b_pack"],
            src_oh, dst_oh, dst_oh_t, rel_oh, prep["rel_pack"],
            prep["sum_mat"], prep["expand_mat"], prep["neigh_w_blk"],
            prep["collapse_mat"],
            prep["w1_blk"], prep["b1_blk"], prep["w2_blk"], prep["b2_blk"],
            prep["w3_phi"], prep["b3_phi"], prep["w3_psi"], prep["b3_psi"],
            prep["rel_cat"], prep["rel_w"])
    ent_acc, pred_rel, corr = pl.pallas_call(
        _aggregate_kernel,
        out_shape=(jax.ShapeDtypeStruct((N_ENT, H_DIM), jnp.float32),
                   jax.ShapeDtypeStruct((R2, H_DIM), jnp.float32),
                   jax.ShapeDtypeStruct((1, 1), jnp.float32)),
        in_specs=[pl.BlockSpec(memory_space=pltpu.MemorySpace.VMEM)] * len(args),
        out_specs=(pl.BlockSpec(memory_space=pltpu.MemorySpace.VMEM),
                   pl.BlockSpec(memory_space=pltpu.MemorySpace.VMEM),
                   pl.BlockSpec(memory_space=pltpu.MemorySpace.VMEM)),
    )(*args)
    # query-side gather table [[ent_acc, 0], [0, pred_rel]] -> one GEMM in predict.
    emb_cat = jnp.zeros((N_ENT + R2, 2 * H_DIM), jnp.float32)
    emb_cat = emb_cat.at[:N_ENT, :H_DIM].set(ent_acc)
    emb_cat = emb_cat.at[N_ENT:, H_DIM:].set(pred_rel)
    return {"ent_acc": ent_acc, "pred_rel": pred_rel, "emb_cat": emb_cat,
            "corr": corr}


def predict(prep, agg, h_id, r_id):
    """Per-query hot path: head/rel gather + ConvE predictor (one small kernel)."""
    bs = h_id.shape[0]
    h_oh = jax.nn.one_hot(h_id, N_ENT, dtype=jnp.float32)         # (bs, N)
    r_oh = jax.nn.one_hot(r_id, R2, dtype=jnp.float32)            # (bs, 2R)
    hr_oh = jnp.concatenate([h_oh, r_oh], axis=1)                 # (bs, N+2R)
    args = (hr_oh, agg["emb_cat"], agg["ent_acc"],
            prep["conv_eff_pad"], prep["fc_wT_pad"], prep["fc_b"])
    return pl.pallas_call(
        _predict_kernel,
        out_shape=jax.ShapeDtypeStruct((bs, N_ENT), jnp.float32),
        in_specs=[pl.BlockSpec(memory_space=pltpu.MemorySpace.VMEM)] * len(args),
        out_specs=pl.BlockSpec(memory_space=pltpu.MemorySpace.VMEM),
    )(*args)


def dsgnet_forward(prep, graph, h_id, r_id):
    """API parity with DSGNet.forward: (score, corr)."""
    agg = aggregate_emb(prep, graph)
    score = predict(prep, agg, h_id, r_id)
    return score, agg["corr"][0, 0]


# ----------------------------- pure-JAX reference (checking only) -------------
def _aggregate_reference(params, graph):
    """Straightforward (unpacked, per-layer) reference for the aggregation."""
    src_oh, dst_oh, dst_oh_t, rel_oh = graph
    dot = functools.partial(jnp.dot, precision=lax.Precision.HIGHEST)
    ent0 = params["ent_emb"]
    common = dot(ent0, params["S_w"].T) + params["S_b"]
    private = dot(ent0, params["L_w"].T) + params["L_b"]
    mask = dst_oh > 0

    def comp_path(view, rel_l, neigh_w):
        u = dot(src_oh, view)
        vv = dot(dst_oh, view)
        r_e = dot(rel_oh, rel_l)
        comp = u * r_e
        logit = jnp.sum(comp * vv, axis=-1, keepdims=True)            # (E, 1)
        masked = jnp.where(mask, logit, -jnp.inf)                     # (E, N)
        m = jnp.max(masked, axis=0, keepdims=True)                    # (1, N)
        p = jnp.where(mask, jnp.exp(logit - m), 0.0)
        s = jnp.sum(p, axis=0, keepdims=True)
        w_e = jnp.sum(p / s, axis=1, keepdims=True)                   # (E, 1)
        neigh = dot(dst_oh_t, w_e * comp)                             # (N, D)
        return jnp.tanh(dot(neigh, neigh_w))

    ent_acc = ent0
    c1 = c2 = None
    for l in range(KG_N_LAYER):
        c1 = comp_path(common, params["rel_embs"][l], params["neigh_w"][l])
        c2 = comp_path(private, params["rel_embs"][l], params["neigh_w"][l])
        ent_acc = ent_acc + c1 + c2

    def mlp(x, layers):
        (w1, b1), (w2, b2), (w3, b3) = layers
        h = jax.nn.relu(dot(x, w1.T) + b1)
        h = jax.nn.relu(dot(h, w2.T) + b2)
        return dot(h, w3.T) + b3

    y1, y2 = mlp(c1, params["mea"]["phi"]), mlp(c2, params["mea"]["psi"])
    x1 = y1 - jnp.mean(y1, axis=0, keepdims=True)
    x2 = y2 - jnp.mean(y2, axis=0, keepdims=True)
    corr = jnp.abs(jnp.mean(x1 * x2)) / (
        jnp.sqrt(jnp.mean(x1 * x1)) * jnp.sqrt(jnp.mean(x2 * x2)))
    pred_rel = dot(jnp.concatenate(params["rel_embs"], axis=1), params["rel_w"])
    return ent_acc, pred_rel, corr


if __name__ == "__main__":
    key = jax.random.PRNGKey(0)
    params = init_params(key)
    prep = preprocess_params(params)
    graph = build_graph()

    h_id = jnp.array([0, 5, 10, 31], dtype=jnp.int32)
    r_id = jnp.array([0, 3, 5, 7], dtype=jnp.int32)

    # Full forward (API parity with DSGNet.forward): aggregate + predict.
    fwd = jax.jit(functools.partial(dsgnet_forward, prep, graph))
    score, corr = fwd(h_id, r_id)
    jax.block_until_ready((score, corr))

    # Hot path: the query-independent aggregation runs ONCE and is cached; the
    # per-query kernel is only the gather + ConvE predictor.
    agg = jax.jit(functools.partial(aggregate_emb, prep))(graph)
    jax.block_until_ready(agg)
    predict_fn = jax.jit(functools.partial(predict, prep, agg))
    score_hot = predict_fn(h_id, r_id)
    jax.block_until_ready(score_hot)

    # Checks: shapes / finiteness, hot path == fused path, and the packed GNN
    # aggregation matches the straightforward pure-JAX reference.
    assert score.shape == (BS, N_ENT)
    assert bool(jnp.all(jnp.isfinite(score))) and bool(jnp.isfinite(corr))
    assert bool(jnp.allclose(score, score_hot, rtol=1e-5, atol=1e-5))

    ent_expect, rel_expect, corr_expect = _aggregate_reference(params, graph)
    assert bool(jnp.allclose(agg["ent_acc"], ent_expect, rtol=2e-2, atol=2e-3))
    assert bool(jnp.allclose(agg["pred_rel"], rel_expect, rtol=2e-2, atol=2e-3))
    assert bool(jnp.allclose(agg["corr"][0, 0], corr_expect, rtol=5e-2, atol=5e-2))

    print("KERNEL_OK")
</pallas_src>

<mosaic_0001>
module attributes {stable_mosaic.version = 11 : i64} {
  func.func @_aggregate_kernel(%arg0: memref<32x32xf32, #tpu.memory_space<vmem>>, %arg1: memref<32x128xf32, #tpu.memory_space<vmem>>, %arg2: memref<1x128xf32, #tpu.memory_space<vmem>>, %arg3: memref<64x32xf32, #tpu.memory_space<vmem>>, %arg4: memref<64x32xf32, #tpu.memory_space<vmem>>, %arg5: memref<32x64xf32, #tpu.memory_space<vmem>>, %arg6: memref<64x8xf32, #tpu.memory_space<vmem>>, %arg7: memref<8x128xf32, #tpu.memory_space<vmem>>, %arg8: memref<128x4xf32, #tpu.memory_space<vmem>>, %arg9: memref<4x128xf32, #tpu.memory_space<vmem>>, %arg10: memref<128x128xf32, #tpu.memory_space<vmem>>, %arg11: memref<128x32xf32, #tpu.memory_space<vmem>>, %arg12: memref<128x512xf32, #tpu.memory_space<vmem>>, %arg13: memref<1x512xf32, #tpu.memory_space<vmem>>, %arg14: memref<512x512xf32, #tpu.memory_space<vmem>>, %arg15: memref<1x512xf32, #tpu.memory_space<vmem>>, %arg16: memref<512x1xf32, #tpu.memory_space<vmem>>, %arg17: memref<1x1xf32, #tpu.memory_space<vmem>>, %arg18: memref<512x1xf32, #tpu.memory_space<vmem>>, %arg19: memref<1x1xf32, #tpu.memory_space<vmem>>, %arg20: memref<8x64xf32, #tpu.memory_space<vmem>>, %arg21: memref<64x32xf32, #tpu.memory_space<vmem>>, %arg22: memref<32x32xf32, #tpu.memory_space<vmem>>, %arg23: memref<8x32xf32, #tpu.memory_space<vmem>>, %arg24: memref<1x1xf32, #tpu.memory_space<vmem>>) attributes {dimension_semantics = [], scalar_prefetch = 0 : i64, scratch_operands = 0 : i64, tpu.core_type = #tpu.core_type<tc>} {
    %c0 = arith.constant 0 : index
    %c0_0 = arith.constant 0 : index
    %0 = vector.load %arg0[%c0, %c0_0] : memref<32x32xf32, #tpu.memory_space<vmem>>, vector<32x32xf32>
    %c0_1 = arith.constant 0 : index
    %c0_2 = arith.constant 0 : index
    %1 = vector.load %arg3[%c0_1, %c0_2] : memref<64x32xf32, #tpu.memory_space<vmem>>, vector<64x32xf32>
    %c0_3 = arith.constant 0 : index
    %c0_4 = arith.constant 0 : index
    %2 = vector.load %arg4[%c0_3, %c0_4] : memref<64x32xf32, #tpu.memory_space<vmem>>, vector<64x32xf32>
    %c0_5 = arith.constant 0 : index
    %c0_6 = arith.constant 0 : index
    %3 = vector.load %arg5[%c0_5, %c0_6] : memref<32x64xf32, #tpu.memory_space<vmem>>, vector<32x64xf32>
    %c0_7 = arith.constant 0 : index
    %c0_8 = arith.constant 0 : index
    %4 = vector.load %arg1[%c0_7, %c0_8] : memref<32x128xf32, #tpu.memory_space<vmem>>, vector<32x128xf32>
    %cst = arith.constant dense<0.000000e+00> : vector<32x128xf32>
    %5 = tpu.matmul %0, %4, %cst {dimension_numbers = #tpu.dot_dimension_numbers<[1], [0], [0], [1], [0, 0, 1, 1], [], []>} : vector<32x32xf32>, vector<32x128xf32>, vector<32x128xf32> -> vector<32x128xf32>
    %c0_9 = arith.constant 0 : index
    %c0_10 = arith.constant 0 : index
    %6 = vector.load %arg2[%c0_9, %c0_10] : memref<1x128xf32, #tpu.memory_space<vmem>>, vector<1x128xf32>
    %7 = vector.broadcast %6 : vector<1x128xf32> to vector<32x128xf32>
    %8 = arith.addf %5, %7 : vector<32x128xf32>
    %cst_11 = arith.constant dense<0.000000e+00> : vector<64x128xf32>
    %9 = tpu.matmul %1, %8, %cst_11 {dimension_numbers = #tpu.dot_dimension_numbers<[1], [0], [0], [1], [0, 0, 1, 1], [], []>} : vector<64x32xf32>, vector<32x128xf32>, vector<64x128xf32> -> vector<64x128xf32>
    %cst_12 = arith.constant dense<0.000000e+00> : vector<64x128xf32>
    %10 = tpu.matmul %2, %8, %cst_12 {dimension_numbers = #tpu.dot_dimension_numbers<[1], [0], [0], [1], [0, 0, 1, 1], [], []>} : vector<64x32xf32>, vector<32x128xf32>, vector<64x128xf32> -> vector<64x128xf32>
    %c0_13 = arith.constant 0 : index
    %c0_14 = arith.constant 0 : index
    %11 = vector.load %arg6[%c0_13, %c0_14] : memref<64x8xf32, #tpu.memory_space<vmem>>, vector<64x8xf32>
    %c0_15 = arith.constant 0 : index
    %c0_16 = arith.constant 0 : index
    %12 = vector.load %arg7[%c0_15, %c0_16] : memref<8x128xf32, #tpu.memory_space<vmem>>, vector<8x128xf32>
    %cst_17 = arith.constant dense<0.000000e+00> : vector<64x128xf32>
    %13 = tpu.matmul %11, %12, %cst_17 {dimension_numbers = #tpu.dot_dimension_numbers<[1], [0], [0], [1], [0, 0, 1, 1], [], []>} : vector<64x8xf32>, vector<8x128xf32>, vector<64x128xf32> -> vector<64x128xf32>
    %14 = arith.mulf %9, %13 : vector<64x128xf32>
    %15 = arith.mulf %14, %10 : vector<64x128xf32>
    %c0_18 = arith.constant 0 : index
    %c0_19 = arith.constant 0 : index
    %16 = vector.load %arg8[%c0_18, %c0_19] : memref<128x4xf32, #tpu.memory_space<vmem>>, vector<128x4xf32>
    %cst_20 = arith.constant dense<0.000000e+00> : vector<64x4xf32>
    %17 = tpu.matmul %15, %16, %cst_20 {dimension_numbers = #tpu.dot_dimension_numbers<[1], [0], [0], [1], [0, 0, 1, 1], [], []>} : vector<64x128xf32>, vector<128x4xf32>, vector<64x4xf32> -> vector<64x4xf32>
    %cst_21 = arith.constant dense<0xFF800000> : vector<4xf32>
    %18 = vector.multi_reduction <maximumf>, %17, %cst_21 [0] : vector<64x4xf32> to vector<4xf32>
    %19 = vector.shape_cast %18 : vector<4xf32> to vector<1x4xf32>
    %20 = vector.broadcast %19 : vector<1x4xf32> to vector<64x4xf32>
    %21 = arith.subf %17, %20 : vector<64x4xf32>
    %22 = math.exp %21 : vector<64x4xf32>
    %cst_22 = arith.constant dense<0.000000e+00> : vector<32x4xf32>
    %23 = tpu.matmul %3, %22, %cst_22 {dimension_numbers = #tpu.dot_dimension_numbers<[1], [0], [0], [1], [0, 0, 1, 1], [], []>} : vector<32x64xf32>, vector<64x4xf32>, vector<32x4xf32> -> vector<32x4xf32>
    %cst_23 = arith.constant dense<0.000000e+00> : vector<64x4xf32>
    %24 = tpu.matmul %2, %23, %cst_23 {dimension_numbers = #tpu.dot_dimension_numbers<[1], [0], [0], [1], [0, 0, 1, 1], [], []>} : vector<64x32xf32>, vector<32x4xf32>, vector<64x4xf32> -> vector<64x4xf32>
    %cst_24 = arith.constant 1.000000e-30 : f32
    %25 = vector.broadcast %cst_24 : f32 to vector<64x4xf32>
    %26 = arith.maximumf %24, %25 : vector<64x4xf32>
    %27 = tpu.reciprocal %26 {approx = true} : vector<64x4xf32> -> vector<64x4xf32>
    %28 = arith.mulf %22, %27 : vector<64x4xf32>
    %c0_25 = arith.constant 0 : index
    %c0_26 = arith.constant 0 : index
    %29 = vector.load %arg9[%c0_25, %c0_26] : memref<4x128xf32, #tpu.memory_space<vmem>>, vector<4x128xf32>
    %cst_27 = arith.constant dense<0.000000e+00> : vector<64x128xf32>
    %30 = tpu.matmul %28, %29, %cst_27 {dimension_numbers = #tpu.dot_dimension_numbers<[1], [0], [0], [1], [0, 0, 1, 1], [], []>} : vector<64x4xf32>, vector<4x128xf32>, vector<64x128xf32> -> vector<64x128xf32>
    %31 = arith.mulf %30, %14 : vector<64x128xf32>
    %cst_28 = arith.constant dense<0.000000e+00> : vector<32x128xf32>
    %32 = tpu.matmul %3, %31, %cst_28 {dimension_numbers = #tpu.dot_dimension_numbers<[1], [0], [0], [1], [0, 0, 1, 1], [], []>} : vector<32x64xf32>, vector<64x128xf32>, vector<32x128xf32> -> vector<32x128xf32>
    %c0_29 = arith.constant 0 : index
    %c0_30 = arith.constant 0 : index
    %33 = vector.load %arg10[%c0_29, %c0_30] : memref<128x128xf32, #tpu.memory_space<vmem>>, vector<128x128xf32>
    %cst_31 = arith.constant dense<0.000000e+00> : vector<32x128xf32>
    %34 = tpu.matmul %32, %33, %cst_31 {dimension_numbers = #tpu.dot_dimension_numbers<[1], [0], [0], [1], [0, 0, 1, 1], [], []>} : vector<32x128xf32>, vector<128x128xf32>, vector<32x128xf32> -> vector<32x128xf32>
    %35 = math.tanh %34 : vector<32x128xf32>
    %c0_32 = arith.constant 0 : index
    %c0_33 = arith.constant 0 : index
    %36 = vector.load %arg11[%c0_32, %c0_33] : memref<128x32xf32, #tpu.memory_space<vmem>>, vector<128x32xf32>
    %cst_34 = arith.constant dense<0.000000e+00> : vector<32x32xf32>
    %37 = tpu.matmul %35, %36, %cst_34 {dimension_numbers = #tpu.dot_dimension_numbers<[1], [0], [0], [1], [0, 0, 1, 1], [], []>} : vector<32x128xf32>, vector<128x32xf32>, vector<32x32xf32> -> vector<32x32xf32>
    %38 = arith.addf %0, %37 : vector<32x32xf32>
    %c0_35 = arith.constant 0 : index
    %c0_36 = arith.constant 0 : index
    %39 = vector.load %arg22[%c0_35, %c0_36] : memref<32x32xf32, #tpu.memory_space<vmem>>, vector<32x32xf32>
    tpu.vector_store %arg22[%c0_35, %c0_36], %38 {strides = array<i32>} : memref<32x32xf32, #tpu.memory_space<vmem>>, vector<32x32xf32>,
    %c0_37 = arith.constant 0 : index
    %c0_38 = arith.constant 0 : index
    %40 = vector.load %arg20[%c0_37, %c0_38] : memref<8x64xf32, #tpu.memory_space<vmem>>, vector<8x64xf32>
    %c0_39 = arith.constant 0 : index
    %c0_40 = arith.constant 0 : index
    %41 = vector.load %arg21[%c0_39, %c0_40] : memref<64x32xf32, #tpu.memory_space<vmem>>, vector<64x32xf32>
    %cst_41 = arith.constant dense<0.000000e+00> : vector<8x32xf32>
    %42 = tpu.matmul %40, %41, %cst_41 {dimension_numbers = #tpu.dot_dimension_numbers<[1], [0], [0], [1], [0, 0, 1, 1], [], []>} : vector<8x64xf32>, vector<64x32xf32>, vector<8x32xf32> -> vector<8x32xf32>
    %c0_42 = arith.constant 0 : index
    %c0_43 = arith.constant 0 : index
    %43 = vector.load %arg23[%c0_42, %c0_43] : memref<8x32xf32, #tpu.memory_space<vmem>>, vector<8x32xf32>
    tpu.vector_store %arg23[%c0_42, %c0_43], %42 {strides = array<i32>} : memref<8x32xf32, #tpu.memory_space<vmem>>, vector<8x32xf32>,
    %c0_44 = arith.constant 0 : index
    %c0_45 = arith.constant 0 : index
    %44 = vector.load %arg12[%c0_44, %c0_45] : memref<128x512xf32, #tpu.memory_space<vmem>>, vector<128x512xf32>
    %cst_46 = arith.constant dense<0.000000e+00> : vector<32x512xf32>
    %45 = tpu.matmul %35, %44, %cst_46 {dimension_numbers = #tpu.dot_dimension_numbers<[1], [0], [0], [1], [0, 0, 1, 1], [], []>} : vector<32x128xf32>, vector<128x512xf32>, vector<32x512xf32> -> vector<32x512xf32>
    %c0_47 = arith.constant 0 : index
    %c0_48 = arith.constant 0 : index
    %46 = vector.load %arg13[%c0_47, %c0_48] : memref<1x512xf32, #tpu.memory_space<vmem>>, vector<1x512xf32>
    %47 = vector.broadcast %46 : vector<1x512xf32> to vector<32x512xf32>
    %48 = arith.addf %45, %47 : vector<32x512xf32>
    %cst_49 = arith.constant 0.000000e+00 : f32
    %49 = vector.broadcast %cst_49 : f32 to vector<32x512xf32>
    %50 = arith.maximumf %48, %49 : vector<32x512xf32>
    %c0_50 = arith.constant 0 : index
    %c0_51 = arith.constant 0 : index
    %51 = vector.load %arg14[%c0_50, %c0_51] : memref<512x512xf32, #tpu.memory_space<vmem>>, vector<512x512xf32>
    %cst_52 = arith.constant dense<0.000000e+00> : vector<32x512xf32>
    %52 = tpu.matmul %50, %51, %cst_52 {dimension_numbers = #tpu.dot_dimension_numbers<[1], [0], [0], [1], [0, 0, 1, 1], [], []>} : vector<32x512xf32>, vector<512x512xf32>, vector<32x512xf32> -> vector<32x512xf32>
    %c0_53 = arith.constant 0 : index
    %c0_54 = arith.constant 0 : index
    %53 = vector.load %arg15[%c0_53, %c0_54] : memref<1x512xf32, #tpu.memory_space<vmem>>, vector<1x512xf32>
    %54 = vector.broadcast %53 : vector<1x512xf32> to vector<32x512xf32>
    %55 = arith.addf %52, %54 : vector<32x512xf32>
    %cst_55 = arith.constant 0.000000e+00 : f32
    %56 = vector.broadcast %cst_55 : f32 to vector<32x512xf32>
    %57 = arith.maximumf %55, %56 : vector<32x512xf32>
    %c0_56 = arith.constant 0 : index
    %c0_57 = arith.constant 0 : index
    %58 = vector.load %arg16[%c0_56, %c0_57] : memref<512x1xf32, #tpu.memory_space<vmem>>, vector<512x1xf32>
    %cst_58 = arith.constant dense<0.000000e+00> : vector<32x1xf32>
    %59 = tpu.matmul %57, %58, %cst_58 {dimension_numbers = #tpu.dot_dimension_numbers<[1], [0], [0], [1], [0, 0, 1, 1], [], []>} : vector<32x512xf32>, vector<512x1xf32>, vector<32x1xf32> -> vector<32x1xf32>
    %c0_59 = arith.constant 0 : index
    %c0_60 = arith.constant 0 : index
    %60 = vector.load %arg17[%c0_59, %c0_60] : memref<1x1xf32, #tpu.memory_space<vmem>>, vector<1x1xf32>
    %61 = vector.broadcast %60 : vector<1x1xf32> to vector<32x1xf32>
    %62 = arith.addf %59, %61 : vector<32x1xf32>
    %c0_61 = arith.constant 0 : index
    %c0_62 = arith.constant 0 : index
    %63 = vector.load %arg18[%c0_61, %c0_62] : memref<512x1xf32, #tpu.memory_space<vmem>>, vector<512x1xf32>
    %cst_63 = arith.constant dense<0.000000e+00> : vector<32x1xf32>
    %64 = tpu.matmul %57, %63, %cst_63 {dimension_numbers = #tpu.dot_dimension_numbers<[1], [0], [0], [1], [0, 0, 1, 1], [], []>} : vector<32x512xf32>, vector<512x1xf32>, vector<32x1xf32> -> vector<32x1xf32>
    %c0_64 = arith.constant 0 : index
    %c0_65 = arith.constant 0 : index
    %65 = vector.load %arg19[%c0_64, %c0_65] : memref<1x1xf32, #tpu.memory_space<vmem>>, vector<1x1xf32>
    %66 = vector.broadcast %65 : vector<1x1xf32> to vector<32x1xf32>
    %67 = arith.addf %64, %66 : vector<32x1xf32>
    %cst_66 = arith.constant dense<0.000000e+00> : vector<1xf32>
    %68 = vector.multi_reduction <add>, %62, %cst_66 [0] : vector<32x1xf32> to vector<1xf32>
    %69 = vector.shape_cast %68 : vector<1xf32> to vector<1x1xf32>
    %cst_67 = arith.constant 3.200000e+01 : f32
    %70 = vector.broadcast %cst_67 : f32 to vector<1x1xf32>
    %71 = arith.divf %69, %70 : vector<1x1xf32>
    %72 = vector.broadcast %71 : vector<1x1xf32> to vector<32x1xf32>
    %73 = arith.subf %62, %72 : vector<32x1xf32>
    %cst_68 = arith.constant dense<0.000000e+00> : vector<1xf32>
    %74 = vector.multi_reduction <add>, %67, %cst_68 [0] : vector<32x1xf32> to vector<1xf32>
    %75 = vector.shape_cast %74 : vector<1xf32> to vector<1x1xf32>
    %cst_69 = arith.constant 3.200000e+01 : f32
    %76 = vector.broadcast %cst_69 : f32 to vector<1x1xf32>
    %77 = arith.divf %75, %76 : vector<1x1xf32>
    %78 = vector.broadcast %77 : vector<1x1xf32> to vector<32x1xf32>
    %79 = arith.subf %67, %78 : vector<32x1xf32>
    %80 = arith.mulf %73, %79 : vector<32x1xf32>
    %cst_70 = arith.constant dense<0.000000e+00> : vector<1xf32>
    %81 = vector.multi_reduction <add>, %80, %cst_70 [0] : vector<32x1xf32> to vector<1xf32>
    %82 = vector.shape_cast %81 : vector<1xf32> to vector<1x1xf32>
    %cst_71 = arith.constant 3.200000e+01 : f32
    %83 = vector.broadcast %cst_71 : f32 to vector<1x1xf32>
    %84 = arith.divf %82, %83 : vector<1x1xf32>
    %85 = arith.mulf %73, %73 : vector<32x1xf32>
    %cst_72 = arith.constant dense<0.000000e+00> : vector<1xf32>
    %86 = vector.multi_reduction <add>, %85, %cst_72 [0] : vector<32x1xf32> to vector<1xf32>
    %87 = vector.shape_cast %86 : vector<1xf32> to vector<1x1xf32>
    %cst_73 = arith.constant 3.200000e+01 : f32
    %88 = vector.broadcast %cst_73 : f32 to vector<1x1xf32>
    %89 = arith.divf %87, %88 : vector<1x1xf32>
    %90 = arith.mulf %79, %79 : vector<32x1xf32>
    %cst_74 = arith.constant dense<0.000000e+00> : vector<1xf32>
    %91 = vector.multi_reduction <add>, %90, %cst_74 [0] : vector<32x1xf32> to vector<1xf32>
    %92 = vector.shape_cast %91 : vector<1xf32> to vector<1x1xf32>
    %cst_75 = arith.constant 3.200000e+01 : f32
    %93 = vector.broadcast %cst_75 : f32 to vector<1x1xf32>
    %94 = arith.divf %92, %93 : vector<1x1xf32>
    %95 = math.absf %84 : vector<1x1xf32>
    %96 = arith.mulf %89, %94 : vector<1x1xf32>
    %97 = math.sqrt %96 : vector<1x1xf32>
    %cst_76 = arith.constant 9.99999996E-13 : f32
    %98 = vector.broadcast %cst_76 : f32 to vector<1x1xf32>
    %99 = arith.addf %97, %98 : vector<1x1xf32>
    %100 = arith.divf %95, %99 : vector<1x1xf32>
    %c0_77 = arith.constant 0 : index
    %c0_78 = arith.constant 0 : index
    %101 = vector.load %arg24[%c0_77, %c0_78] : memref<1x1xf32, #tpu.memory_space<vmem>>, vector<1x1xf32>
    tpu.vector_store %arg24[%c0_77, %c0_78], %100 {strides = array<i32>} : memref<1x1xf32, #tpu.memory_space<vmem>>, vector<1x1xf32>,
    return
  }
}

module attributes {stable_mosaic.version = 11 : i64} {
  func.func @_predict_kernel(%arg0: memref<4x40xf32, #tpu.memory_space<vmem>>, %arg1: memref<40x64xf32, #tpu.memory_space<vmem>>, %arg2: memref<32x32xf32, #tpu.memory_space<vmem>>, %arg3: memref<64x256xf32, #tpu.memory_space<vmem>>, %arg4: memref<256x32xf32, #tpu.memory_space<vmem>>, %arg5: memref<1x32xf32, #tpu.memory_space<vmem>>, %arg6: memref<4x32xf32, #tpu.memory_space<vmem>>) attributes {dimension_semantics = [], scalar_prefetch = 0 : i64, scratch_operands = 0 : i64, tpu.core_type = #tpu.core_type<tc>} {
    %c0 = arith.constant 0 : index
    %c0_0 = arith.constant 0 : index
    %0 = vector.load %arg0[%c0, %c0_0] : memref<4x40xf32, #tpu.memory_space<vmem>>, vector<4x40xf32>
    %c0_1 = arith.constant 0 : index
    %c0_2 = arith.constant 0 : index
    %1 = vector.load %arg1[%c0_1, %c0_2] : memref<40x64xf32, #tpu.memory_space<vmem>>, vector<40x64xf32>
    %cst = arith.constant dense<0.000000e+00> : vector<4x64xf32>
    %2 = tpu.matmul %0, %1, %cst {dimension_numbers = #tpu.dot_dimension_numbers<[1], [0], [0], [1], [0, 0, 1, 1], [], []>} : vector<4x40xf32>, vector<40x64xf32>, vector<4x64xf32> -> vector<4x64xf32>
    %c0_3 = arith.constant 0 : index
    %c0_4 = arith.constant 0 : index
    %3 = vector.load %arg3[%c0_3, %c0_4] : memref<64x256xf32, #tpu.memory_space<vmem>>, vector<64x256xf32>
    %cst_5 = arith.constant dense<0.000000e+00> : vector<4x256xf32>
    %4 = tpu.matmul %2, %3, %cst_5 {dimension_numbers = #tpu.dot_dimension_numbers<[1], [0], [0], [1], [0, 0, 1, 1], [], []>} : vector<4x64xf32>, vector<64x256xf32>, vector<4x256xf32> -> vector<4x256xf32>
    %cst_6 = arith.constant 0.000000e+00 : f32
    %5 = vector.broadcast %cst_6 : f32 to vector<4x256xf32>
    %6 = arith.maximumf %4, %5 : vector<4x256xf32>
    %c0_7 = arith.constant 0 : index
    %c0_8 = arith.constant 0 : index
    %7 = vector.load %arg4[%c0_7, %c0_8] : memref<256x32xf32, #tpu.memory_space<vmem>>, vector<256x32xf32>
    %cst_9 = arith.constant dense<0.000000e+00> : vector<4x32xf32>
    %8 = tpu.matmul %6, %7, %cst_9 {dimension_numbers = #tpu.dot_dimension_numbers<[1], [0], [0], [1], [0, 0, 1, 1], [], []>} : vector<4x256xf32>, vector<256x32xf32>, vector<4x32xf32> -> vector<4x32xf32>
    %c0_10 = arith.constant 0 : index
    %c0_11 = arith.constant 0 : index
    %9 = vector.load %arg5[%c0_10, %c0_11] : memref<1x32xf32, #tpu.memory_space<vmem>>, vector<1x32xf32>
    %10 = vector.broadcast %9 : vector<1x32xf32> to vector<4x32xf32>
    %11 = arith.addf %8, %10 : vector<4x32xf32>
    %cst_12 = arith.constant 0.000000e+00 : f32
    %12 = vector.broadcast %cst_12 : f32 to vector<4x32xf32>
    %13 = arith.maximumf %11, %12 : vector<4x32xf32>
    %c0_13 = arith.constant 0 : index
    %c0_14 = arith.constant 0 : index
    %14 = vector.load %arg2[%c0_13, %c0_14] : memref<32x32xf32, #tpu.memory_space<vmem>>, vector<32x32xf32>
    %cst_15 = arith.constant dense<0.000000e+00> : vector<4x32xf32>
    %15 = tpu.matmul %13, %14, %cst_15 {dimension_numbers = #tpu.dot_dimension_numbers<[1], [1], [0], [0], [0, 0, 1, 0], [], []>} : vector<4x32xf32>, vector<32x32xf32>, vector<4x32xf32> -> vector<4x32xf32>
    %cst_16 = arith.constant 5.000000e-01 : f32
    %16 = vector.broadcast %cst_16 : f32 to vector<4x32xf32>
    %17 = arith.mulf %16, %15 : vector<4x32xf32>
    %18 = math.tanh %17 : vector<4x32xf32>
    %cst_17 = arith.constant 1.000000e+00 : f32
    %19 = vector.broadcast %cst_17 : f32 to vector<4x32xf32>
    %20 = arith.addf %18, %19 : vector<4x32xf32>
    %cst_18 = arith.constant 5.000000e-01 : f32
    %21 = vector.broadcast %cst_18 : f32 to vector<4x32xf32>
    %22 = arith.mulf %21, %20 : vector<4x32xf32>
    %c0_19 = arith.constant 0 : index
    %c0_20 = arith.constant 0 : index
    %23 = vector.load %arg6[%c0_19, %c0_20] : memref<4x32xf32, #tpu.memory_space<vmem>>, vector<4x32xf32>
    tpu.vector_store %arg6[%c0_19, %c0_20], %22 {strides = array<i32>} : memref<4x32xf32, #tpu.memory_space<vmem>>, vector<4x32xf32>,
    return
  }
}

</mosaic_0001>

<llo_original>
// kernel: dsgnet_forward.3
$region0: #{dsgnet_forward.3}
  #allocation0 [shape = 'u32[]', space=smem, size = 0x4, offset = 0x4, fixed_abs, tag = 'smem constant byte address 0x4 - core index']
  #allocation1 [shape = 'u32[72,128]{1,0:T(1,128)}', space=vmem, size = 0x9000, scoped, tag = 'internal scratch']
  %s0 = inlined_call_operand.vmem [shape: f32[4,40], index: 0, kind: input, shape index: {}]
  %s1 = inlined_call_operand.vmem [shape: f32[40,64], index: 1, kind: input, shape index: {}]
  %s2 = inlined_call_operand.vmem [shape: f32[32,32], index: 2, kind: input, shape index: {}]
  %s3 = inlined_call_operand.hbm [shape: f32[64,256], index: 3, kind: input, shape index: {}]
  %s4 = inlined_call_operand.hbm [shape: f32[256,32], index: 4, kind: input, shape index: {}]
  %s5 = inlined_call_operand.vmem [shape: f32[1,32], index: 5, kind: input, shape index: {}]
  %s6 = inlined_call_operand.hbm [shape: f32[4,32], index: 6, kind: output, shape index: {}]
  %s7 = sld [smem:[#allocation0]]
  $region42: #{dsgnet_forward.3} parent=0
    _
  %s9 = ssub.s32 1, %s7
  %s10 = scalar_select 0, %s9, %s7
  $region1: #{dsgnet_forward.3} parent=0
    #allocation2 [shape = 'u8[65536]{0}', space=vmem, size = 0x10000, scoped, tag = 'input window, operand 3, single buffered']
    #allocation3 [shape = 's32[1]{0}', space=sflag, size = 0x4, scoped, tag = 'scoped memory for dsgnet_forward.3']
    #allocation4 [shape = 's32[1]{0}', space=sflag, size = 0x4, scoped, tag = 'scoped memory for dsgnet_forward.3']
    #allocation5 [shape = 'u8[131072]{0}', space=vmem, size = 0x20000, scoped, tag = 'input window, operand 4, single buffered']
    #allocation6 [shape = 's32[1]{0}', space=sflag, size = 0x4, scoped, tag = 'scoped memory for dsgnet_forward.3']
    #allocation7 [shape = 'u8[2048]{0}', space=vmem, size = 0x800, scoped, tag = 'output window, operand 0, single buffered']
    %11 = vsyncpa [#allocation3], 0
    %12 = vsyncpa [#allocation6], 0
    %13 = vsyncpa [#allocation4], 0
    // Predicated region
    $region2: #{dsgnet_forward.3} parent=1 // pred_check
      _
    $region3: #{dsgnet_forward.3} parent=1 // pred_check_branch
      %15 = sbr.rel (0) target = $region5
    $region4: #{dsgnet_forward.3} parent=1 // pred_region
      _
    $region5: #{dsgnet_forward.3} parent=1 // pred_fallthru
      _
    // Predicated region
    $region6: #{dsgnet_forward.3} parent=1 // pred_check
      _
    $region7: #{dsgnet_forward.3} parent=1 // pred_check_branch
      %17 = sbr.rel (0) target = $region9
    $region8: #{dsgnet_forward.3} parent=1 // pred_region
      _
    $region9: #{dsgnet_forward.3} parent=1 // pred_fallthru
      _
    // Predicated region
    $region10: #{dsgnet_forward.3} parent=1 // pred_check
      _
    $region11: #{dsgnet_forward.3} parent=1 // pred_check_branch
      %19 = sbr.rel (0) target = $region13
    $region12: #{dsgnet_forward.3} parent=1 // pred_region
      _
    $region13: #{dsgnet_forward.3} parent=1 // pred_fallthru
      _
    // Predicated region
    $region14: #{dsgnet_forward.3} parent=1 // pred_check
      _
    $region15: #{dsgnet_forward.3} parent=1 // pred_check_branch
      %21 = sbr.rel (0) target = $region17
    $region16: #{dsgnet_forward.3} parent=1 // pred_region
      %23 = vsyncadd [#allocation3], 0
      %s24 = sshll.u32 %s3, 4
      %s25 = int_to_ptr.hbm [resolvable:$true] %s24
      %s26 = sshll.u32 [#allocation2], 4
      %s27 = int_to_ptr.vmem [resolvable:$true] %s26
      %32 = dma.hbm_to_vmem [thread:$0]  %s25, 2048, %s27, [#allocation3], 256, 256, 16
    $region17: #{dsgnet_forward.3} parent=1 // pred_fallthru
      _
    // Predicated region
    $region18: #{dsgnet_forward.3} parent=1 // pred_check
      _
    $region19: #{dsgnet_forward.3} parent=1 // pred_check_branch
      %34 = sbr.rel (0) target = $region21
    $region20: #{dsgnet_forward.3} parent=1 // pred_region
      %36 = vsyncadd [#allocation6], 0
      %s37 = sshll.u32 %s4, 4
      %s38 = int_to_ptr.hbm [resolvable:$true] %s37
      %s39 = sshll.u32 [#allocation5], 4
      %s40 = int_to_ptr.vmem [resolvable:$true] %s39
      %45 = dma.hbm_to_vmem [thread:$0]  %s38, 4096, %s40, [#allocation6], 128, 128, 8
    $region21: #{dsgnet_forward.3} parent=1 // pred_fallthru
      _
    // Predicated region
    $region22: #{dsgnet_forward.3} parent=1 // pred_check
      _
    $region23: #{dsgnet_forward.3} parent=1 // pred_check_branch
      %47 = sbr.rel (0) target = $region25
    $region24: #{dsgnet_forward.3} parent=1 // pred_region
      _
    $region25: #{dsgnet_forward.3} parent=1 // pred_fallthru
      _
    // Predicated region
    $region26: #{dsgnet_forward.3} parent=1 // pred_check
      _
    $region27: #{dsgnet_forward.3} parent=1 // pred_check_branch
      %49 = sbr.rel (0) target = $region29
    $region28: #{dsgnet_forward.3} parent=1 // pred_region
      %51 = dma.done [#allocation3], 2048
    $region29: #{dsgnet_forward.3} parent=1 // pred_fallthru
      _
    // Predicated region
    $region30: #{dsgnet_forward.3} parent=1 // pred_check
      _
    $region31: #{dsgnet_forward.3} parent=1 // pred_check_branch
      %53 = sbr.rel (0) target = $region33
    $region32: #{dsgnet_forward.3} parent=1 // pred_region
      %55 = dma.done [#allocation6], 4096
    $region33: #{dsgnet_forward.3} parent=1 // pred_fallthru
      _
    %v56 = vld [vmem:[%s0] sm:$0xf]
    %v57 = vld [vmem:[%s1] sm:$0xff]
    %v58 = vld [vmem:[%s1 + $0x8] sm:$0xff]
    %v59 = vld [vmem:[%s1 + $0x10] sm:$0xff]
    %v60 = vld [vmem:[%s1 + $0x18] sm:$0xff]
    %v61 = vld [vmem:[%s1 + $0x20] sm:$0xff]
    %vm62 = vcmask 326656
    %v64 = vsel %vm62, %v56, 0
    %66 = vmatpush.msra.mxu0 0.0
    %67 = vmatpush.msra.mxu0 0.0
    %68 = vmatpush.msra.mxu0 0.0
    %69 = vmatpush.msra.mxu0 0.0
    %70 = vmatpush.msra.mxu0 0.0
    %71 = vmatpush.msra.mxu0 0.0
    %72 = vmatpush.msra.mxu0 0.0
    %73 = vmatpush.msra.mxu0 0.0
    %74 = vmatpush.msra.mxu0 0.0
    %75 = vmatpush.msra.mxu0 0.0
    %76 = vmatpush.msra.mxu0 0.0
    %77 = vmatpush.msra.mxu0 %v61
    %78 = vmatpush.msra.mxu0 %v60
    %79 = vmatpush.msra.mxu0 %v59
    %80 = vmatpush.msra.mxu0 %v58
    %81 = vmatpush.msra.mxu0 %v57
    %82 = vmatmul.f32.gmra.mxu0 %v64
    %v83 = vpop.f32.mrf.mxu0
    %v84 = vadd.f32 0.0, %v83
    %85 = vdwg.mxu0
    %v86 = vld [vmem:[#allocation2] sm:$0xff]
    %v87 = vld [vmem:[#allocation2 + $0x8] sm:$0xff]
    %v88 = vld [vmem:[#allocation2 + $0x10] sm:$0xff]
    %v89 = vld [vmem:[#allocation2 + $0x18] sm:$0xff]
    %v90 = vld [vmem:[#allocation2 + $0x20] sm:$0xff]
    %v91 = vld [vmem:[#allocation2 + $0x28] sm:$0xff]
    %v92 = vld [vmem:[#allocation2 + $0x30] sm:$0xff]
    %v93 = vld [vmem:[#allocation2 + $0x38] sm:$0xff]
    %v94 = vld [vmem:[#allocation2 + $0x40] sm:$0xff]
    %v95 = vld [vmem:[#allocation2 + $0x48] sm:$0xff]
    %v96 = vld [vmem:[#allocation2 + $0x50] sm:$0xff]
    %v97 = vld [vmem:[#allocation2 + $0x58] sm:$0xff]
    %v98 = vld [vmem:[#allocation2 + $0x60] sm:$0xff]
    %v99 = vld [vmem:[#allocation2 + $0x68] sm:$0xff]
    %v100 = vld [vmem:[#allocation2 + $0x70] sm:$0xff]
    %v101 = vld [vmem:[#allocation2 + $0x78] sm:$0xff]
    %vm102 = vcmask 523264
    %v104 = vsel %vm102, %v84, 0
    %106 = vmatpush.msra.mxu0 0.0
    %107 = vmatpush.msra.mxu0 0.0
    %108 = vmatpush.msra.mxu0 0.0
    %109 = vmatpush.msra.mxu0 0.0
    %110 = vmatpush.msra.mxu0 0.0
    %111 = vmatpush.msra.mxu0 0.0
    %112 = vmatpush.msra.mxu0 0.0
    %113 = vmatpush.msra.mxu0 0.0
    %114 = vmatpush.msra.mxu0 %v100
    %115 = vmatpush.msra.mxu0 %v98
    %116 = vmatpush.msra.mxu0 %v96
    %117 = vmatpush.msra.mxu0 %v94
    %118 = vmatpush.msra.mxu0 %v92
    %119 = vmatpush.msra.mxu0 %v90
    %120 = vmatpush.msra.mxu0 %v88
    %121 = vmatpush.msra.mxu0 %v86
    %122 = vmatmul.f32.gmra.mxu0 %v104
    %v123 = vpop.f32.mrf.mxu0
    %v124 = vadd.f32 0.0, %v123
    %125 = vdwg.mxu0
    %126 = vmatpush.msra.mxu0 0.0
    %127 = vmatpush.msra.mxu0 0.0
    %128 = vmatpush.msra.mxu0 0.0
    %129 = vmatpush.msra.mxu0 0.0
    %130 = vmatpush.msra.mxu0 0.0
    %131 = vmatpush.msra.mxu0 0.0
    %132 = vmatpush.msra.mxu0 0.0
    %133 = vmatpush.msra.mxu0 0.0
    %134 = vmatpush.msra.mxu0 %v101
    %135 = vmatpush.msra.mxu0 %v99
    %136 = vmatpush.msra.mxu0 %v97
    %137 = vmatpush.msra.mxu0 %v95
    %138 = vmatpush.msra.mxu0 %v93
    %139 = vmatpush.msra.mxu0 %v91
    %140 = vmatpush.msra.mxu0 %v89
    %141 = vmatpush.msra.mxu0 %v87
    %142 = vmatmul.f32.gmra.mxu0 %v104
    %v143 = vpop.f32.mrf.mxu0
    %v144 = vadd.f32 0.0, %v143
    %145 = vdwg.mxu0
    %v146 = vmax.f32 %v124, 0.0
    %v147 = vmax.f32 %v144, 0.0
    %v148 = vld [vmem:[#allocation5] sm:$0xff]
    %v149 = vld [vmem:[#allocation5 + $0x8] sm:$0xff]
    %v150 = vld [vmem:[#allocation5 + $0x10] sm:$0xff]
    %v151 = vld [vmem:[#allocation5 + $0x18] sm:$0xff]
    %v152 = vld [vmem:[#allocation5 + $0x20] sm:$0xff]
    %v153 = vld [vmem:[#allocation5 + $0x28] sm:$0xff]
    %v154 = vld [vmem:[#allocation5 + $0x30] sm:$0xff]
    %v155 = vld [vmem:[#allocation5 + $0x38] sm:$0xff]
    %v156 = vld [vmem:[#allocation5 + $0x40] sm:$0xff]
    %v157 = vld [vmem:[#allocation5 + $0x48] sm:$0xff]
    %v158 = vld [vmem:[#allocation5 + $0x50] sm:$0xff]
    %v159 = vld [vmem:[#allocation5 + $0x58] sm:$0xff]
    %v160 = vld [vmem:[#allocation5 + $0x60] sm:$0xff]
    %v161 = vld [vmem:[#allocation5 + $0x68] sm:$0xff]
    %v162 = vld [vmem:[#allocation5 + $0x70] sm:$0xff]
    %v163 = vld [vmem:[#allocation5 + $0x78] sm:$0xff]
    %v164 = vld [vmem:[#allocation5 + $0x80] sm:$0xff]
    %v165 = vld [vmem:[#allocation5 + $0x88] sm:$0xff]
    %v166 = vld [vmem:[#allocation5 + $0x90] sm:$0xff]
    %v167 = vld [vmem:[#allocation5 + $0x98] sm:$0xff]
    %v168 = vld [vmem:[#allocation5 + $0xa0] sm:$0xff]
    %v169 = vld [vmem:[#allocation5 + $0xa8] sm:$0xff]
    %v170 = vld [vmem:[#allocation5 + $0xb0] sm:$0xff]
    %v171 = vld [vmem:[#allocation5 + $0xb8] sm:$0xff]
    %v172 = vld [vmem:[#allocation5 + $0xc0] sm:$0xff]
    %v173 = vld [vmem:[#allocation5 + $0xc8] sm:$0xff]
    %v174 = vld [vmem:[#allocation5 + $0xd0] sm:$0xff]
    %v175 = vld [vmem:[#allocation5 + $0xd8] sm:$0xff]
    %v176 = vld [vmem:[#allocation5 + $0xe0] sm:$0xff]
    %v177 = vld [vmem:[#allocation5 + $0xe8] sm:$0xff]
    %v178 = vld [vmem:[#allocation5 + $0xf0] sm:$0xff]
    %v179 = vld [vmem:[#allocation5 + $0xf8] sm:$0xff]
    %v180 = vld [vmem:[%s5] sm:$0x1]
    %v182 = vperm.slane %v180, 0
    %184 = vmatpush.msra.mxu0 %v163
    %185 = vmatpush.msra.mxu0 %v162
    %186 = vmatpush.msra.mxu0 %v161
    %187 = vmatpush.msra.mxu0 %v160
    %188 = vmatpush.msra.mxu0 %v159
    %189 = vmatpush.msra.mxu0 %v158
    %190 = vmatpush.msra.mxu0 %v157
    %191 = vmatpush.msra.mxu0 %v156
    %192 = vmatpush.msra.mxu0 %v155
    %193 = vmatpush.msra.mxu0 %v154
    %194 = vmatpush.msra.mxu0 %v153
    %195 = vmatpush.msra.mxu0 %v152
    %196 = vmatpush.msra.mxu0 %v151
    %197 = vmatpush.msra.mxu0 %v150
    %198 = vmatpush.msra.mxu0 %v149
    %199 = vmatpush.msra.mxu0 %v148
    %200 = vmatmul.f32.gmra.mxu0 %v146
    %v201 = vpop.f32.mrf.mxu0
    %v202 = vadd.f32 %v182, %v201
    %203 = vdwg.mxu0
    %204 = vmatpush.msra.mxu0 %v179
    %205 = vmatpush.msra.mxu0 %v178
    %206 = vmatpush.msra.mxu0 %v177
    %207 = vmatpush.msra.mxu0 %v176
    %208 = vmatpush.msra.mxu0 %v175
    %209 = vmatpush.msra.mxu0 %v174
    %210 = vmatpush.msra.mxu0 %v173
    %211 = vmatpush.msra.mxu0 %v172
    %212 = vmatpush.msra.mxu0 %v171
    %213 = vmatpush.msra.mxu0 %v170
    %214 = vmatpush.msra.mxu0 %v169
    %215 = vmatpush.msra.mxu0 %v168
    %216 = vmatpush.msra.mxu0 %v167
    %217 = vmatpush.msra.mxu0 %v166
    %218 = vmatpush.msra.mxu0 %v165
    %219 = vmatpush.msra.mxu0 %v164
    %220 = vmatmul.f32.gmra.mxu0 %v147
    %v221 = vpop.f32.mrf.mxu0
    %v222 = vadd.f32 %v202, %v221
    %223 = vdwg.mxu0
    %v224 = vmax.f32 %v222, 0.0
    %v225 = vld [vmem:[%s2] sm:$0xff]
    %v226 = vld [vmem:[%s2 + $0x8] sm:$0xff]
    %v227 = vld [vmem:[%s2 + $0x10] sm:$0xff]
    %v228 = vld [vmem:[%s2 + $0x18] sm:$0xff]
    %vm229 = vcmask 261120
    %v231 = vsel %vm229, %v224, 0
    %v234 = vsel %vm229, %v225, 0
    %v237 = vsel %vm229, %v226, 0
    %v240 = vsel %vm229, %v227, 0
    %v243 = vsel %vm229, %v228, 0
    %245 = vmatpush.xpose.msra.mxu0 0.0
    %246 = vmatpush.xpose.msra.mxu0 0.0
    %247 = vmatpush.xpose.msra.mxu0 0.0
    %248 = vmatpush.xpose.msra.mxu0 0.0
    %249 = vmatpush.xpose.msra.mxu0 0.0
    %250 = vmatpush.xpose.msra.mxu0 0.0
    %251 = vmatpush.xpose.msra.mxu0 0.0
    %252 = vmatpush.xpose.msra.mxu0 0.0
    %253 = vmatpush.xpose.msra.mxu0 0.0
    %254 = vmatpush.xpose.msra.mxu0 0.0
    %255 = vmatpush.xpose.msra.mxu0 0.0
    %256 = vmatpush.xpose.msra.mxu0 0.0
    %257 = vmatpush.xpose.msra.mxu0 %v243
    %258 = vmatpush.xpose.msra.mxu0 %v240
    %259 = vmatpush.xpose.msra.mxu0 %v237
    %260 = vmatpush.xpose.msra.mxu0 %v234
    %261 = vmatmul.f32.gmra.mxu0 %v231
    %v262 = vpop.f32.mrf.mxu0
    %v263 = vadd.f32 0.0, %v262
    %264 = vdwg.mxu0
    %v265 = vmul.f32 %v263, 0.5
    %v266 = vtanh.pop %v265
    %v267 = vadd.f32 %v266, 1.0
    %v268 = vmul.f32 %v267, 0.5
    %vm269 = vcmask 257024
    %270 = vst.msk [vmem:[#allocation7] sm:$0xf] %vm269, %v268
    // Predicated region
    $region34: #{dsgnet_forward.3} parent=1 // pred_check
      _
    $region35: #{dsgnet_forward.3} parent=1 // pred_check_branch
      %272 = sbr.rel (0) target = $region37
    $region36: #{dsgnet_forward.3} parent=1 // pred_region
      %274 = vsyncadd [#allocation4], 0
      %s276 = sshll.u32 [#allocation7], 4
      %s277 = int_to_ptr.vmem [resolvable:$true] %s276
      %s278 = sshll.u32 %s6, 4
      %s279 = int_to_ptr.hbm [resolvable:$true] %s278
      %281 = dma.vmem_to_hbm [thread:$0]  %s277, 64, %s279, [#allocation4]
    $region37: #{dsgnet_forward.3} parent=1 // pred_fallthru
      _
    // Predicated region
    $region38: #{dsgnet_forward.3} parent=1 // pred_check
      _
    $region39: #{dsgnet_forward.3} parent=1 // pred_check_branch
      %283 = sbr.rel (0) target = $region41
    $region40: #{dsgnet_forward.3} parent=1 // pred_region
      %285 = dma.done [#allocation4], 64
    $region41: #{dsgnet_forward.3} parent=1 // pred_fallthru
      _
    %286 = vsyncpa [#allocation3], 1
    %287 = vsyncpa [#allocation6], 1
    %288 = vsyncpa [#allocation4], 1

// kernel: dsgnet_forward.2
$region0: #{dsgnet_forward.2}
  #allocation0 [shape = 'u32[]', space=smem, size = 0x4, offset = 0x4, fixed_abs, tag = 'smem constant byte address 0x4 - core index']
  #allocation1 [shape = 'u32[72,128]{1,0:T(1,128)}', space=vmem, size = 0x9000, scoped, tag = 'internal scratch']
  #allocation2 [shape = 'f32[1,1]{1,0:T(1,128)S(1)}', space=vmem, size = 0x200, scoped, tag = 'scoped memory for dsgnet_forward.2']
  #allocation3 [shape = 'f32[1,1]{1,0:T(1,128)S(1)}', space=vmem, size = 0x200, scoped, tag = 'scoped memory for dsgnet_forward.2']
  %s0 = inlined_call_operand.hbm [shape: f32[32,32], index: 0, kind: input, shape index: {}]
  %s1 = inlined_call_operand.hbm [shape: f32[32,128], index: 1, kind: input, shape index: {}]
  %s2 = inlined_call_operand.vmem [shape: f32[1,128], index: 2, kind: input, shape index: {}]
  %s3 = inlined_call_operand.hbm [shape: f32[64,32], index: 3, kind: input, shape index: {}]
  %s4 = inlined_call_operand.hbm [shape: f32[64,32], index: 4, kind: input, shape index: {}]
  %s5 = inlined_call_operand.hbm [shape: f32[32,64], index: 5, kind: input, shape index: {}]
  %s6 = inlined_call_operand.hbm [shape: f32[64,8], index: 6, kind: input, shape index: {}]
  %s7 = inlined_call_operand.vmem [shape: f32[8,128], index: 7, kind: input, shape index: {}]
  %s8 = inlined_call_operand.hbm [shape: f32[128,4], index: 8, kind: input, shape index: {}]
  %s9 = inlined_call_operand.vmem [shape: f32[4,128], index: 9, kind: input, shape index: {}]
  %s10 = inlined_call_operand.hbm [shape: f32[128,128], index: 10, kind: input, shape index: {}]
  %s11 = inlined_call_operand.hbm [shape: f32[128,32], index: 11, kind: input, shape index: {}]
  %s12 = inlined_call_operand.hbm [shape: f32[128,512], index: 12, kind: input, shape index: {}]
  %s13 = inlined_call_operand.vmem [shape: f32[1,512], index: 13, kind: input, shape index: {}]
  %s14 = inlined_call_operand.hbm [shape: f32[512,512], index: 14, kind: input, shape index: {}]
  %s15 = inlined_call_operand.hbm [shape: f32[1,512], index: 15, kind: input, shape index: {}]
  %s16 = inlined_call_operand.hbm [shape: f32[512,1], index: 16, kind: input, shape index: {}]
  %s17 = inlined_call_operand.<no memory space> [shape: f32[1,1], index: 17, kind: input, shape index: {}]
  %s18 = inlined_call_operand.hbm [shape: f32[512,1], index: 18, kind: input, shape index: {}]
  %s19 = inlined_call_operand.<no memory space> [shape: f32[1,1], index: 19, kind: input, shape index: {}]
  %s20 = inlined_call_operand.hbm [shape: f32[8,64], index: 20, kind: input, shape index: {}]
  %s21 = inlined_call_operand.hbm [shape: f32[64,32], index: 21, kind: input, shape index: {}]
  %s22 = inlined_call_operand.vmem [shape: f32[32,32], index: 22, kind: output, shape index: {0}]
  %s23 = inlined_call_operand.vmem [shape: f32[8,32], index: 23, kind: output, shape index: {1}]
  %s24 = inlined_call_operand.hbm [shape: f32[1,1], index: 24, kind: output, shape index: {2}]
  %25 = xla_tuple %s22, %s23, %s24
  %s26 = sld [smem:[#allocation0]]
  $region178: #{dsgnet_forward.2} parent=0
    _
  %s28 = ssub.s32 1, %s26
  %s29 = scalar_select 0, %s28, %s26
  %v30 = vstv %s17
  %31 = vst [vmem:[#allocation2] sm:$0x1] %v30
  %v32 = vstv %s19
  %33 = vst [vmem:[#allocation3] sm:$0x1] %v32
  $region1: #{dsgnet_forward.2} parent=0
    #allocation4 [shape = 'u8[16384]{0}', space=vmem, size = 0x4000, scoped, tag = 'input window, operand 0, single buffered']
    #allocation5 [shape = 's32[1]{0}', space=sflag, size = 0x4, scoped, tag = 'scoped memory for dsgnet_forward.2']
    #allocation6 [shape = 's32[1]{0}', space=sflag, size = 0x4, scoped, tag = 'scoped memory for dsgnet_forward.2']
    #allocation7 [shape = 'u8[16384]{0}', space=vmem, size = 0x4000, scoped, tag = 'input window, operand 1, single buffered']
    #allocation8 [shape = 's32[1]{0}', space=sflag, size = 0x4, scoped, tag = 'scoped memory for dsgnet_forward.2']
    #allocation9 [shape = 'u8[32768]{0}', space=vmem, size = 0x8000, scoped, tag = 'input window, operand 3, single buffered']
    #allocation10 [shape = 'u8[32768]{0}', space=vmem, size = 0x8000, scoped, tag = 'input window, operand 4, single buffered']
    #allocation11 [shape = 's32[1]{0}', space=sflag, size = 0x4, scoped, tag = 'scoped memory for dsgnet_forward.2']
    #allocation12 [shape = 'u8[16384]{0}', space=vmem, size = 0x4000, scoped, tag = 'input window, operand 5, single buffered']
    #allocation13 [shape = 'u8[32768]{0}', space=vmem, size = 0x8000, scoped, tag = 'input window, operand 6, single buffered']
    #allocation14 [shape = 's32[1]{0}', space=sflag, size = 0x4, scoped, tag = 'scoped memory for dsgnet_forward.2']
    #allocation15 [shape = 'u8[65536]{0}', space=vmem, size = 0x10000, scoped, tag = 'input window, operand 8, single buffered']
    #allocation16 [shape = 'u8[65536]{0}', space=vmem, size = 0x10000, scoped, tag = 'input window, operand 10, single buffered']
    #allocation17 [shape = 's32[1]{0}', space=sflag, size = 0x4, scoped, tag = 'scoped memory for dsgnet_forward.2']
    #allocation18 [shape = 'u8[65536]{0}', space=vmem, size = 0x10000, scoped, tag = 'input window, operand 11, single buffered']
    #allocation19 [shape = 'u8[262144]{0}', space=vmem, size = 0x40000, scoped, tag = 'input window, operand 12, single buffered']
    #allocation20 [shape = 's32[1]{0}', space=sflag, size = 0x4, scoped, tag = 'scoped memory for dsgnet_forward.2']
    #allocation21 [shape = 'u8[1048576]{0}', space=vmem, size = 0x100000, scoped, tag = 'input window, operand 14, single buffered']
    #allocation22 [shape = 'u8[2048]{0}', space=vmem, size = 0x800, scoped, tag = 'input window, operand 15, single buffered']
    #allocation23 [shape = 's32[1]{0}', space=sflag, size = 0x4, scoped, tag = 'scoped memory for dsgnet_forward.2']
    #allocation24 [shape = 'u8[262144]{0}', space=vmem, size = 0x40000, scoped, tag = 'input window, operand 16, single buffered']
    #allocation25 [shape = 'u8[262144]{0}', space=vmem, size = 0x40000, scoped, tag = 'input window, operand 18, single buffered']
    #allocation26 [shape = 's32[1]{0}', space=sflag, size = 0x4, scoped, tag = 'scoped memory for dsgnet_forward.2']
    #allocation27 [shape = 'u8[4096]{0}', space=vmem, size = 0x1000, scoped, tag = 'input window, operand 20, single buffered']
    #allocation28 [shape = 'u8[32768]{0}', space=vmem, size = 0x8000, scoped, tag = 'input window, operand 21, single buffered']
    #allocation29 [shape = 's32[1]{0}', space=sflag, size = 0x4, scoped, tag = 'scoped memory for dsgnet_forward.2']
    #allocation30 [shape = 'u8[512]{0}', space=vmem, size = 0x400, scoped, tag = 'output window, operand 2, single buffered']
    %34 = vsyncpa [#allocation5], 0
    %35 = vsyncpa [#allocation8], 0
    %36 = vsyncpa [#allocation11], 0
    %37 = vsyncpa [#allocation14], 0
    %38 = vsyncpa [#allocation17], 0
    %39 = vsyncpa [#allocation20], 0
    %40 = vsyncpa [#allocation23], 0
    %41 = vsyncpa [#allocation26], 0
    %42 = vsyncpa [#allocation29], 0
    %43 = vsyncpa [#allocation6], 0
    // Predicated region
    $region2: #{dsgnet_forward.2} parent=1 // pred_check
      _
    $region3: #{dsgnet_forward.2} parent=1 // pred_check_branch
      %45 = sbr.rel (0) target = $region5
    $region4: #{dsgnet_forward.2} parent=1 // pred_region
      %47 = vsyncadd [#allocation5], 0
      %s48 = sshll.u32 %s0, 4
      %s49 = int_to_ptr.hbm [resolvable:$true] %s48
      %s50 = sshll.u32 [#allocation4], 4
      %s51 = int_to_ptr.vmem [resolvable:$true] %s50
      %56 = dma.hbm_to_vmem [thread:$0]  %s49, 512, %s51, [#allocation5], 128, 128, 8
    $region5: #{dsgnet_forward.2} parent=1 // pred_fallthru
      _
    // Predicated region
    $region6: #{dsgnet_forward.2} parent=1 // pred_check
      _
    $region7: #{dsgnet_forward.2} parent=1 // pred_check_branch
      %58 = sbr.rel (0) target = $region9
    $region8: #{dsgnet_forward.2} parent=1 // pred_region
      %60 = vsyncadd [#allocation8], 0
      %s61 = sshll.u32 %s1, 4
      %s62 = int_to_ptr.hbm [resolvable:$true] %s61
      %s63 = sshll.u32 [#allocation7], 4
      %s64 = int_to_ptr.vmem [resolvable:$true] %s63
      %69 = dma.hbm_to_vmem [thread:$0]  %s62, 512, %s64, [#allocation8], 128, 128, 8
    $region9: #{dsgnet_forward.2} parent=1 // pred_fallthru
      _
    // Predicated region
    $region10: #{dsgnet_forward.2} parent=1 // pred_check
      _
    $region11: #{dsgnet_forward.2} parent=1 // pred_check_branch
      %71 = sbr.rel (0) target = $region13
    $region12: #{dsgnet_forward.2} parent=1 // pred_region
      _
    $region13: #{dsgnet_forward.2} parent=1 // pred_fallthru
      _
    // Predicated region
    $region14: #{dsgnet_forward.2} parent=1 // pred_check
      _
    $region15: #{dsgnet_forward.2} parent=1 // pred_check_branch
      %73 = sbr.rel (0) target = $region17
    $region16: #{dsgnet_forward.2} parent=1 // pred_region
      %75 = vsyncadd [#allocation8], 0
      %s76 = sshll.u32 %s3, 4
      %s77 = int_to_ptr.hbm [resolvable:$true] %s76
      %s78 = sshll.u32 [#allocation9], 4
      %s79 = int_to_ptr.vmem [resolvable:$true] %s78
      %84 = dma.hbm_to_vmem [thread:$0]  %s77, 1024, %s79, [#allocation8], 128, 128, 8
    $region17: #{dsgnet_forward.2} parent=1 // pred_fallthru
      _
    // Predicated region
    $region18: #{dsgnet_forward.2} parent=1 // pred_check
      _
    $region19: #{dsgnet_forward.2} parent=1 // pred_check_branch
      %86 = sbr.rel (0) target = $region21
    $region20: #{dsgnet_forward.2} parent=1 // pred_region
      %88 = vsyncadd [#allocation11], 0
      %s89 = sshll.u32 %s4, 4
      %s90 = int_to_ptr.hbm [resolvable:$true] %s89
      %s91 = sshll.u32 [#allocation10], 4
      %s92 = int_to_ptr.vmem [resolvable:$true] %s91
      %97 = dma.hbm_to_vmem [thread:$0]  %s90, 1024, %s92, [#allocation11], 128, 128, 8
    $region21: #{dsgnet_forward.2} parent=1 // pred_fallthru
      _
    // Predicated region
    $region22: #{dsgnet_forward.2} parent=1 // pred_check
      _
    $region23: #{dsgnet_forward.2} parent=1 // pred_check_branch
      %99 = sbr.rel (0) target = $region25
    $region24: #{dsgnet_forward.2} parent=1 // pred_region
      %101 = vsyncadd [#allocation11], 0
      %s102 = sshll.u32 %s5, 4
      %s103 = int_to_ptr.hbm [resolvable:$true] %s102
      %s104 = sshll.u32 [#allocation12], 4
      %s105 = int_to_ptr.vmem [resolvable:$true] %s104
      %110 = dma.hbm_to_vmem [thread:$0]  %s103, 512, %s105, [#allocation11], 128, 128, 8
    $region25: #{dsgnet_forward.2} parent=1 // pred_fallthru
      _
    // Predicated region
    $region26: #{dsgnet_forward.2} parent=1 // pred_check
      _
    $region27: #{dsgnet_forward.2} parent=1 // pred_check_branch
      %112 = sbr.rel (0) target = $region29
    $region28: #{dsgnet_forward.2} parent=1 // pred_region
      %114 = vsyncadd [#allocation14], 0
      %s115 = sshll.u32 %s6, 4
      %s116 = int_to_ptr.hbm [resolvable:$true] %s115
      %s117 = sshll.u32 [#allocation13], 4
      %s118 = int_to_ptr.vmem [resolvable:$true] %s117
      %123 = dma.hbm_to_vmem [thread:$0]  %s116, 1024, %s118, [#allocation14], 128, 128, 8
    $region29: #{dsgnet_forward.2} parent=1 // pred_fallthru
      _
    // Predicated region
    $region30: #{dsgnet_forward.2} parent=1 // pred_check
      _
    $region31: #{dsgnet_forward.2} parent=1 // pred_check_branch
      %125 = sbr.rel (0) target = $region33
    $region32: #{dsgnet_forward.2} parent=1 // pred_region
      _
    $region33: #{dsgnet_forward.2} parent=1 // pred_fallthru
      _
    // Predicated region
    $region34: #{dsgnet_forward.2} parent=1 // pred_check
      _
    $region35: #{dsgnet_forward.2} parent=1 // pred_check_branch
      %127 = sbr.rel (0) target = $region37
    $region36: #{dsgnet_forward.2} parent=1 // pred_region
      %129 = vsyncadd [#allocation14], 0
      %s130 = sshll.u32 %s8, 4
      %s131 = int_to_ptr.hbm [resolvable:$true] %s130
      %s132 = sshll.u32 [#allocation15], 4
      %s133 = int_to_ptr.vmem [resolvable:$true] %s132
      %138 = dma.hbm_to_vmem [thread:$0]  %s131, 2048, %s133, [#allocation14], 128, 128, 8
    $region37: #{dsgnet_forward.2} parent=1 // pred_fallthru
      _
    // Predicated region
    $region38: #{dsgnet_forward.2} parent=1 // pred_check
      _
    $region39: #{dsgnet_forward.2} parent=1 // pred_check_branch
      %140 = sbr.rel (0) target = $region41
    $region40: #{dsgnet_forward.2} parent=1 // pred_region
      _
    $region41: #{dsgnet_forward.2} parent=1 // pred_fallthru
      _
    // Predicated region
    $region42: #{dsgnet_forward.2} parent=1 // pred_check
      _
    $region43: #{dsgnet_forward.2} parent=1 // pred_check_branch
      %142 = sbr.rel (0) target = $region45
    $region44: #{dsgnet_forward.2} parent=1 // pred_region
      %144 = vsyncadd [#allocation17], 0
      %s145 = sshll.u32 %s10, 4
      %s146 = int_to_ptr.hbm [resolvable:$true] %s145
      %s147 = sshll.u32 [#allocation16], 4
      %s148 = int_to_ptr.vmem [resolvable:$true] %s147
      %153 = dma.hbm_to_vmem [thread:$0]  %s146, 2048, %s148, [#allocation17], 128, 128, 8
    $region45: #{dsgnet_forward.2} parent=1 // pred_fallthru
      _
    // Predicated region
    $region46: #{dsgnet_forward.2} parent=1 // pred_check
      _
    $region47: #{dsgnet_forward.2} parent=1 // pred_check_branch
      %155 = sbr.rel (0) target = $region49
    $region48: #{dsgnet_forward.2} parent=1 // pred_region
      %157 = vsyncadd [#allocation17], 0
      %s158 = sshll.u32 %s11, 4
      %s159 = int_to_ptr.hbm [resolvable:$true] %s158
      %s160 = sshll.u32 [#allocation18], 4
      %s161 = int_to_ptr.vmem [resolvable:$true] %s160
      %166 = dma.hbm_to_vmem [thread:$0]  %s159, 2048, %s161, [#allocation17], 128, 128, 8
    $region49: #{dsgnet_forward.2} parent=1 // pred_fallthru
      _
    // Predicated region
    $region50: #{dsgnet_forward.2} parent=1 // pred_check
      _
    $region51: #{dsgnet_forward.2} parent=1 // pred_check_branch
      %168 = sbr.rel (0) target = $region53
    $region52: #{dsgnet_forward.2} parent=1 // pred_region
      %170 = vsyncadd [#allocation20], 0
      %s171 = sshll.u32 %s12, 4
      %s172 = int_to_ptr.hbm [resolvable:$true] %s171
      %s173 = sshll.u32 [#allocation19], 4
      %s174 = int_to_ptr.vmem [resolvable:$true] %s173
      %179 = dma.hbm_to_vmem [thread:$0]  %s172, 8192, %s174, [#allocation20], 512, 512, 32
    $region53: #{dsgnet_forward.2} parent=1 // pred_fallthru
      _
    // Predicated region
    $region54: #{dsgnet_forward.2} parent=1 // pred_check
      _
    $region55: #{dsgnet_forward.2} parent=1 // pred_check_branch
      %181 = sbr.rel (0) target = $region57
    $region56: #{dsgnet_forward.2} parent=1 // pred_region
      _
    $region57: #{dsgnet_forward.2} parent=1 // pred_fallthru
      _
    // Predicated region
    $region58: #{dsgnet_forward.2} parent=1 // pred_check
      _
    $region59: #{dsgnet_forward.2} parent=1 // pred_check_branch
      %183 = sbr.rel (0) target = $region61
    $region60: #{dsgnet_forward.2} parent=1 // pred_region
      %185 = vsyncadd [#allocation20], 0
      %s186 = sshll.u32 %s14, 4
      %s187 = int_to_ptr.hbm [resolvable:$true] %s186
      %s188 = sshll.u32 [#allocation21], 4
      %s189 = int_to_ptr.vmem [resolvable:$true] %s188
      %194 = dma.hbm_to_vmem [thread:$0]  %s187, 32768, %s189, [#allocation20], 512, 512, 32
    $region61: #{dsgnet_forward.2} parent=1 // pred_fallthru
      _
    // Predicated region
    $region62: #{dsgnet_forward.2} parent=1 // pred_check
      _
    $region63: #{dsgnet_forward.2} parent=1 // pred_check_branch
      %196 = sbr.rel (0) target = $region65
    $region64: #{dsgnet_forward.2} parent=1 // pred_region
      %198 = vsyncadd [#allocation23], 0
      %s200 = sshll.u32 %s15, 4
      %s201 = int_to_ptr.hbm [resolvable:$true] %s200
      %s202 = sshll.u32 [#allocation22], 4
      %s203 = int_to_ptr.vmem [resolvable:$true] %s202
      %205 = dma.hbm_to_vmem [thread:$0]  %s201, 64, %s203, [#allocation23]
    $region65: #{dsgnet_forward.2} parent=1 // pred_fallthru
      _
    // Predicated region
    $region66: #{dsgnet_forward.2} parent=1 // pred_check
      _
    $region67: #{dsgnet_forward.2} parent=1 // pred_check_branch
      %207 = sbr.rel (0) target = $region69
    $region68: #{dsgnet_forward.2} parent=1 // pred_region
      %209 = vsyncadd [#allocation23], 0
      %s210 = sshll.u32 %s16, 4
      %s211 = int_to_ptr.hbm [resolvable:$true] %s210
      %s212 = sshll.u32 [#allocation24], 4
      %s213 = int_to_ptr.vmem [resolvable:$true] %s212
      %218 = dma.hbm_to_vmem [thread:$0]  %s211, 8192, %s213, [#allocation23], 128, 128, 8
    $region69: #{dsgnet_forward.2} parent=1 // pred_fallthru
      _
    // Predicated region
    $region70: #{dsgnet_forward.2} parent=1 // pred_check
      _
    $region71: #{dsgnet_forward.2} parent=1 // pred_check_branch
      %220 = sbr.rel (0) target = $region73
    $region72: #{dsgnet_forward.2} parent=1 // pred_region
      _
    $region73: #{dsgnet_forward.2} parent=1 // pred_fallthru
      _
    // Predicated region
    $region74: #{dsgnet_forward.2} parent=1 // pred_check
      _
    $region75: #{dsgnet_forward.2} parent=1 // pred_check_branch
      %222 = sbr.rel (0) target = $region77
    $region76: #{dsgnet_forward.2} parent=1 // pred_region
      %224 = vsyncadd [#allocation26], 0
      %s225 = sshll.u32 %s18, 4
      %s226 = int_to_ptr.hbm [resolvable:$true] %s225
      %s227 = sshll.u32 [#allocation25], 4
      %s228 = int_to_ptr.vmem [resolvable:$true] %s227
      %233 = dma.hbm_to_vmem [thread:$0]  %s226, 8192, %s228, [#allocation26], 128, 128, 8
    $region77: #{dsgnet_forward.2} parent=1 // pred_fallthru
      _
    // Predicated region
    $region78: #{dsgnet_forward.2} parent=1 // pred_check
      _
    $region79: #{dsgnet_forward.2} parent=1 // pred_check_branch
      %235 = sbr.rel (0) target = $region81
    $region80: #{dsgnet_forward.2} parent=1 // pred_region
      _
    $region81: #{dsgnet_forward.2} parent=1 // pred_fallthru
      _
    // Predicated region
    $region82: #{dsgnet_forward.2} parent=1 // pred_check
      _
    $region83: #{dsgnet_forward.2} parent=1 // pred_check_branch
      %237 = sbr.rel (0) target = $region85
    $region84: #{dsgnet_forward.2} parent=1 // pred_region
      %239 = vsyncadd [#allocation26], 0
      %s241 = sshll.u32 %s20, 4
      %s242 = int_to_ptr.hbm [resolvable:$true] %s241
      %s243 = sshll.u32 [#allocation27], 4
      %s244 = int_to_ptr.vmem [resolvable:$true] %s243
      %246 = dma.hbm_to_vmem [thread:$0]  %s242, 128, %s244, [#allocation26]
    $region85: #{dsgnet_forward.2} parent=1 // pred_fallthru
      _
    // Predicated region
    $region86: #{dsgnet_forward.2} parent=1 // pred_check
      _
    $region87: #{dsgnet_forward.2} parent=1 // pred_check_branch
      %248 = sbr.rel (0) target = $region89
    $region88: #{dsgnet_forward.2} parent=1 // pred_region
      %250 = vsyncadd [#allocation29], 0
      %s251 = sshll.u32 %s21, 4
      %s252 = int_to_ptr.hbm [resolvable:$true] %s251
      %s253 = sshll.u32 [#allocation28], 4
      %s254 = int_to_ptr.vmem [resolvable:$true] %s253
      %259 = dma.hbm_to_vmem [thread:$0]  %s252, 1024, %s254, [#allocation29], 128, 128, 8
    $region89: #{dsgnet_forward.2} parent=1 // pred_fallthru
      _
    // Predicated region
    $region90: #{dsgnet_forward.2} parent=1 // pred_check
      _
    $region91: #{dsgnet_forward.2} parent=1 // pred_check_branch
      %261 = sbr.rel (0) target = $region93
    $region92: #{dsgnet_forward.2} parent=1 // pred_region
      %263 = dma.done [#allocation5], 512
    $region93: #{dsgnet_forward.2} parent=1 // pred_fallthru
      _
    // Predicated region
    $region94: #{dsgnet_forward.2} parent=1 // pred_check
      _
    $region95: #{dsgnet_forward.2} parent=1 // pred_check_branch
      %265 = sbr.rel (0) target = $region97
    $region96: #{dsgnet_forward.2} parent=1 // pred_region
      %267 = dma.done [#allocation8], 512
    $region97: #{dsgnet_forward.2} parent=1 // pred_fallthru
      _
    // Predicated region
    $region98: #{dsgnet_forward.2} parent=1 // pred_check
      _
    $region99: #{dsgnet_forward.2} parent=1 // pred_check_branch
      %269 = sbr.rel (0) target = $region101
    $region100: #{dsgnet_forward.2} parent=1 // pred_region
      %271 = dma.done [#allocation8], 1024
    $region101: #{dsgnet_forward.2} parent=1 // pred_fallthru
      _
    // Predicated region
    $region102: #{dsgnet_forward.2} parent=1 // pred_check
      _
    $region103: #{dsgnet_forward.2} parent=1 // pred_check_branch
      %273 = sbr.rel (0) target = $region105
    $region104: #{dsgnet_forward.2} parent=1 // pred_region
      %275 = dma.done [#allocation11], 1024
    $region105: #{dsgnet_forward.2} parent=1 // pred_fallthru
      _
    // Predicated region
    $region106: #{dsgnet_forward.2} parent=1 // pred_check
      _
    $region107: #{dsgnet_forward.2} parent=1 // pred_check_branch
      %277 = sbr.rel (0) target = $region109
    $region108: #{dsgnet_forward.2} parent=1 // pred_region
      %279 = dma.done [#allocation11], 512
    $region109: #{dsgnet_forward.2} parent=1 // pred_fallthru
      _
    // Predicated region
    $region110: #{dsgnet_forward.2} parent=1 // pred_check
      _
    $region111: #{dsgnet_forward.2} parent=1 // pred_check_branch
      %281 = sbr.rel (0) target = $region113
    $region112: #{dsgnet_forward.2} parent=1 // pred_region
      %283 = dma.done [#allocation14], 1024
    $region113: #{dsgnet_forward.2} parent=1 // pred_fallthru
      _
    // Predicated region
    $region114: #{dsgnet_forward.2} parent=1 // pred_check
      _
    $region115: #{dsgnet_forward.2} parent=1 // pred_check_branch
      %285 = sbr.rel (0) target = $region117
    $region116: #{dsgnet_forward.2} parent=1 // pred_region
      %287 = dma.done [#allocation14], 2048
    $region117: #{dsgnet_forward.2} parent=1 // pred_fallthru
      _
    // Predicated region
    $region118: #{dsgnet_forward.2} parent=1 // pred_check
      _
    $region119: #{dsgnet_forward.2} parent=1 // pred_check_branch
      %289 = sbr.rel (0) target = $region121
    $region120: #{dsgnet_forward.2} parent=1 // pred_region
      %291 = dma.done [#allocation17], 2048
    $region121: #{dsgnet_forward.2} parent=1 // pred_fallthru
      _
    // Predicated region
    $region122: #{dsgnet_forward.2} parent=1 // pred_check
      _
    $region123: #{dsgnet_forward.2} parent=1 // pred_check_branch
      %293 = sbr.rel (0) target = $region125
    $region124: #{dsgnet_forward.2} parent=1 // pred_region
      %295 = dma.done [#allocation17], 2048
    $region125: #{dsgnet_forward.2} parent=1 // pred_fallthru
      _
    // Predicated region
    $region126: #{dsgnet_forward.2} parent=1 // pred_check
      _
    $region127: #{dsgnet_forward.2} parent=1 // pred_check_branch
      %297 = sbr.rel (0) target = $region129
    $region128: #{dsgnet_forward.2} parent=1 // pred_region
      %299 = dma.done [#allocation20], 8192
    $region129: #{dsgnet_forward.2} parent=1 // pred_fallthru
      _
    // Predicated region
    $region130: #{dsgnet_forward.2} parent=1 // pred_check
      _
    $region131: #{dsgnet_forward.2} parent=1 // pred_check_branch
      %301 = sbr.rel (0) target = $region133
    $region132: #{dsgnet_forward.2} parent=1 // pred_region
      %303 = dma.done [#allocation20], 32768
    $region133: #{dsgnet_forward.2} parent=1 // pred_fallthru
      _
    // Predicated region
    $region134: #{dsgnet_forward.2} parent=1 // pred_check
      _
    $region135: #{dsgnet_forward.2} parent=1 // pred_check_branch
      %305 = sbr.rel (0) target = $region137
    $region136: #{dsgnet_forward.2} parent=1 // pred_region
      %307 = dma.done [#allocation23], 64
    $region137: #{dsgnet_forward.2} parent=1 // pred_fallthru
      _
    // Predicated region
    $region138: #{dsgnet_forward.2} parent=1 // pred_check
      _
    $region139: #{dsgnet_forward.2} parent=1 // pred_check_branch
      %309 = sbr.rel (0) target = $region141
    $region140: #{dsgnet_forward.2} parent=1 // pred_region
      %311 = dma.done [#allocation23], 8192
    $region141: #{dsgnet_forward.2} parent=1 // pred_fallthru
      _
    // Predicated region
    $region142: #{dsgnet_forward.2} parent=1 // pred_check
      _
    $region143: #{dsgnet_forward.2} parent=1 // pred_check_branch
      %313 = sbr.rel (0) target = $region145
    $region144: #{dsgnet_forward.2} parent=1 // pred_region
      %315 = dma.done [#allocation26], 8192
    $region145: #{dsgnet_forward.2} parent=1 // pred_fallthru
      _
    // Predicated region
    $region146: #{dsgnet_forward.2} parent=1 // pred_check
      _
    $region147: #{dsgnet_forward.2} parent=1 // pred_check_branch
      %317 = sbr.rel (0) target = $region149
    $region148: #{dsgnet_forward.2} parent=1 // pred_region
      %319 = dma.done [#allocation26], 128
    $region149: #{dsgnet_forward.2} parent=1 // pred_fallthru
      _
    // Predicated region
    $region150: #{dsgnet_forward.2} parent=1 // pred_check
      _
    $region151: #{dsgnet_forward.2} parent=1 // pred_check_branch
      %321 = sbr.rel (0) target = $region153
    $region152: #{dsgnet_forward.2} parent=1 // pred_region
      %323 = dma.done [#allocation29], 1024
    $region153: #{dsgnet_forward.2} parent=1 // pred_fallthru
      _
    %v324 = vld [vmem:[#allocation4] sm:$0xff]
    %v325 = vld [vmem:[#allocation4 + $0x8] sm:$0xff]
    %v326 = vld [vmem:[#allocation4 + $0x10] sm:$0xff]
    %v327 = vld [vmem:[#allocation4 + $0x18] sm:$0xff]
    %v328 = vld [vmem:[#allocation9] sm:$0xff]
    %v329 = vld [vmem:[#allocation9 + $0x8] sm:$0xff]
    %v330 = vld [vmem:[#allocation9 + $0x10] sm:$0xff]
    %v331 = vld [vmem:[#allocation9 + $0x18] sm:$0xff]
    %v332 = vld [vmem:[#allocation9 + $0x20] sm:$0xff]
    %v333 = vld [vmem:[#allocation9 + $0x28] sm:$0xff]
    %v334 = vld [vmem:[#allocation9 + $0x30] sm:$0xff]
    %v335 = vld [vmem:[#allocation9 + $0x38] sm:$0xff]
    %v336 = vld [vmem:[#allocation10] sm:$0xff]
    %v337 = vld [vmem:[#allocation10 + $0x8] sm:$0xff]
    %v338 = vld [vmem:[#allocation10 + $0x10] sm:$0xff]
    %v339 = vld [vmem:[#allocation10 + $0x18] sm:$0xff]
    %v340 = vld [vmem:[#allocation10 + $0x20] sm:$0xff]
    %v341 = vld [vmem:[#allocation10 + $0x28] sm:$0xff]
    %v342 = vld [vmem:[#allocation10 + $0x30] sm:$0xff]
    %v343 = vld [vmem:[#allocation10 + $0x38] sm:$0xff]
    %v344 = vld [vmem:[#allocation12] sm:$0xff]
    %v345 = vld [vmem:[#allocation12 + $0x8] sm:$0xff]
    %v346 = vld [vmem:[#allocation12 + $0x10] sm:$0xff]
    %v347 = vld [vmem:[#allocation12 + $0x18] sm:$0xff]
    %v348 = vld [vmem:[#allocation7] sm:$0xff]
    %v349 = vld [vmem:[#allocation7 + $0x8] sm:$0xff]
    %v350 = vld [vmem:[#allocation7 + $0x10] sm:$0xff]
    %v351 = vld [vmem:[#allocation7 + $0x18] sm:$0xff]
    %v352 = vld [vmem:[%s2] sm:$0x1]
    %v354 = vperm.slane %v352, 0
    %vm356 = vcmask 261120
    %v358 = vsel %vm356, %v324, 0
    %v361 = vsel %vm356, %v325, 0
    %v364 = vsel %vm356, %v326, 0
    %v367 = vsel %vm356, %v327, 0
    %369 = vmatpush.msra.mxu0 0.0
    %370 = vmatpush.msra.mxu0 0.0
    %371 = vmatpush.msra.mxu0 0.0
    %372 = vmatpush.msra.mxu0 0.0
    %373 = vmatpush.msra.mxu0 0.0
    %374 = vmatpush.msra.mxu0 0.0
    %375 = vmatpush.msra.mxu0 0.0
    %376 = vmatpush.msra.mxu0 0.0
    %377 = vmatpush.msra.mxu0 0.0
    %378 = vmatpush.msra.mxu0 0.0
    %379 = vmatpush.msra.mxu0 0.0
    %380 = vmatpush.msra.mxu0 0.0
    %381 = vmatpush.msra.mxu0 %v351
    %382 = vmatpush.msra.mxu0 %v350
    %383 = vmatpush.msra.mxu0 %v349
    %384 = vmatpush.msra.mxu0 %v348
    %385 = vmatmul.f32.gmra.mxu0 %v358
    %v386 = vpop.f32.mrf.mxu0
    %v387 = vadd.f32 %v354, %v386
    %388 = vmatmul.f32.gmra.mxu0 %v361
    %v389 = vpop.f32.mrf.mxu0
    %v390 = vadd.f32 %v354, %v389
    %391 = vmatmul.f32.gmra.mxu0 %v364
    %v392 = vpop.f32.mrf.mxu0
    %v393 = vadd.f32 %v354, %v392
    %394 = vmatmul.f32.gmra.mxu0 %v367
    %v395 = vpop.f32.mrf.mxu0
    %v396 = vadd.f32 %v354, %v395
    %397 = vdwg.mxu0
    %v399 = vsel %vm356, %v328, 0
    %v402 = vsel %vm356, %v329, 0
    %v405 = vsel %vm356, %v330, 0
    %v408 = vsel %vm356, %v331, 0
    %v411 = vsel %vm356, %v332, 0
    %v414 = vsel %vm356, %v333, 0
    %v417 = vsel %vm356, %v334, 0
    %v420 = vsel %vm356, %v335, 0
    %422 = vmatpush.msra.mxu0 0.0
    %423 = vmatpush.msra.mxu0 0.0
    %424 = vmatpush.msra.mxu0 0.0
    %425 = vmatpush.msra.mxu0 0.0
    %426 = vmatpush.msra.mxu0 0.0
    %427 = vmatpush.msra.mxu0 0.0
    %428 = vmatpush.msra.mxu0 0.0
    %429 = vmatpush.msra.mxu0 0.0
    %430 = vmatpush.msra.mxu0 0.0
    %431 = vmatpush.msra.mxu0 0.0
    %432 = vmatpush.msra.mxu0 0.0
    %433 = vmatpush.msra.mxu0 0.0
    %434 = vmatpush.msra.mxu0 %v396
    %435 = vmatpush.msra.mxu0 %v393
    %436 = vmatpush.msra.mxu0 %v390
    %437 = vmatpush.msra.mxu0 %v387
    %438 = vmatmul.f32.gmra.mxu0 %v399
    %v439 = vpop.f32.mrf.mxu0
    %v440 = vadd.f32 0.0, %v439
    %441 = vmatmul.f32.gmra.mxu0 %v402
    %v442 = vpop.f32.mrf.mxu0
    %v443 = vadd.f32 0.0, %v442
    %444 = vmatmul.f32.gmra.mxu0 %v405
    %v445 = vpop.f32.mrf.mxu0
    %v446 = vadd.f32 0.0, %v445
    %447 = vmatmul.f32.gmra.mxu0 %v408
    %v448 = vpop.f32.mrf.mxu0
    %v449 = vadd.f32 0.0, %v448
    %450 = vmatmul.f32.gmra.mxu0 %v411
    %v451 = vpop.f32.mrf.mxu0
    %v452 = vadd.f32 0.0, %v451
    %453 = vmatmul.f32.gmra.mxu0 %v414
    %v454 = vpop.f32.mrf.mxu0
    %v455 = vadd.f32 0.0, %v454
    %456 = vmatmul.f32.gmra.mxu0 %v417
    %v457 = vpop.f32.mrf.mxu0
    %v458 = vadd.f32 0.0, %v457
    %459 = vmatmul.f32.gmra.mxu0 %v420
    %v460 = vpop.f32.mrf.mxu0
    %v461 = vadd.f32 0.0, %v460
    %462 = vdwg.mxu0
    %v464 = vsel %vm356, %v336, 0
    %v467 = vsel %vm356, %v337, 0
    %v470 = vsel %vm356, %v338, 0
    %v473 = vsel %vm356, %v339, 0
    %v476 = vsel %vm356, %v340, 0
    %v479 = vsel %vm356, %v341, 0
    %v482 = vsel %vm356, %v342, 0
    %v485 = vsel %vm356, %v343, 0
    %487 = vmatpush.msra.mxu0 0.0
    %488 = vmatpush.msra.mxu0 0.0
    %489 = vmatpush.msra.mxu0 0.0
    %490 = vmatpush.msra.mxu0 0.0
    %491 = vmatpush.msra.mxu0 0.0
    %492 = vmatpush.msra.mxu0 0.0
    %493 = vmatpush.msra.mxu0 0.0
    %494 = vmatpush.msra.mxu0 0.0
    %495 = vmatpush.msra.mxu0 0.0
    %496 = vmatpush.msra.mxu0 0.0
    %497 = vmatpush.msra.mxu0 0.0
    %498 = vmatpush.msra.mxu0 0.0
    %499 = vmatpush.msra.mxu0 %v396
    %500 = vmatpush.msra.mxu0 %v393
    %501 = vmatpush.msra.mxu0 %v390
    %502 = vmatpush.msra.mxu0 %v387
    %503 = vmatmul.f32.gmra.mxu0 %v464
    %v504 = vpop.f32.mrf.mxu0
    %v505 = vadd.f32 0.0, %v504
    %506 = vmatmul.f32.gmra.mxu0 %v467
    %v507 = vpop.f32.mrf.mxu0
    %v508 = vadd.f32 0.0, %v507
    %509 = vmatmul.f32.gmra.mxu0 %v470
    %v510 = vpop.f32.mrf.mxu0
    %v511 = vadd.f32 0.0, %v510
    %512 = vmatmul.f32.gmra.mxu0 %v473
    %v513 = vpop.f32.mrf.mxu0
    %v514 = vadd.f32 0.0, %v513
    %515 = vmatmul.f32.gmra.mxu0 %v476
    %v516 = vpop.f32.mrf.mxu0
    %v517 = vadd.f32 0.0, %v516
    %518 = vmatmul.f32.gmra.mxu0 %v479
    %v519 = vpop.f32.mrf.mxu0
    %v520 = vadd.f32 0.0, %v519
    %521 = vmatmul.f32.gmra.mxu0 %v482
    %v522 = vpop.f32.mrf.mxu0
    %v523 = vadd.f32 0.0, %v522
    %524 = vmatmul.f32.gmra.mxu0 %v485
    %v525 = vpop.f32.mrf.mxu0
    %v526 = vadd.f32 0.0, %v525
    %527 = vdwg.mxu0
    %v528 = vld [vmem:[#allocation13] sm:$0xff]
    %v529 = vld [vmem:[#allocation13 + $0x8] sm:$0xff]
    %v530 = vld [vmem:[#allocation13 + $0x10] sm:$0xff]
    %v531 = vld [vmem:[#allocation13 + $0x18] sm:$0xff]
    %v532 = vld [vmem:[#allocation13 + $0x20] sm:$0xff]
    %v533 = vld [vmem:[#allocation13 + $0x28] sm:$0xff]
    %v534 = vld [vmem:[#allocation13 + $0x30] sm:$0xff]
    %v535 = vld [vmem:[#allocation13 + $0x38] sm:$0xff]
    %v536 = vld [vmem:[%s7] sm:$0xff]
    %vm537 = vcmask 64512
    %v539 = vsel %vm537, %v528, 0
    %v542 = vsel %vm537, %v529, 0
    %v545 = vsel %vm537, %v530, 0
    %v548 = vsel %vm537, %v531, 0
    %v551 = vsel %vm537, %v532, 0
    %v554 = vsel %vm537, %v533, 0
    %v557 = vsel %vm537, %v534, 0
    %v560 = vsel %vm537, %v535, 0
    %562 = vmatpush.msra.mxu0 0.0
    %563 = vmatpush.msra.mxu0 0.0
    %564 = vmatpush.msra.mxu0 0.0
    %565 = vmatpush.msra.mxu0 0.0
    %566 = vmatpush.msra.mxu0 0.0
    %567 = vmatpush.msra.mxu0 0.0
    %568 = vmatpush.msra.mxu0 0.0
    %569 = vmatpush.msra.mxu0 0.0
    %570 = vmatpush.msra.mxu0 0.0
    %571 = vmatpush.msra.mxu0 0.0
    %572 = vmatpush.msra.mxu0 0.0
    %573 = vmatpush.msra.mxu0 0.0
    %574 = vmatpush.msra.mxu0 0.0
    %575 = vmatpush.msra.mxu0 0.0
    %576 = vmatpush.msra.mxu0 0.0
    %577 = vmatpush.msra.mxu0 %v536
    %578 = vmatmul.f32.gmra.mxu0 %v539
    %v579 = vpop.f32.mrf.mxu0
    %v580 = vadd.f32 0.0, %v579
    %581 = vmatmul.f32.gmra.mxu0 %v542
    %v582 = vpop.f32.mrf.mxu0
    %v583 = vadd.f32 0.0, %v582
    %584 = vmatmul.f32.gmra.mxu0 %v545
    %v585 = vpop.f32.mrf.mxu0
    %v586 = vadd.f32 0.0, %v585
    %587 = vmatmul.f32.gmra.mxu0 %v548
    %v588 = vpop.f32.mrf.mxu0
    %v589 = vadd.f32 0.0, %v588
    %590 = vmatmul.f32.gmra.mxu0 %v551
    %v591 = vpop.f32.mrf.mxu0
    %v592 = vadd.f32 0.0, %v591
    %593 = vmatmul.f32.gmra.mxu0 %v554
    %v594 = vpop.f32.mrf.mxu0
    %v595 = vadd.f32 0.0, %v594
    %596 = vmatmul.f32.gmra.mxu0 %v557
    %v597 = vpop.f32.mrf.mxu0
    %v598 = vadd.f32 0.0, %v597
    %599 = vmatmul.f32.gmra.mxu0 %v560
    %v600 = vpop.f32.mrf.mxu0
    %v601 = vadd.f32 0.0, %v600
    %602 = vdwg.mxu0
    %v603 = vmul.f32 %v440, %v580
    %v604 = vmul.f32 %v443, %v583
    %v605 = vmul.f32 %v446, %v586
    %v606 = vmul.f32 %v449, %v589
    %v607 = vmul.f32 %v452, %v592
    %v608 = vmul.f32 %v455, %v595
    %v609 = vmul.f32 %v458, %v598
    %v610 = vmul.f32 %v461, %v601
    %v611 = vmul.f32 %v603, %v505
    %v612 = vmul.f32 %v604, %v508
    %v613 = vmul.f32 %v605, %v511
    %v614 = vmul.f32 %v606, %v514
    %v615 = vmul.f32 %v607, %v517
    %v616 = vmul.f32 %v608, %v520
    %v617 = vmul.f32 %v609, %v523
    %v618 = vmul.f32 %v610, %v526
    %v619 = vld [vmem:[#allocation15] sm:$0xff]
    %v620 = vld [vmem:[#allocation15 + $0x8] sm:$0xff]
    %v621 = vld [vmem:[#allocation15 + $0x10] sm:$0xff]
    %v622 = vld [vmem:[#allocation15 + $0x18] sm:$0xff]
    %v623 = vld [vmem:[#allocation15 + $0x20] sm:$0xff]
    %v624 = vld [vmem:[#allocation15 + $0x28] sm:$0xff]
    %v625 = vld [vmem:[#allocation15 + $0x30] sm:$0xff]
    %v626 = vld [vmem:[#allocation15 + $0x38] sm:$0xff]
    %v627 = vld [vmem:[#allocation15 + $0x40] sm:$0xff]
    %v628 = vld [vmem:[#allocation15 + $0x48] sm:$0xff]
    %v629 = vld [vmem:[#allocation15 + $0x50] sm:$0xff]
    %v630 = vld [vmem:[#allocation15 + $0x58] sm:$0xff]
    %v631 = vld [vmem:[#allocation15 + $0x60] sm:$0xff]
    %v632 = vld [vmem:[#allocation15 + $0x68] sm:$0xff]
    %v633 = vld [vmem:[#allocation15 + $0x70] sm:$0xff]
    %v634 = vld [vmem:[#allocation15 + $0x78] sm:$0xff]
    %635 = vmatpush.msra.mxu0 %v634
    %636 = vmatpush.msra.mxu0 %v633
    %637 = vmatpush.msra.mxu0 %v632
    %638 = vmatpush.msra.mxu0 %v631
    %639 = vmatpush.msra.mxu0 %v630
    %640 = vmatpush.msra.mxu0 %v629
    %641 = vmatpush.msra.mxu0 %v628
    %642 = vmatpush.msra.mxu0 %v627
    %643 = vmatpush.msra.mxu0 %v626
    %644 = vmatpush.msra.mxu0 %v625
    %645 = vmatpush.msra.mxu0 %v624
    %646 = vmatpush.msra.mxu0 %v623
    %647 = vmatpush.msra.mxu0 %v622
    %648 = vmatpush.msra.mxu0 %v621
    %649 = vmatpush.msra.mxu0 %v620
    %650 = vmatpush.msra.mxu0 %v619
    %651 = vmatmul.f32.gmra.mxu0 %v611
    %v652 = vpop.f32.mrf.mxu0
    %v653 = vadd.f32 0.0, %v652
    %654 = vmatmul.f32.gmra.mxu0 %v612
    %v655 = vpop.f32.mrf.mxu0
    %v656 = vadd.f32 0.0, %v655
    %657 = vmatmul.f32.gmra.mxu0 %v613
    %v658 = vpop.f32.mrf.mxu0
    %v659 = vadd.f32 0.0, %v658
    %660 = vmatmul.f32.gmra.mxu0 %v614
    %v661 = vpop.f32.mrf.mxu0
    %v662 = vadd.f32 0.0, %v661
    %663 = vmatmul.f32.gmra.mxu0 %v615
    %v664 = vpop.f32.mrf.mxu0
    %v665 = vadd.f32 0.0, %v664
    %666 = vmatmul.f32.gmra.mxu0 %v616
    %v667 = vpop.f32.mrf.mxu0
    %v668 = vadd.f32 0.0, %v667
    %669 = vmatmul.f32.gmra.mxu0 %v617
    %v670 = vpop.f32.mrf.mxu0
    %v671 = vadd.f32 0.0, %v670
    %672 = vmatmul.f32.gmra.mxu0 %v618
    %v673 = vpop.f32.mrf.mxu0
    %v674 = vadd.f32 0.0, %v673
    %675 = vdwg.mxu0
    %vm676 = vcmask 31744
    %v677 = vsel %vm676, %v653, -inf
    %v678 = vsel %vm676, %v656, -inf
    %v679 = vsel %vm676, %v659, -inf
    %v680 = vsel %vm676, %v662, -inf
    %v681 = vsel %vm676, %v665, -inf
    %v682 = vmax.f32 %v677, %v681
    %v683 = vsel %vm676, %v668, -inf
    %v684 = vmax.f32 %v678, %v683
    %v685 = vsel %vm676, %v671, -inf
    %v686 = vmax.f32 %v679, %v685
    %v687 = vsel %vm676, %v674, -inf
    %v688 = vmax.f32 %v680, %v687
    %v689 = vmax.f32 %v682, %v684
    %v690 = vmax.f32 %v686, %v688
    %v691 = vmax.f32 %v689, %v690
    %v692 = vrot.slane %v691, 4
    %v693 = vmax.f32 %v691, %v692
    %v694 = vrot.slane %v693, 2
    %v695 = vmax.f32 %v693, %v694
    %v696 = vrot.slane %v695, 1
    %v697 = vmax.f32 %v695, %v696
    %v698 = vsub.f32 %v653, %v697
    %v699 = vsub.f32 %v656, %v697
    %v700 = vsub.f32 %v659, %v697
    %v701 = vsub.f32 %v662, %v697
    %v702 = vsub.f32 %v665, %v697
    %v703 = vsub.f32 %v668, %v697
    %v704 = vsub.f32 %v671, %v697
    %v705 = vsub.f32 %v674, %v697
    %v706 = vmul.f32 %v698, 1.442695
    %v707 = vpow.pop %v706
    %v708 = vmul.f32 %v699, 1.442695
    %v709 = vpow.pop %v708
    %v710 = vmul.f32 %v700, 1.442695
    %v711 = vpow.pop %v710
    %v712 = vmul.f32 %v701, 1.442695
    %v713 = vpow.pop %v712
    %v714 = vmul.f32 %v702, 1.442695
    %v715 = vpow.pop %v714
    %v716 = vmul.f32 %v703, 1.442695
    %v717 = vpow.pop %v716
    %v718 = vmul.f32 %v704, 1.442695
    %v719 = vpow.pop %v718
    %v720 = vmul.f32 %v705, 1.442695
    %v721 = vpow.pop %v720
    %vm722 = vcmask 523264
    %v724 = vsel %vm722, %v344, 0
    %v727 = vsel %vm722, %v345, 0
    %v730 = vsel %vm722, %v346, 0
    %v733 = vsel %vm722, %v347, 0
    %735 = vmatpush.msra.mxu0 0.0
    %736 = vmatpush.msra.mxu0 0.0
    %737 = vmatpush.msra.mxu0 0.0
    %738 = vmatpush.msra.mxu0 0.0
    %739 = vmatpush.msra.mxu0 0.0
    %740 = vmatpush.msra.mxu0 0.0
    %741 = vmatpush.msra.mxu0 0.0
    %742 = vmatpush.msra.mxu0 0.0
    %743 = vmatpush.msra.mxu0 %v721
    %744 = vmatpush.msra.mxu0 %v719
    %745 = vmatpush.msra.mxu0 %v717
    %746 = vmatpush.msra.mxu0 %v715
    %747 = vmatpush.msra.mxu0 %v713
    %748 = vmatpush.msra.mxu0 %v711
    %749 = vmatpush.msra.mxu0 %v709
    %750 = vmatpush.msra.mxu0 %v707
    %751 = vmatmul.f32.gmra.mxu0 %v724
    %v752 = vpop.f32.mrf.mxu0
    %v753 = vadd.f32 0.0, %v752
    %754 = vmatmul.f32.gmra.mxu0 %v727
    %v755 = vpop.f32.mrf.mxu0
    %v756 = vadd.f32 0.0, %v755
    %757 = vmatmul.f32.gmra.mxu0 %v730
    %v758 = vpop.f32.mrf.mxu0
    %v759 = vadd.f32 0.0, %v758
    %760 = vmatmul.f32.gmra.mxu0 %v733
    %v761 = vpop.f32.mrf.mxu0
    %v762 = vadd.f32 0.0, %v761
    %763 = vdwg.mxu0
    %764 = vmatpush.msra.mxu0 0.0
    %765 = vmatpush.msra.mxu0 0.0
    %766 = vmatpush.msra.mxu0 0.0
    %767 = vmatpush.msra.mxu0 0.0
    %768 = vmatpush.msra.mxu0 0.0
    %769 = vmatpush.msra.mxu0 0.0
    %770 = vmatpush.msra.mxu0 0.0
    %771 = vmatpush.msra.mxu0 0.0
    %772 = vmatpush.msra.mxu0 0.0
    %773 = vmatpush.msra.mxu0 0.0
    %774 = vmatpush.msra.mxu0 0.0
    %775 = vmatpush.msra.mxu0 0.0
    %776 = vmatpush.msra.mxu0 %v762
    %777 = vmatpush.msra.mxu0 %v759
    %778 = vmatpush.msra.mxu0 %v756
    %779 = vmatpush.msra.mxu0 %v753
    %780 = vmatmul.f32.gmra.mxu0 %v464
    %v781 = vpop.f32.mrf.mxu0
    %v782 = vadd.f32 0.0, %v781
    %783 = vmatmul.f32.gmra.mxu0 %v467
    %v784 = vpop.f32.mrf.mxu0
    %v785 = vadd.f32 0.0, %v784
    %786 = vmatmul.f32.gmra.mxu0 %v470
    %v787 = vpop.f32.mrf.mxu0
    %v788 = vadd.f32 0.0, %v787
    %789 = vmatmul.f32.gmra.mxu0 %v473
    %v790 = vpop.f32.mrf.mxu0
    %v791 = vadd.f32 0.0, %v790
    %792 = vmatmul.f32.gmra.mxu0 %v476
    %v793 = vpop.f32.mrf.mxu0
    %v794 = vadd.f32 0.0, %v793
    %795 = vmatmul.f32.gmra.mxu0 %v479
    %v796 = vpop.f32.mrf.mxu0
    %v797 = vadd.f32 0.0, %v796
    %798 = vmatmul.f32.gmra.mxu0 %v482
    %v799 = vpop.f32.mrf.mxu0
    %v800 = vadd.f32 0.0, %v799
    %801 = vmatmul.f32.gmra.mxu0 %v485
    %v802 = vpop.f32.mrf.mxu0
    %v803 = vadd.f32 0.0, %v802
    %804 = vdwg.mxu0
    %v805 = vmax.f32 %v782, 1e-30
    %v806 = vmax.f32 %v785, 1e-30
    %v807 = vmax.f32 %v788, 1e-30
    %v808 = vmax.f32 %v791, 1e-30
    %v809 = vmax.f32 %v794, 1e-30
    %v810 = vmax.f32 %v797, 1e-30
    %v811 = vmax.f32 %v800, 1e-30
    %v812 = vmax.f32 %v803, 1e-30
    %v813 = vrcp.pop %v805
    %v814 = vrcp.pop %v806
    %v815 = vrcp.pop %v807
    %v816 = vrcp.pop %v808
    %v817 = vrcp.pop %v809
    %v818 = vrcp.pop %v810
    %v819 = vrcp.pop %v811
    %v820 = vrcp.pop %v812
    %v821 = vmul.f32 %v707, %v813
    %v822 = vmul.f32 %v709, %v814
    %v823 = vmul.f32 %v711, %v815
    %v824 = vmul.f32 %v713, %v816
    %v825 = vmul.f32 %v715, %v817
    %v826 = vmul.f32 %v717, %v818
    %v827 = vmul.f32 %v719, %v819
    %v828 = vmul.f32 %v721, %v820
    %v829 = vld [vmem:[%s9] sm:$0xf]
    %v831 = vsel %vm676, %v821, 0
    %v834 = vsel %vm676, %v822, 0
    %v837 = vsel %vm676, %v823, 0
    %v840 = vsel %vm676, %v824, 0
    %v843 = vsel %vm676, %v825, 0
    %v846 = vsel %vm676, %v826, 0
    %v849 = vsel %vm676, %v827, 0
    %v852 = vsel %vm676, %v828, 0
    %vm854 = vcmask 1043456
    %v856 = vsel %vm854, %v829, 0
    %858 = vmatpush.msra.mxu0 0.0
    %859 = vmatpush.msra.mxu0 0.0
    %860 = vmatpush.msra.mxu0 0.0
    %861 = vmatpush.msra.mxu0 0.0
    %862 = vmatpush.msra.mxu0 0.0
    %863 = vmatpush.msra.mxu0 0.0
    %864 = vmatpush.msra.mxu0 0.0
    %865 = vmatpush.msra.mxu0 0.0
    %866 = vmatpush.msra.mxu0 0.0
    %867 = vmatpush.msra.mxu0 0.0
    %868 = vmatpush.msra.mxu0 0.0
    %869 = vmatpush.msra.mxu0 0.0
    %870 = vmatpush.msra.mxu0 0.0
    %871 = vmatpush.msra.mxu0 0.0
    %872 = vmatpush.msra.mxu0 0.0
    %873 = vmatpush.msra.mxu0 %v856
    %874 = vmatmul.f32.gmra.mxu0 %v831
    %v875 = vpop.f32.mrf.mxu0
    %v876 = vadd.f32 0.0, %v875
    %877 = vmatmul.f32.gmra.mxu0 %v834
    %v878 = vpop.f32.mrf.mxu0
    %v879 = vadd.f32 0.0, %v878
    %880 = vmatmul.f32.gmra.mxu0 %v837
    %v881 = vpop.f32.mrf.mxu0
    %v882 = vadd.f32 0.0, %v881
    %883 = vmatmul.f32.gmra.mxu0 %v840
    %v884 = vpop.f32.mrf.mxu0
    %v885 = vadd.f32 0.0, %v884
    %886 = vmatmul.f32.gmra.mxu0 %v843
    %v887 = vpop.f32.mrf.mxu0
    %v888 = vadd.f32 0.0, %v887
    %889 = vmatmul.f32.gmra.mxu0 %v846
    %v890 = vpop.f32.mrf.mxu0
    %v891 = vadd.f32 0.0, %v890
    %892 = vmatmul.f32.gmra.mxu0 %v849
    %v893 = vpop.f32.mrf.mxu0
    %v894 = vadd.f32 0.0, %v893
    %895 = vmatmul.f32.gmra.mxu0 %v852
    %v896 = vpop.f32.mrf.mxu0
    %v897 = vadd.f32 0.0, %v896
    %898 = vdwg.mxu0
    %v899 = vmul.f32 %v876, %v603
    %v900 = vmul.f32 %v879, %v604
    %v901 = vmul.f32 %v882, %v605
    %v902 = vmul.f32 %v885, %v606
    %v903 = vmul.f32 %v888, %v607
    %v904 = vmul.f32 %v891, %v608
    %v905 = vmul.f32 %v894, %v609
    %v906 = vmul.f32 %v897, %v610
    %907 = vmatpush.msra.mxu0 0.0
    %908 = vmatpush.msra.mxu0 0.0
    %909 = vmatpush.msra.mxu0 0.0
    %910 = vmatpush.msra.mxu0 0.0
    %911 = vmatpush.msra.mxu0 0.0
    %912 = vmatpush.msra.mxu0 0.0
    %913 = vmatpush.msra.mxu0 0.0
    %914 = vmatpush.msra.mxu0 0.0
    %915 = vmatpush.msra.mxu0 %v906
    %916 = vmatpush.msra.mxu0 %v905
    %917 = vmatpush.msra.mxu0 %v904
    %918 = vmatpush.msra.mxu0 %v903
    %919 = vmatpush.msra.mxu0 %v902
    %920 = vmatpush.msra.mxu0 %v901
    %921 = vmatpush.msra.mxu0 %v900
    %922 = vmatpush.msra.mxu0 %v899
    %923 = vmatmul.f32.gmra.mxu0 %v724
    %v924 = vpop.f32.mrf.mxu0
    %v925 = vadd.f32 0.0, %v924
    %926 = vmatmul.f32.gmra.mxu0 %v727
    %v927 = vpop.f32.mrf.mxu0
    %v928 = vadd.f32 0.0, %v927
    %929 = vmatmul.f32.gmra.mxu0 %v730
    %v930 = vpop.f32.mrf.mxu0
    %v931 = vadd.f32 0.0, %v930
    %932 = vmatmul.f32.gmra.mxu0 %v733
    %v933 = vpop.f32.mrf.mxu0
    %v934 = vadd.f32 0.0, %v933
    %935 = vdwg.mxu0
    %v936 = vld [vmem:[#allocation16] sm:$0xff]
    %v937 = vld [vmem:[#allocation16 + $0x8] sm:$0xff]
    %v938 = vld [vmem:[#allocation16 + $0x10] sm:$0xff]
    %v939 = vld [vmem:[#allocation16 + $0x18] sm:$0xff]
    %v940 = vld [vmem:[#allocation16 + $0x20] sm:$0xff]
    %v941 = vld [vmem:[#allocation16 + $0x28] sm:$0xff]
    %v942 = vld [vmem:[#allocation16 + $0x30] sm:$0xff]
    %v943 = vld [vmem:[#allocation16 + $0x38] sm:$0xff]
    %v944 = vld [vmem:[#allocation16 + $0x40] sm:$0xff]
    %v945 = vld [vmem:[#allocation16 + $0x48] sm:$0xff]
    %v946 = vld [vmem:[#allocation16 + $0x50] sm:$0xff]
    %v947 = vld [vmem:[#allocation16 + $0x58] sm:$0xff]
    %v948 = vld [vmem:[#allocation16 + $0x60] sm:$0xff]
    %v949 = vld [vmem:[#allocation16 + $0x68] sm:$0xff]
    %v950 = vld [vmem:[#allocation16 + $0x70] sm:$0xff]
    %v951 = vld [vmem:[#allocation16 + $0x78] sm:$0xff]
    %952 = vmatpush.msra.mxu0 %v951
    %953 = vmatpush.msra.mxu0 %v950
    %954 = vmatpush.msra.mxu0 %v949
    %955 = vmatpush.msra.mxu0 %v948
    %956 = vmatpush.msra.mxu0 %v947
    %957 = vmatpush.msra.mxu0 %v946
    %958 = vmatpush.msra.mxu0 %v945
    %959 = vmatpush.msra.mxu0 %v944
    %960 = vmatpush.msra.mxu0 %v943
    %961 = vmatpush.msra.mxu0 %v942
    %962 = vmatpush.msra.mxu0 %v941
    %963 = vmatpush.msra.mxu0 %v940
    %964 = vmatpush.msra.mxu0 %v939
    %965 = vmatpush.msra.mxu0 %v938
    %966 = vmatpush.msra.mxu0 %v937
    %967 = vmatpush.msra.mxu0 %v936
    %968 = vmatmul.f32.gmra.mxu0 %v925
    %v969 = vpop.f32.mrf.mxu0
    %v970 = vadd.f32 0.0, %v969
    %971 = vmatmul.f32.gmra.mxu0 %v928
    %v972 = vpop.f32.mrf.mxu0
    %v973 = vadd.f32 0.0, %v972
    %974 = vmatmul.f32.gmra.mxu0 %v931
    %v975 = vpop.f32.mrf.mxu0
    %v976 = vadd.f32 0.0, %v975
    %977 = vmatmul.f32.gmra.mxu0 %v934
    %v978 = vpop.f32.mrf.mxu0
    %v979 = vadd.f32 0.0, %v978
    %980 = vdwg.mxu0
    %v981 = vtanh.pop %v970
    %v982 = vtanh.pop %v973
    %v983 = vtanh.pop %v976
    %v984 = vtanh.pop %v979
    %v985 = vld [vmem:[#allocation18] sm:$0xff]
    %v986 = vld [vmem:[#allocation18 + $0x8] sm:$0xff]
    %v987 = vld [vmem:[#allocation18 + $0x10] sm:$0xff]
    %v988 = vld [vmem:[#allocation18 + $0x18] sm:$0xff]
    %v989 = vld [vmem:[#allocation18 + $0x20] sm:$0xff]
    %v990 = vld [vmem:[#allocation18 + $0x28] sm:$0xff]
    %v991 = vld [vmem:[#allocation18 + $0x30] sm:$0xff]
    %v992 = vld [vmem:[#allocation18 + $0x38] sm:$0xff]
    %v993 = vld [vmem:[#allocation18 + $0x40] sm:$0xff]
    %v994 = vld [vmem:[#allocation18 + $0x48] sm:$0xff]
    %v995 = vld [vmem:[#allocation18 + $0x50] sm:$0xff]
    %v996 = vld [vmem:[#allocation18 + $0x58] sm:$0xff]
    %v997 = vld [vmem:[#allocation18 + $0x60] sm:$0xff]
    %v998 = vld [vmem:[#allocation18 + $0x68] sm:$0xff]
    %v999 = vld [vmem:[#allocation18 + $0x70] sm:$0xff]
    %v1000 = vld [vmem:[#allocation18 + $0x78] sm:$0xff]
    %1001 = vmatpush.msra.mxu0 %v1000
    %1002 = vmatpush.msra.mxu0 %v999
    %1003 = vmatpush.msra.mxu0 %v998
    %1004 = vmatpush.msra.mxu0 %v997
    %1005 = vmatpush.msra.mxu0 %v996
    %1006 = vmatpush.msra.mxu0 %v995
    %1007 = vmatpush.msra.mxu0 %v994
    %1008 = vmatpush.msra.mxu0 %v993
    %1009 = vmatpush.msra.mxu0 %v992
    %1010 = vmatpush.msra.mxu0 %v991
    %1011 = vmatpush.msra.mxu0 %v990
    %1012 = vmatpush.msra.mxu0 %v989
    %1013 = vmatpush.msra.mxu0 %v988
    %1014 = vmatpush.msra.mxu0 %v987
    %1015 = vmatpush.msra.mxu0 %v986
    %1016 = vmatpush.msra.mxu0 %v985
    %1017 = vmatmul.f32.gmra.mxu0 %v981
    %v1018 = vpop.f32.mrf.mxu0
    %v1019 = vadd.f32 0.0, %v1018
    %1020 = vmatmul.f32.gmra.mxu0 %v982
    %v1021 = vpop.f32.mrf.mxu0
    %v1022 = vadd.f32 0.0, %v1021
    %1023 = vmatmul.f32.gmra.mxu0 %v983
    %v1024 = vpop.f32.mrf.mxu0
    %v1025 = vadd.f32 0.0, %v1024
    %1026 = vmatmul.f32.gmra.mxu0 %v984
    %v1027 = vpop.f32.mrf.mxu0
    %v1028 = vadd.f32 0.0, %v1027
    %1029 = vdwg.mxu0
    %v1030 = vadd.f32 %v324, %v1019
    %v1031 = vadd.f32 %v325, %v1022
    %v1032 = vadd.f32 %v326, %v1025
    %v1033 = vadd.f32 %v327, %v1028
    %1034 = vst.msk [vmem:[%s22] sm:$0xff] %vm356, %v1030
    %1035 = vst.msk [vmem:[%s22 + $0x8] sm:$0xff] %vm356, %v1031
    %1036 = vst.msk [vmem:[%s22 + $0x10] sm:$0xff] %vm356, %v1032
    %1037 = vst.msk [vmem:[%s22 + $0x18] sm:$0xff] %vm356, %v1033
    %v1038 = vld [vmem:[#allocation27] sm:$0xff]
    %v1039 = vld [vmem:[#allocation28] sm:$0xff]
    %v1040 = vld [vmem:[#allocation28 + $0x8] sm:$0xff]
    %v1041 = vld [vmem:[#allocation28 + $0x10] sm:$0xff]
    %v1042 = vld [vmem:[#allocation28 + $0x18] sm:$0xff]
    %v1043 = vld [vmem:[#allocation28 + $0x20] sm:$0xff]
    %v1044 = vld [vmem:[#allocation28 + $0x28] sm:$0xff]
    %v1045 = vld [vmem:[#allocation28 + $0x30] sm:$0xff]
    %v1046 = vld [vmem:[#allocation28 + $0x38] sm:$0xff]
    %v1048 = vsel %vm722, %v1038, 0
    %1050 = vmatpush.msra.mxu0 0.0
    %1051 = vmatpush.msra.mxu0 0.0
    %1052 = vmatpush.msra.mxu0 0.0
    %1053 = vmatpush.msra.mxu0 0.0
    %1054 = vmatpush.msra.mxu0 0.0
    %1055 = vmatpush.msra.mxu0 0.0
    %1056 = vmatpush.msra.mxu0 0.0
    %1057 = vmatpush.msra.mxu0 0.0
    %1058 = vmatpush.msra.mxu0 %v1046
    %1059 = vmatpush.msra.mxu0 %v1045
    %1060 = vmatpush.msra.mxu0 %v1044
    %1061 = vmatpush.msra.mxu0 %v1043
    %1062 = vmatpush.msra.mxu0 %v1042
    %1063 = vmatpush.msra.mxu0 %v1041
    %1064 = vmatpush.msra.mxu0 %v1040
    %1065 = vmatpush.msra.mxu0 %v1039
    %1066 = vmatmul.f32.gmra.mxu0 %v1048
    %v1067 = vpop.f32.mrf.mxu0
    %v1068 = vadd.f32 0.0, %v1067
    %1069 = vdwg.mxu0
    %1070 = vst.msk [vmem:[%s23] sm:$0xff] %vm356, %v1068
    %v1071 = vld [vmem:[#allocation19] sm:$0xff]
    %v1072 = vld [vmem:[#allocation19 + $0x8] sm:$0xff]
    %v1073 = vld [vmem:[#allocation19 + $0x10] sm:$0xff]
    %v1074 = vld [vmem:[#allocation19 + $0x18] sm:$0xff]
    %v1075 = vld [vmem:[#allocation19 + $0x20] sm:$0xff]
    %v1076 = vld [vmem:[#allocation19 + $0x28] sm:$0xff]
    %v1077 = vld [vmem:[#allocation19 + $0x30] sm:$0xff]
    %v1078 = vld [vmem:[#allocation19 + $0x38] sm:$0xff]
    %v1079 = vld [vmem:[#allocation19 + $0x40] sm:$0xff]
    %v1080 = vld [vmem:[#allocation19 + $0x48] sm:$0xff]
    %v1081 = vld [vmem:[#allocation19 + $0x50] sm:$0xff]
    %v1082 = vld [vmem:[#allocation19 + $0x58] sm:$0xff]
    %v1083 = vld [vmem:[#allocation19 + $0x60] sm:$0xff]
    %v1084 = vld [vmem:[#allocation19 + $0x68] sm:$0xff]
    %v1085 = vld [vmem:[#allocation19 + $0x70] sm:$0xff]
    %v1086 = vld [vmem:[#allocation19 + $0x78] sm:$0xff]
    %v1087 = vld [vmem:[#allocation19 + $0x80] sm:$0xff]
    %v1088 = vld [vmem:[#allocation19 + $0x88] sm:$0xff]
    %v1089 = vld [vmem:[#allocation19 + $0x90] sm:$0xff]
    %v1090 = vld [vmem:[#allocation19 + $0x98] sm:$0xff]
    %v1091 = vld [vmem:[#allocation19 + $0xa0] sm:$0xff]
    %v1092 = vld [vmem:[#allocation19 + $0xa8] sm:$0xff]
    %v1093 = vld [vmem:[#allocation19 + $0xb0] sm:$0xff]
    %v1094 = vld [vmem:[#allocation19 + $0xb8] sm:$0xff]
    %v1095 = vld [vmem:[#allocation19 + $0xc0] sm:$0xff]
    %v1096 = vld [vmem:[#allocation19 + $0xc8] sm:$0xff]
    %v1097 = vld [vmem:[#allocation19 + $0xd0] sm:$0xff]
    %v1098 = vld [vmem:[#allocation19 + $0xd8] sm:$0xff]
    %v1099 = vld [vmem:[#allocation19 + $0xe0] sm:$0xff]
    %v1100 = vld [vmem:[#allocation19 + $0xe8] sm:$0xff]
    %v1101 = vld [vmem:[#allocation19 + $0xf0] sm:$0xff]
    %v1102 = vld [vmem:[#allocation19 + $0xf8] sm:$0xff]
    %v1103 = vld [vmem:[#allocation19 + $0x100] sm:$0xff]
    %v1104 = vld [vmem:[#allocation19 + $0x108] sm:$0xff]
    %v1105 = vld [vmem:[#allocation19 + $0x110] sm:$0xff]
    %v1106 = vld [vmem:[#allocation19 + $0x118] sm:$0xff]
    %v1107 = vld [vmem:[#allocation19 + $0x120] sm:$0xff]
    %v1108 = vld [vmem:[#allocation19 + $0x128] sm:$0xff]
    %v1109 = vld [vmem:[#allocation19 + $0x130] sm:$0xff]
    %v1110 = vld [vmem:[#allocation19 + $0x138] sm:$0xff]
    %v1111 = vld [vmem:[#allocation19 + $0x140] sm:$0xff]
    %v1112 = vld [vmem:[#allocation19 + $0x148] sm:$0xff]
    %v1113 = vld [vmem:[#allocation19 + $0x150] sm:$0xff]
    %v1114 = vld [vmem:[#allocation19 + $0x158] sm:$0xff]
    %v1115 = vld [vmem:[#allocation19 + $0x160] sm:$0xff]
    %v1116 = vld [vmem:[#allocation19 + $0x168] sm:$0xff]
    %v1117 = vld [vmem:[#allocation19 + $0x170] sm:$0xff]
    %v1118 = vld [vmem:[#allocation19 + $0x178] sm:$0xff]
    %v1119 = vld [vmem:[#allocation19 + $0x180] sm:$0xff]
    %v1120 = vld [vmem:[#allocation19 + $0x188] sm:$0xff]
    %v1121 = vld [vmem:[#allocation19 + $0x190] sm:$0xff]
    %v1122 = vld [vmem:[#allocation19 + $0x198] sm:$0xff]
    %v1123 = vld [vmem:[#allocation19 + $0x1a0] sm:$0xff]
    %v1124 = vld [vmem:[#allocation19 + $0x1a8] sm:$0xff]
    %v1125 = vld [vmem:[#allocation19 + $0x1b0] sm:$0xff]
    %v1126 = vld [vmem:[#allocation19 + $0x1b8] sm:$0xff]
    %v1127 = vld [vmem:[#allocation19 + $0x1c0] sm:$0xff]
    %v1128 = vld [vmem:[#allocation19 + $0x1c8] sm:$0xff]
    %v1129 = vld [vmem:[#allocation19 + $0x1d0] sm:$0xff]
    %v1130 = vld [vmem:[#allocation19 + $0x1d8] sm:$0xff]
    %v1131 = vld [vmem:[#allocation19 + $0x1e0] sm:$0xff]
    %v1132 = vld [vmem:[#allocation19 + $0x1e8] sm:$0xff]
    %v1133 = vld [vmem:[#allocation19 + $0x1f0] sm:$0xff]
    %v1134 = vld [vmem:[#allocation19 + $0x1f8] sm:$0xff]
    %v1135 = vld [vmem:[%s13] sm:$0xf]
    %v1137 = vperm.slane %v1135, 0
    %v1138 = vperm.slane %v1135, 1
    %v1139 = vperm.slane %v1135, 2
    %v1140 = vperm.slane %v1135, 3
    %1145 = vmatpush.msra.mxu0 %v1131
    %1146 = vmatpush.msra.mxu0 %v1127
    %1147 = vmatpush.msra.mxu0 %v1123
    %1148 = vmatpush.msra.mxu0 %v1119
    %1149 = vmatpush.msra.mxu0 %v1115
    %1150 = vmatpush.msra.mxu0 %v1111
    %1151 = vmatpush.msra.mxu0 %v1107
    %1152 = vmatpush.msra.mxu0 %v1103
    %1153 = vmatpush.msra.mxu0 %v1099
    %1154 = vmatpush.msra.mxu0 %v1095
    %1155 = vmatpush.msra.mxu0 %v1091
    %1156 = vmatpush.msra.mxu0 %v1087
    %1157 = vmatpush.msra.mxu0 %v1083
    %1158 = vmatpush.msra.mxu0 %v1079
    %1159 = vmatpush.msra.mxu0 %v1075
    %1160 = vmatpush.msra.mxu0 %v1071
    %1161 = vmatmul.f32.gmra.mxu0 %v981
    %v1162 = vpop.f32.mrf.mxu0
    %v1163 = vadd.f32 %v1137, %v1162
    %1164 = vmatmul.f32.gmra.mxu0 %v982
    %v1165 = vpop.f32.mrf.mxu0
    %v1166 = vadd.f32 %v1137, %v1165
    %1167 = vmatmul.f32.gmra.mxu0 %v983
    %v1168 = vpop.f32.mrf.mxu0
    %v1169 = vadd.f32 %v1137, %v1168
    %1170 = vmatmul.f32.gmra.mxu0 %v984
    %v1171 = vpop.f32.mrf.mxu0
    %v1172 = vadd.f32 %v1137, %v1171
    %1173 = vdwg.mxu0
    %1174 = vmatpush.msra.mxu0 %v1132
    %1175 = vmatpush.msra.mxu0 %v1128
    %1176 = vmatpush.msra.mxu0 %v1124
    %1177 = vmatpush.msra.mxu0 %v1120
    %1178 = vmatpush.msra.mxu0 %v1116
    %1179 = vmatpush.msra.mxu0 %v1112
    %1180 = vmatpush.msra.mxu0 %v1108
    %1181 = vmatpush.msra.mxu0 %v1104
    %1182 = vmatpush.msra.mxu0 %v1100
    %1183 = vmatpush.msra.mxu0 %v1096
    %1184 = vmatpush.msra.mxu0 %v1092
    %1185 = vmatpush.msra.mxu0 %v1088
    %1186 = vmatpush.msra.mxu0 %v1084
    %1187 = vmatpush.msra.mxu0 %v1080
    %1188 = vmatpush.msra.mxu0 %v1076
    %1189 = vmatpush.msra.mxu0 %v1072
    %1190 = vmatmul.f32.gmra.mxu0 %v981
    %v1191 = vpop.f32.mrf.mxu0
    %v1192 = vadd.f32 %v1138, %v1191
    %1193 = vmatmul.f32.gmra.mxu0 %v982
    %v1194 = vpop.f32.mrf.mxu0
    %v1195 = vadd.f32 %v1138, %v1194
    %1196 = vmatmul.f32.gmra.mxu0 %v983
    %v1197 = vpop.f32.mrf.mxu0
    %v1198 = vadd.f32 %v1138, %v1197
    %1199 = vmatmul.f32.gmra.mxu0 %v984
    %v1200 = vpop.f32.mrf.mxu0
    %v1201 = vadd.f32 %v1138, %v1200
    %1202 = vdwg.mxu0
    %1203 = vmatpush.msra.mxu0 %v1133
    %1204 = vmatpush.msra.mxu0 %v1129
    %1205 = vmatpush.msra.mxu0 %v1125
    %1206 = vmatpush.msra.mxu0 %v1121
    %1207 = vmatpush.msra.mxu0 %v1117
    %1208 = vmatpush.msra.mxu0 %v1113
    %1209 = vmatpush.msra.mxu0 %v1109
    %1210 = vmatpush.msra.mxu0 %v1105
    %1211 = vmatpush.msra.mxu0 %v1101
    %1212 = vmatpush.msra.mxu0 %v1097
    %1213 = vmatpush.msra.mxu0 %v1093
    %1214 = vmatpush.msra.mxu0 %v1089
    %1215 = vmatpush.msra.mxu0 %v1085
    %1216 = vmatpush.msra.mxu0 %v1081
    %1217 = vmatpush.msra.mxu0 %v1077
    %1218 = vmatpush.msra.mxu0 %v1073
    %1219 = vmatmul.f32.gmra.mxu0 %v981
    %v1220 = vpop.f32.mrf.mxu0
    %v1221 = vadd.f32 %v1139, %v1220
    %1222 = vmatmul.f32.gmra.mxu0 %v982
    %v1223 = vpop.f32.mrf.mxu0
    %v1224 = vadd.f32 %v1139, %v1223
    %1225 = vmatmul.f32.gmra.mxu0 %v983
    %v1226 = vpop.f32.mrf.mxu0
    %v1227 = vadd.f32 %v1139, %v1226
    %1228 = vmatmul.f32.gmra.mxu0 %v984
    %v1229 = vpop.f32.mrf.mxu0
    %v1230 = vadd.f32 %v1139, %v1229
    %1231 = vdwg.mxu0
    %1232 = vmatpush.msra.mxu0 %v1134
    %1233 = vmatpush.msra.mxu0 %v1130
    %1234 = vmatpush.msra.mxu0 %v1126
    %1235 = vmatpush.msra.mxu0 %v1122
    %1236 = vmatpush.msra.mxu0 %v1118
    %1237 = vmatpush.msra.mxu0 %v1114
    %1238 = vmatpush.msra.mxu0 %v1110
    %1239 = vmatpush.msra.mxu0 %v1106
    %1240 = vmatpush.msra.mxu0 %v1102
    %1241 = vmatpush.msra.mxu0 %v1098
    %1242 = vmatpush.msra.mxu0 %v1094
    %1243 = vmatpush.msra.mxu0 %v1090
    %1244 = vmatpush.msra.mxu0 %v1086
    %1245 = vmatpush.msra.mxu0 %v1082
    %1246 = vmatpush.msra.mxu0 %v1078
    %1247 = vmatpush.msra.mxu0 %v1074
    %1248 = vmatmul.f32.gmra.mxu0 %v981
    %v1249 = vpop.f32.mrf.mxu0
    %v1250 = vadd.f32 %v1140, %v1249
    %1251 = vmatmul.f32.gmra.mxu0 %v982
    %v1252 = vpop.f32.mrf.mxu0
    %v1253 = vadd.f32 %v1140, %v1252
    %1254 = vmatmul.f32.gmra.mxu0 %v983
    %v1255 = vpop.f32.mrf.mxu0
    %v1256 = vadd.f32 %v1140, %v1255
    %1257 = vmatmul.f32.gmra.mxu0 %v984
    %v1258 = vpop.f32.mrf.mxu0
    %v1259 = vadd.f32 %v1140, %v1258
    %1260 = vdwg.mxu0
    %v1261 = vmax.f32 %v1163, 0.0
    %v1262 = vmax.f32 %v1192, 0.0
    %v1263 = vmax.f32 %v1221, 0.0
    %v1264 = vmax.f32 %v1250, 0.0
    %v1265 = vmax.f32 %v1166, 0.0
    %v1266 = vmax.f32 %v1195, 0.0
    %v1267 = vmax.f32 %v1224, 0.0
    %v1268 = vmax.f32 %v1253, 0.0
    %v1269 = vmax.f32 %v1169, 0.0
    %v1270 = vmax.f32 %v1198, 0.0
    %v1271 = vmax.f32 %v1227, 0.0
    %v1272 = vmax.f32 %v1256, 0.0
    %v1273 = vmax.f32 %v1172, 0.0
    %v1274 = vmax.f32 %v1201, 0.0
    %v1275 = vmax.f32 %v1230, 0.0
    %v1276 = vmax.f32 %v1259, 0.0
    %v1277 = vld [vmem:[#allocation21] sm:$0xff]
    %v1278 = vld [vmem:[#allocation21 + $0x8] sm:$0xff]
    %v1279 = vld [vmem:[#allocation21 + $0x10] sm:$0xff]
    %v1280 = vld [vmem:[#allocation21 + $0x18] sm:$0xff]
    %v1281 = vld [vmem:[#allocation21 + $0x20] sm:$0xff]
    %v1282 = vld [vmem:[#allocation21 + $0x28] sm:$0xff]
    %v1283 = vld [vmem:[#allocation21 + $0x30] sm:$0xff]
    %v1284 = vld [vmem:[#allocation21 + $0x38] sm:$0xff]
    %v1285 = vld [vmem:[#allocation21 + $0x40] sm:$0xff]
    %v1286 = vld [vmem:[#allocation21 + $0x48] sm:$0xff]
    %v1287 = vld [vmem:[#allocation21 + $0x50] sm:$0xff]
    %v1288 = vld [vmem:[#allocation21 + $0x58] sm:$0xff]
    %v1289 = vld [vmem:[#allocation21 + $0x60] sm:$0xff]
    %v1290 = vld [vmem:[#allocation21 + $0x68] sm:$0xff]
    %v1291 = vld [vmem:[#allocation21 + $0x70] sm:$0xff]
    %v1292 = vld [vmem:[#allocation21 + $0x78] sm:$0xff]
    %v1293 = vld [vmem:[#allocation21 + $0x80] sm:$0xff]
    %v1294 = vld [vmem:[#allocation21 + $0x88] sm:$0xff]
    %v1295 = vld [vmem:[#allocation21 + $0x90] sm:$0xff]
    %v1296 = vld [vmem:[#allocation21 + $0x98] sm:$0xff]
    %v1297 = vld [vmem:[#allocation21 + $0xa0] sm:$0xff]
    %v1298 = vld [vmem:[#allocation21 + $0xa8] sm:$0xff]
    %v1299 = vld [vmem:[#allocation21 + $0xb0] sm:$0xff]
    %v1300 = vld [vmem:[#allocation21 + $0xb8] sm:$0xff]
    %v1301 = vld [vmem:[#allocation21 + $0xc0] sm:$0xff]
    %v1302 = vld [vmem:[#allocation21 + $0xc8] sm:$0xff]
    %v1303 = vld [vmem:[#allocation21 + $0xd0] sm:$0xff]
    %v1304 = vld [vmem:[#allocation21 + $0xd8] sm:$0xff]
    %v1305 = vld [vmem:[#allocation21 + $0xe0] sm:$0xff]
    %v1306 = vld [vmem:[#allocation21 + $0xe8] sm:$0xff]
    %v1307 = vld [vmem:[#allocation21 + $0xf0] sm:$0xff]
    %v1308 = vld [vmem:[#allocation21 + $0xf8] sm:$0xff]
    %v1309 = vld [vmem:[#allocation21 + $0x100] sm:$0xff]
    %v1310 = vld [vmem:[#allocation21 + $0x108] sm:$0xff]
    %v1311 = vld [vmem:[#allocation21 + $0x110] sm:$0xff]
    %v1312 = vld [vmem:[#allocation21 + $0x118] sm:$0xff]
    %v1313 = vld [vmem:[#allocation21 + $0x120] sm:$0xff]
    %v1314 = vld [vmem:[#allocation21 + $0x128] sm:$0xff]
    %v1315 = vld [vmem:[#allocation21 + $0x130] sm:$0xff]
    %v1316 = vld [vmem:[#allocation21 + $0x138] sm:$0xff]
    %v1317 = vld [vmem:[#allocation21 + $0x140] sm:$0xff]
    %v1318 = vld [vmem:[#allocation21 + $0x148] sm:$0xff]
    %v1319 = vld [vmem:[#allocation21 + $0x150] sm:$0xff]
    %v1320 = vld [vmem:[#allocation21 + $0x158] sm:$0xff]
    %v1321 = vld [vmem:[#allocation21 + $0x160] sm:$0xff]
    %v1322 = vld [vmem:[#allocation21 + $0x168] sm:$0xff]
    %v1323 = vld [vmem:[#allocation21 + $0x170] sm:$0xff]
    %v1324 = vld [vmem:[#allocation21 + $0x178] sm:$0xff]
    %v1325 = vld [vmem:[#allocation21 + $0x180] sm:$0xff]
    %v1326 = vld [vmem:[#allocation21 + $0x188] sm:$0xff]
    %v1327 = vld [vmem:[#allocation21 + $0x190] sm:$0xff]
    %v1328 = vld [vmem:[#allocation21 + $0x198] sm:$0xff]
    %v1329 = vld [vmem:[#allocation21 + $0x1a0] sm:$0xff]
    %v1330 = vld [vmem:[#allocation21 + $0x1a8] sm:$0xff]
    %v1331 = vld [vmem:[#allocation21 + $0x1b0] sm:$0xff]
    %v1332 = vld [vmem:[#allocation21 + $0x1b8] sm:$0xff]
    %v1333 = vld [vmem:[#allocation21 + $0x1c0] sm:$0xff]
    %v1334 = vld [vmem:[#allocation21 + $0x1c8] sm:$0xff]
    %v1335 = vld [vmem:[#allocation21 + $0x1d0] sm:$0xff]
    %v1336 = vld [vmem:[#allocation21 + $0x1d8] sm:$0xff]
    %v1337 = vld [vmem:[#allocation21 + $0x1e0] sm:$0xff]
    %v1338 = vld [vmem:[#allocation21 + $0x1e8] sm:$0xff]
    %v1339 = vld [vmem:[#allocation21 + $0x1f0] sm:$0xff]
    %v1340 = vld [vmem:[#allocation21 + $0x1f8] sm:$0xff]
    %v1341 = vld [vmem:[#allocation21 + $0x200] sm:$0xff]
    %v1342 = vld [vmem:[#allocation21 + $0x208] sm:$0xff]
    %v1343 = vld [vmem:[#allocation21 + $0x210] sm:$0xff]
    %v1344 = vld [vmem:[#allocation21 + $0x218] sm:$0xff]
    %v1345 = vld [vmem:[#allocation21 + $0x220] sm:$0xff]
    %v1346 = vld [vmem:[#allocation21 + $0x228] sm:$0xff]
    %v1347 = vld [vmem:[#allocation21 + $0x230] sm:$0xff]
    %v1348 = vld [vmem:[#allocation21 + $0x238] sm:$0xff]
    %v1349 = vld [vmem:[#allocation21 + $0x240] sm:$0xff]
    %v1350 = vld [vmem:[#allocation21 + $0x248] sm:$0xff]
    %v1351 = vld [vmem:[#allocation21 + $0x250] sm:$0xff]
    %v1352 = vld [vmem:[#allocation21 + $0x258] sm:$0xff]
    %v1353 = vld [vmem:[#allocation21 + $0x260] sm:$0xff]
    %v1354 = vld [vmem:[#allocation21 + $0x268] sm:$0xff]
    %v1355 = vld [vmem:[#allocation21 + $0x270] sm:$0xff]
    %v1356 = vld [vmem:[#allocation21 + $0x278] sm:$0xff]
    %v1357 = vld [vmem:[#allocation21 + $0x280] sm:$0xff]
    %v1358 = vld [vmem:[#allocation21 + $0x288] sm:$0xff]
    %v1359 = vld [vmem:[#allocation21 + $0x290] sm:$0xff]
    %v1360 = vld [vmem:[#allocation21 + $0x298] sm:$0xff]
    %v1361 = vld [vmem:[#allocation21 + $0x2a0] sm:$0xff]
    %v1362 = vld [vmem:[#allocation21 + $0x2a8] sm:$0xff]
    %v1363 = vld [vmem:[#allocation21 + $0x2b0] sm:$0xff]
    %v1364 = vld [vmem:[#allocation21 + $0x2b8] sm:$0xff]
    %v1365 = vld [vmem:[#allocation21 + $0x2c0] sm:$0xff]
    %v1366 = vld [vmem:[#allocation21 + $0x2c8] sm:$0xff]
    %v1367 = vld [vmem:[#allocation21 + $0x2d0] sm:$0xff]
    %v1368 = vld [vmem:[#allocation21 + $0x2d8] sm:$0xff]
    %v1369 = vld [vmem:[#allocation21 + $0x2e0] sm:$0xff]
    %v1370 = vld [vmem:[#allocation21 + $0x2e8] sm:$0xff]
    %v1371 = vld [vmem:[#allocation21 + $0x2f0] sm:$0xff]
    %v1372 = vld [vmem:[#allocation21 + $0x2f8] sm:$0xff]
    %v1373 = vld [vmem:[#allocation21 + $0x300] sm:$0xff]
    %v1374 = vld [vmem:[#allocation21 + $0x308] sm:$0xff]
    %v1375 = vld [vmem:[#allocation21 + $0x310] sm:$0xff]
    %v1376 = vld [vmem:[#allocation21 + $0x318] sm:$0xff]
    %v1377 = vld [vmem:[#allocation21 + $0x320] sm:$0xff]
    %v1378 = vld [vmem:[#allocation21 + $0x328] sm:$0xff]
    %v1379 = vld [vmem:[#allocation21 + $0x330] sm:$0xff]
    %v1380 = vld [vmem:[#allocation21 + $0x338] sm:$0xff]
    %v1381 = vld [vmem:[#allocation21 + $0x340] sm:$0xff]
    %v1382 = vld [vmem:[#allocation21 + $0x348] sm:$0xff]
    %v1383 = vld [vmem:[#allocation21 + $0x350] sm:$0xff]
    %v1384 = vld [vmem:[#allocation21 + $0x358] sm:$0xff]
    %v1385 = vld [vmem:[#allocation21 + $0x360] sm:$0xff]
    %v1386 = vld [vmem:[#allocation21 + $0x368] sm:$0xff]
    %v1387 = vld [vmem:[#allocation21 + $0x370] sm:$0xff]
    %v1388 = vld [vmem:[#allocation21 + $0x378] sm:$0xff]
    %v1389 = vld [vmem:[#allocation21 + $0x380] sm:$0xff]
    %v1390 = vld [vmem:[#allocation21 + $0x388] sm:$0xff]
    %v1391 = vld [vmem:[#allocation21 + $0x390] sm:$0xff]
    %v1392 = vld [vmem:[#allocation21 + $0x398] sm:$0xff]
    %v1393 = vld [vmem:[#allocation21 + $0x3a0] sm:$0xff]
    %v1394 = vld [vmem:[#allocation21 + $0x3a8] sm:$0xff]
    %v1395 = vld [vmem:[#allocation21 + $0x3b0] sm:$0xff]
    %v1396 = vld [vmem:[#allocation21 + $0x3b8] sm:$0xff]
    %v1397 = vld [vmem:[#allocation21 + $0x3c0] sm:$0xff]
    %v1398 = vld [vmem:[#allocation21 + $0x3c8] sm:$0xff]
    %v1399 = vld [vmem:[#allocation21 + $0x3d0] sm:$0xff]
    %v1400 = vld [vmem:[#allocation21 + $0x3d8] sm:$0xff]
    %v1401 = vld [vmem:[#allocation21 + $0x3e0] sm:$0xff]
    %v1402 = vld [vmem:[#allocation21 + $0x3e8] sm:$0xff]
    %v1403 = vld [vmem:[#allocation21 + $0x3f0] sm:$0xff]
    %v1404 = vld [vmem:[#allocation21 + $0x3f8] sm:$0xff]
    %v1405 = vld [vmem:[#allocation21 + $0x400] sm:$0xff]
    %v1406 = vld [vmem:[#allocation21 + $0x408] sm:$0xff]
    %v1407 = vld [vmem:[#allocation21 + $0x410] sm:$0xff]
    %v1408 = vld [vmem:[#allocation21 + $0x418] sm:$0xff]
    %v1409 = vld [vmem:[#allocation21 + $0x420] sm:$0xff]
    %v1410 = vld [vmem:[#allocation21 + $0x428] sm:$0xff]
    %v1411 = vld [vmem:[#allocation21 + $0x430] sm:$0xff]
    %v1412 = vld [vmem:[#allocation21 + $0x438] sm:$0xff]
    %v1413 = vld [vmem:[#allocation21 + $0x440] sm:$0xff]
    %v1414 = vld [vmem:[#allocation21 + $0x448] sm:$0xff]
    %v1415 = vld [vmem:[#allocation21 + $0x450] sm:$0xff]
    %v1416 = vld [vmem:[#allocation21 + $0x458] sm:$0xff]
    %v1417 = vld [vmem:[#allocation21 + $0x460] sm:$0xff]
    %v1418 = vld [vmem:[#allocation21 + $0x468] sm:$0xff]
    %v1419 = vld [vmem:[#allocation21 + $0x470] sm:$0xff]
    %v1420 = vld [vmem:[#allocation21 + $0x478] sm:$0xff]
    %v1421 = vld [vmem:[#allocation21 + $0x480] sm:$0xff]
    %v1422 = vld [vmem:[#allocation21 + $0x488] sm:$0xff]
    %v1423 = vld [vmem:[#allocation21 + $0x490] sm:$0xff]
    %v1424 = vld [vmem:[#allocation21 + $0x498] sm:$0xff]
    %v1425 = vld [vmem:[#allocation21 + $0x4a0] sm:$0xff]
    %v1426 = vld [vmem:[#allocation21 + $0x4a8] sm:$0xff]
    %v1427 = vld [vmem:[#allocation21 + $0x4b0] sm:$0xff]
    %v1428 = vld [vmem:[#allocation21 + $0x4b8] sm:$0xff]
    %v1429 = vld [vmem:[#allocation21 + $0x4c0] sm:$0xff]
    %v1430 = vld [vmem:[#allocation21 + $0x4c8] sm:$0xff]
    %v1431 = vld [vmem:[#allocation21 + $0x4d0] sm:$0xff]
    %v1432 = vld [vmem:[#allocation21 + $0x4d8] sm:$0xff]
    %v1433 = vld [vmem:[#allocation21 + $0x4e0] sm:$0xff]
    %v1434 = vld [vmem:[#allocation21 + $0x4e8] sm:$0xff]
    %v1435 = vld [vmem:[#allocation21 + $0x4f0] sm:$0xff]
    %v1436 = vld [vmem:[#allocation21 + $0x4f8] sm:$0xff]
    %v1437 = vld [vmem:[#allocation21 + $0x500] sm:$0xff]
    %v1438 = vld [vmem:[#allocation21 + $0x508] sm:$0xff]
    %v1439 = vld [vmem:[#allocation21 + $0x510] sm:$0xff]
    %v1440 = vld [vmem:[#allocation21 + $0x518] sm:$0xff]
    %v1441 = vld [vmem:[#allocation21 + $0x520] sm:$0xff]
    %v1442 = vld [vmem:[#allocation21 + $0x528] sm:$0xff]
    %v1443 = vld [vmem:[#allocation21 + $0x530] sm:$0xff]
    %v1444 = vld [vmem:[#allocation21 + $0x538] sm:$0xff]
    %v1445 = vld [vmem:[#allocation21 + $0x540] sm:$0xff]
    %v1446 = vld [vmem:[#allocation21 + $0x548] sm:$0xff]
    %v1447 = vld [vmem:[#allocation21 + $0x550] sm:$0xff]
    %v1448 = vld [vmem:[#allocation21 + $0x558] sm:$0xff]
    %v1449 = vld [vmem:[#allocation21 + $0x560] sm:$0xff]
    %v1450 = vld [vmem:[#allocation21 + $0x568] sm:$0xff]
    %v1451 = vld [vmem:[#allocation21 + $0x570] sm:$0xff]
    %v1452 = vld [vmem:[#allocation21 + $0x578] sm:$0xff]
    %v1453 = vld [vmem:[#allocation21 + $0x580] sm:$0xff]
    %v1454 = vld [vmem:[#allocation21 + $0x588] sm:$0xff]
    %v1455 = vld [vmem:[#allocation21 + $0x590] sm:$0xff]
    %v1456 = vld [vmem:[#allocation21 + $0x598] sm:$0xff]
    %v1457 = vld [vmem:[#allocation21 + $0x5a0] sm:$0xff]
    %v1458 = vld [vmem:[#allocation21 + $0x5a8] sm:$0xff]
    %v1459 = vld [vmem:[#allocation21 + $0x5b0] sm:$0xff]
    %v1460 = vld [vmem:[#allocation21 + $0x5b8] sm:$0xff]
    %v1461 = vld [vmem:[#allocation21 + $0x5c0] sm:$0xff]
    %v1462 = vld [vmem:[#allocation21 + $0x5c8] sm:$0xff]
    %v1463 = vld [vmem:[#allocation21 + $0x5d0] sm:$0xff]
    %v1464 = vld [vmem:[#allocation21 + $0x5d8] sm:$0xff]
    %v1465 = vld [vmem:[#allocation21 + $0x5e0] sm:$0xff]
    %v1466 = vld [vmem:[#allocation21 + $0x5e8] sm:$0xff]
    %v1467 = vld [vmem:[#allocation21 + $0x5f0] sm:$0xff]
    %v1468 = vld [vmem:[#allocation21 + $0x5f8] sm:$0xff]
    %v1469 = vld [vmem:[#allocation21 + $0x600] sm:$0xff]
    %v1470 = vld [vmem:[#allocation21 + $0x608] sm:$0xff]
    %v1471 = vld [vmem:[#allocation21 + $0x610] sm:$0xff]
    %v1472 = vld [vmem:[#allocation21 + $0x618] sm:$0xff]
    %v1473 = vld [vmem:[#allocation21 + $0x620] sm:$0xff]
    %v1474 = vld [vmem:[#allocation21 + $0x628] sm:$0xff]
    %v1475 = vld [vmem:[#allocation21 + $0x630] sm:$0xff]
    %v1476 = vld [vmem:[#allocation21 + $0x638] sm:$0xff]
    %v1477 = vld [vmem:[#allocation21 + $0x640] sm:$0xff]
    %v1478 = vld [vmem:[#allocation21 + $0x648] sm:$0xff]
    %v1479 = vld [vmem:[#allocation21 + $0x650] sm:$0xff]
    %v1480 = vld [vmem:[#allocation21 + $0x658] sm:$0xff]
    %v1481 = vld [vmem:[#allocation21 + $0x660] sm:$0xff]
    %v1482 = vld [vmem:[#allocation21 + $0x668] sm:$0xff]
    %v1483 = vld [vmem:[#allocation21 + $0x670] sm:$0xff]
    %v1484 = vld [vmem:[#allocation21 + $0x678] sm:$0xff]
    %v1485 = vld [vmem:[#allocation21 + $0x680] sm:$0xff]
    %v1486 = vld [vmem:[#allocation21 + $0x688] sm:$0xff]
    %v1487 = vld [vmem:[#allocation21 + $0x690] sm:$0xff]
    %v1488 = vld [vmem:[#allocation21 + $0x698] sm:$0xff]
    %v1489 = vld [vmem:[#allocation21 + $0x6a0] sm:$0xff]
    %v1490 = vld [vmem:[#allocation21 + $0x6a8] sm:$0xff]
    %v1491 = vld [vmem:[#allocation21 + $0x6b0] sm:$0xff]
    %v1492 = vld [vmem:[#allocation21 + $0x6b8] sm:$0xff]
    %v1493 = vld [vmem:[#allocation21 + $0x6c0] sm:$0xff]
    %v1494 = vld [vmem:[#allocation21 + $0x6c8] sm:$0xff]
    %v1495 = vld [vmem:[#allocation21 + $0x6d0] sm:$0xff]
    %v1496 = vld [vmem:[#allocation21 + $0x6d8] sm:$0xff]
    %v1497 = vld [vmem:[#allocation21 + $0x6e0] sm:$0xff]
    %v1498 = vld [vmem:[#allocation21 + $0x6e8] sm:$0xff]
    %v1499 = vld [vmem:[#allocation21 + $0x6f0] sm:$0xff]
    %v1500 = vld [vmem:[#allocation21 + $0x6f8] sm:$0xff]
    %v1501 = vld [vmem:[#allocation21 + $0x700] sm:$0xff]
    %v1502 = vld [vmem:[#allocation21 + $0x708] sm:$0xff]
    %v1503 = vld [vmem:[#allocation21 + $0x710] sm:$0xff]
    %v1504 = vld [vmem:[#allocation21 + $0x718] sm:$0xff]
    %v1505 = vld [vmem:[#allocation21 + $0x720] sm:$0xff]
    %v1506 = vld [vmem:[#allocation21 + $0x728] sm:$0xff]
    %v1507 = vld [vmem:[#allocation21 + $0x730] sm:$0xff]
    %v1508 = vld [vmem:[#allocation21 + $0x738] sm:$0xff]
    %v1509 = vld [vmem:[#allocation21 + $0x740] sm:$0xff]
    %v1510 = vld [vmem:[#allocation21 + $0x748] sm:$0xff]
    %v1511 = vld [vmem:[#allocation21 + $0x750] sm:$0xff]
    %v1512 = vld [vmem:[#allocation21 + $0x758] sm:$0xff]
    %v1513 = vld [vmem:[#allocation21 + $0x760] sm:$0xff]
    %v1514 = vld [vmem:[#allocation21 + $0x768] sm:$0xff]
    %v1515 = vld [vmem:[#allocation21 + $0x770] sm:$0xff]
    %v1516 = vld [vmem:[#allocation21 + $0x778] sm:$0xff]
    %v1517 = vld [vmem:[#allocation21 + $0x780] sm:$0xff]
    %v1518 = vld [vmem:[#allocation21 + $0x788] sm:$0xff]
    %v1519 = vld [vmem:[#allocation21 + $0x790] sm:$0xff]
    %v1520 = vld [vmem:[#allocation21 + $0x798] sm:$0xff]
    %v1521 = vld [vmem:[#allocation21 + $0x7a0] sm:$0xff]
    %v1522 = vld [vmem:[#allocation21 + $0x7a8] sm:$0xff]
    %v1523 = vld [vmem:[#allocation21 + $0x7b0] sm:$0xff]
    %v1524 = vld [vmem:[#allocation21 + $0x7b8] sm:$0xff]
    %v1525 = vld [vmem:[#allocation21 + $0x7c0] sm:$0xff]
    %v1526 = vld [vmem:[#allocation21 + $0x7c8] sm:$0xff]
    %v1527 = vld [vmem:[#allocation21 + $0x7d0] sm:$0xff]
    %v1528 = vld [vmem:[#allocation21 + $0x7d8] sm:$0xff]
    %v1529 = vld [vmem:[#allocation21 + $0x7e0] sm:$0xff]
    %v1530 = vld [vmem:[#allocation21 + $0x7e8] sm:$0xff]
    %v1531 = vld [vmem:[#allocation21 + $0x7f0] sm:$0xff]
    %v1532 = vld [vmem:[#allocation21 + $0x7f8] sm:$0xff]
    %v1533 = vld [vmem:[#allocation22] sm:$0xf]
    %v1535 = vperm.slane %v1533, 0
    %v1536 = vperm.slane %v1533, 1
    %v1537 = vperm.slane %v1533, 2
    %v1538 = vperm.slane %v1533, 3
    %1543 = vmatpush.msra.mxu0 %v1337
    %1544 = vmatpush.msra.mxu0 %v1333
    %1545 = vmatpush.msra.mxu0 %v1329
    %1546 = vmatpush.msra.mxu0 %v1325
    %1547 = vmatpush.msra.mxu0 %v1321
    %1548 = vmatpush.msra.mxu0 %v1317
    %1549 = vmatpush.msra.mxu0 %v1313
    %1550 = vmatpush.msra.mxu0 %v1309
    %1551 = vmatpush.msra.mxu0 %v1305
    %1552 = vmatpush.msra.mxu0 %v1301
    %1553 = vmatpush.msra.mxu0 %v1297
    %1554 = vmatpush.msra.mxu0 %v1293
    %1555 = vmatpush.msra.mxu0 %v1289
    %1556 = vmatpush.msra.mxu0 %v1285
    %1557 = vmatpush.msra.mxu0 %v1281
    %1558 = vmatpush.msra.mxu0 %v1277
    %1559 = vmatmul.f32.gmra.mxu0 %v1261
    %v1560 = vpop.f32.mrf.mxu0
    %v1561 = vadd.f32 %v1535, %v1560
    %1562 = vmatmul.f32.gmra.mxu0 %v1265
    %v1563 = vpop.f32.mrf.mxu0
    %v1564 = vadd.f32 %v1535, %v1563
    %1565 = vmatmul.f32.gmra.mxu0 %v1269
    %v1566 = vpop.f32.mrf.mxu0
    %v1567 = vadd.f32 %v1535, %v1566
    %1568 = vmatmul.f32.gmra.mxu0 %v1273
    %v1569 = vpop.f32.mrf.mxu0
    %v1570 = vadd.f32 %v1535, %v1569
    %1571 = vdwg.mxu0
    %1572 = vmatpush.msra.mxu0 %v1401
    %1573 = vmatpush.msra.mxu0 %v1397
    %1574 = vmatpush.msra.mxu0 %v1393
    %1575 = vmatpush.msra.mxu0 %v1389
    %1576 = vmatpush.msra.mxu0 %v1385
    %1577 = vmatpush.msra.mxu0 %v1381
    %1578 = vmatpush.msra.mxu0 %v1377
    %1579 = vmatpush.msra.mxu0 %v1373
    %1580 = vmatpush.msra.mxu0 %v1369
    %1581 = vmatpush.msra.mxu0 %v1365
    %1582 = vmatpush.msra.mxu0 %v1361
    %1583 = vmatpush.msra.mxu0 %v1357
    %1584 = vmatpush.msra.mxu0 %v1353
    %1585 = vmatpush.msra.mxu0 %v1349
    %1586 = vmatpush.msra.mxu0 %v1345
    %1587 = vmatpush.msra.mxu0 %v1341
    %1588 = vmatmul.f32.gmra.mxu0 %v1262
    %v1589 = vpop.f32.mrf.mxu0
    %v1590 = vadd.f32 %v1561, %v1589
    %1591 = vmatmul.f32.gmra.mxu0 %v1266
    %v1592 = vpop.f32.mrf.mxu0
    %v1593 = vadd.f32 %v1564, %v1592
    %1594 = vmatmul.f32.gmra.mxu0 %v1270
    %v1595 = vpop.f32.mrf.mxu0
    %v1596 = vadd.f32 %v1567, %v1595
    %1597 = vmatmul.f32.gmra.mxu0 %v1274
    %v1598 = vpop.f32.mrf.mxu0
    %v1599 = vadd.f32 %v1570, %v1598
    %1600 = vdwg.mxu0
    %1601 = vmatpush.msra.mxu0 %v1465
    %1602 = vmatpush.msra.mxu0 %v1461
    %1603 = vmatpush.msra.mxu0 %v1457
    %1604 = vmatpush.msra.mxu0 %v1453
    %1605 = vmatpush.msra.mxu0 %v1449
    %1606 = vmatpush.msra.mxu0 %v1445
    %1607 = vmatpush.msra.mxu0 %v1441
    %1608 = vmatpush.msra.mxu0 %v1437
    %1609 = vmatpush.msra.mxu0 %v1433
    %1610 = vmatpush.msra.mxu0 %v1429
    %1611 = vmatpush.msra.mxu0 %v1425
    %1612 = vmatpush.msra.mxu0 %v1421
    %1613 = vmatpush.msra.mxu0 %v1417
    %1614 = vmatpush.msra.mxu0 %v1413
    %1615 = vmatpush.msra.mxu0 %v1409
    %1616 = vmatpush.msra.mxu0 %v1405
    %1617 = vmatmul.f32.gmra.mxu0 %v1263
    %v1618 = vpop.f32.mrf.mxu0
    %v1619 = vadd.f32 %v1590, %v1618
    %1620 = vmatmul.f32.gmra.mxu0 %v1267
    %v1621 = vpop.f32.mrf.mxu0
    %v1622 = vadd.f32 %v1593, %v1621
    %1623 = vmatmul.f32.gmra.mxu0 %v1271
    %v1624 = vpop.f32.mrf.mxu0
    %v1625 = vadd.f32 %v1596, %v1624
    %1626 = vmatmul.f32.gmra.mxu0 %v1275
    %v1627 = vpop.f32.mrf.mxu0
    %v1628 = vadd.f32 %v1599, %v1627
    %1629 = vdwg.mxu0
    %1630 = vmatpush.msra.mxu0 %v1529
    %1631 = vmatpush.msra.mxu0 %v1525
    %1632 = vmatpush.msra.mxu0 %v1521
    %1633 = vmatpush.msra.mxu0 %v1517
    %1634 = vmatpush.msra.mxu0 %v1513
    %1635 = vmatpush.msra.mxu0 %v1509
    %1636 = vmatpush.msra.mxu0 %v1505
    %1637 = vmatpush.msra.mxu0 %v1501
    %1638 = vmatpush.msra.mxu0 %v1497
    %1639 = vmatpush.msra.mxu0 %v1493
    %1640 = vmatpush.msra.mxu0 %v1489
    %1641 = vmatpush.msra.mxu0 %v1485
    %1642 = vmatpush.msra.mxu0 %v1481
    %1643 = vmatpush.msra.mxu0 %v1477
    %1644 = vmatpush.msra.mxu0 %v1473
    %1645 = vmatpush.msra.mxu0 %v1469
    %1646 = vmatmul.f32.gmra.mxu0 %v1264
    %v1647 = vpop.f32.mrf.mxu0
    %v1648 = vadd.f32 %v1619, %v1647
    %1649 = vmatmul.f32.gmra.mxu0 %v1268
    %v1650 = vpop.f32.mrf.mxu0
    %v1651 = vadd.f32 %v1622, %v1650
    %1652 = vmatmul.f32.gmra.mxu0 %v1272
    %v1653 = vpop.f32.mrf.mxu0
    %v1654 = vadd.f32 %v1625, %v1653
    %1655 = vmatmul.f32.gmra.mxu0 %v1276
    %v1656 = vpop.f32.mrf.mxu0
    %v1657 = vadd.f32 %v1628, %v1656
    %1658 = vdwg.mxu0
    %1659 = vmatpush.msra.mxu0 %v1338
    %1660 = vmatpush.msra.mxu0 %v1334
    %1661 = vmatpush.msra.mxu0 %v1330
    %1662 = vmatpush.msra.mxu0 %v1326
    %1663 = vmatpush.msra.mxu0 %v1322
    %1664 = vmatpush.msra.mxu0 %v1318
    %1665 = vmatpush.msra.mxu0 %v1314
    %1666 = vmatpush.msra.mxu0 %v1310
    %1667 = vmatpush.msra.mxu0 %v1306
    %1668 = vmatpush.msra.mxu0 %v1302
    %1669 = vmatpush.msra.mxu0 %v1298
    %1670 = vmatpush.msra.mxu0 %v1294
    %1671 = vmatpush.msra.mxu0 %v1290
    %1672 = vmatpush.msra.mxu0 %v1286
    %1673 = vmatpush.msra.mxu0 %v1282
    %1674 = vmatpush.msra.mxu0 %v1278
    %1675 = vmatmul.f32.gmra.mxu0 %v1261
    %v1676 = vpop.f32.mrf.mxu0
    %v1677 = vadd.f32 %v1536, %v1676
    %1678 = vmatmul.f32.gmra.mxu0 %v1265
    %v1679 = vpop.f32.mrf.mxu0
    %v1680 = vadd.f32 %v1536, %v1679
    %1681 = vmatmul.f32.gmra.mxu0 %v1269
    %v1682 = vpop.f32.mrf.mxu0
    %v1683 = vadd.f32 %v1536, %v1682
    %1684 = vmatmul.f32.gmra.mxu0 %v1273
    %v1685 = vpop.f32.mrf.mxu0
    %v1686 = vadd.f32 %v1536, %v1685
    %1687 = vdwg.mxu0
    %1688 = vmatpush.msra.mxu0 %v1402
    %1689 = vmatpush.msra.mxu0 %v1398
    %1690 = vmatpush.msra.mxu0 %v1394
    %1691 = vmatpush.msra.mxu0 %v1390
    %1692 = vmatpush.msra.mxu0 %v1386
    %1693 = vmatpush.msra.mxu0 %v1382
    %1694 = vmatpush.msra.mxu0 %v1378
    %1695 = vmatpush.msra.mxu0 %v1374
    %1696 = vmatpush.msra.mxu0 %v1370
    %1697 = vmatpush.msra.mxu0 %v1366
    %1698 = vmatpush.msra.mxu0 %v1362
    %1699 = vmatpush.msra.mxu0 %v1358
    %1700 = vmatpush.msra.mxu0 %v1354
    %1701 = vmatpush.msra.mxu0 %v1350
    %1702 = vmatpush.msra.mxu0 %v1346
    %1703 = vmatpush.msra.mxu0 %v1342
    %1704 = vmatmul.f32.gmra.mxu0 %v1262
    %v1705 = vpop.f32.mrf.mxu0
    %v1706 = vadd.f32 %v1677, %v1705
    %1707 = vmatmul.f32.gmra.mxu0 %v1266
    %v1708 = vpop.f32.mrf.mxu0
    %v1709 = vadd.f32 %v1680, %v1708
    %1710 = vmatmul.f32.gmra.mxu0 %v1270
    %v1711 = vpop.f32.mrf.mxu0
    %v1712 = vadd.f32 %v1683, %v1711
    %1713 = vmatmul.f32.gmra.mxu0 %v1274
    %v1714 = vpop.f32.mrf.mxu0
    %v1715 = vadd.f32 %v1686, %v1714
    %1716 = vdwg.mxu0
    %1717 = vmatpush.msra.mxu0 %v1466
    %1718 = vmatpush.msra.mxu0 %v1462
    %1719 = vmatpush.msra.mxu0 %v1458
    %1720 = vmatpush.msra.mxu0 %v1454
    %1721 = vmatpush.msra.mxu0 %v1450
    %1722 = vmatpush.msra.mxu0 %v1446
    %1723 = vmatpush.msra.mxu0 %v1442
    %1724 = vmatpush.msra.mxu0 %v1438
    %1725 = vmatpush.msra.mxu0 %v1434
    %1726 = vmatpush.msra.mxu0 %v1430
    %1727 = vmatpush.msra.mxu0 %v1426
    %1728 = vmatpush.msra.mxu0 %v1422
    %1729 = vmatpush.msra.mxu0 %v1418
    %1730 = vmatpush.msra.mxu0 %v1414
    %1731 = vmatpush.msra.mxu0 %v1410
    %1732 = vmatpush.msra.mxu0 %v1406
    %1733 = vmatmul.f32.gmra.mxu0 %v1263
    %v1734 = vpop.f32.mrf.mxu0
    %v1735 = vadd.f32 %v1706, %v1734
    %1736 = vmatmul.f32.gmra.mxu0 %v1267
    %v1737 = vpop.f32.mrf.mxu0
    %v1738 = vadd.f32 %v1709, %v1737
    %1739 = vmatmul.f32.gmra.mxu0 %v1271
    %v1740 = vpop.f32.mrf.mxu0
    %v1741 = vadd.f32 %v1712, %v1740
    %1742 = vmatmul.f32.gmra.mxu0 %v1275
    %v1743 = vpop.f32.mrf.mxu0
    %v1744 = vadd.f32 %v1715, %v1743
    %1745 = vdwg.mxu0
    %1746 = vmatpush.msra.mxu0 %v1530
    %1747 = vmatpush.msra.mxu0 %v1526
    %1748 = vmatpush.msra.mxu0 %v1522
    %1749 = vmatpush.msra.mxu0 %v1518
    %1750 = vmatpush.msra.mxu0 %v1514
    %1751 = vmatpush.msra.mxu0 %v1510
    %1752 = vmatpush.msra.mxu0 %v1506
    %1753 = vmatpush.msra.mxu0 %v1502
    %1754 = vmatpush.msra.mxu0 %v1498
    %1755 = vmatpush.msra.mxu0 %v1494
    %1756 = vmatpush.msra.mxu0 %v1490
    %1757 = vmatpush.msra.mxu0 %v1486
    %1758 = vmatpush.msra.mxu0 %v1482
    %1759 = vmatpush.msra.mxu0 %v1478
    %1760 = vmatpush.msra.mxu0 %v1474
    %1761 = vmatpush.msra.mxu0 %v1470
    %1762 = vmatmul.f32.gmra.mxu0 %v1264
    %v1763 = vpop.f32.mrf.mxu0
    %v1764 = vadd.f32 %v1735, %v1763
    %1765 = vmatmul.f32.gmra.mxu0 %v1268
    %v1766 = vpop.f32.mrf.mxu0
    %v1767 = vadd.f32 %v1738, %v1766
    %1768 = vmatmul.f32.gmra.mxu0 %v1272
    %v1769 = vpop.f32.mrf.mxu0
    %v1770 = vadd.f32 %v1741, %v1769
    %1771 = vmatmul.f32.gmra.mxu0 %v1276
    %v1772 = vpop.f32.mrf.mxu0
    %v1773 = vadd.f32 %v1744, %v1772
    %1774 = vdwg.mxu0
    %1775 = vmatpush.msra.mxu0 %v1339
    %1776 = vmatpush.msra.mxu0 %v1335
    %1777 = vmatpush.msra.mxu0 %v1331
    %1778 = vmatpush.msra.mxu0 %v1327
    %1779 = vmatpush.msra.mxu0 %v1323
    %1780 = vmatpush.msra.mxu0 %v1319
    %1781 = vmatpush.msra.mxu0 %v1315
    %1782 = vmatpush.msra.mxu0 %v1311
    %1783 = vmatpush.msra.mxu0 %v1307
    %1784 = vmatpush.msra.mxu0 %v1303
    %1785 = vmatpush.msra.mxu0 %v1299
    %1786 = vmatpush.msra.mxu0 %v1295
    %1787 = vmatpush.msra.mxu0 %v1291
    %1788 = vmatpush.msra.mxu0 %v1287
    %1789 = vmatpush.msra.mxu0 %v1283
    %1790 = vmatpush.msra.mxu0 %v1279
    %1791 = vmatmul.f32.gmra.mxu0 %v1261
    %v1792 = vpop.f32.mrf.mxu0
    %v1793 = vadd.f32 %v1537, %v1792
    %1794 = vmatmul.f32.gmra.mxu0 %v1265
    %v1795 = vpop.f32.mrf.mxu0
    %v1796 = vadd.f32 %v1537, %v1795
    %1797 = vmatmul.f32.gmra.mxu0 %v1269
    %v1798 = vpop.f32.mrf.mxu0
    %v1799 = vadd.f32 %v1537, %v1798
    %1800 = vmatmul.f32.gmra.mxu0 %v1273
    %v1801 = vpop.f32.mrf.mxu0
    %v1802 = vadd.f32 %v1537, %v1801
    %1803 = vdwg.mxu0
    %1804 = vmatpush.msra.mxu0 %v1403
    %1805 = vmatpush.msra.mxu0 %v1399
    %1806 = vmatpush.msra.mxu0 %v1395
    %1807 = vmatpush.msra.mxu0 %v1391
    %1808 = vmatpush.msra.mxu0 %v1387
    %1809 = vmatpush.msra.mxu0 %v1383
    %1810 = vmatpush.msra.mxu0 %v1379
    %1811 = vmatpush.msra.mxu0 %v1375
    %1812 = vmatpush.msra.mxu0 %v1371
    %1813 = vmatpush.msra.mxu0 %v1367
    %1814 = vmatpush.msra.mxu0 %v1363
    %1815 = vmatpush.msra.mxu0 %v1359
    %1816 = vmatpush.msra.mxu0 %v1355
    %1817 = vmatpush.msra.mxu0 %v1351
    %1818 = vmatpush.msra.mxu0 %v1347
    %1819 = vmatpush.msra.mxu0 %v1343
    %1820 = vmatmul.f32.gmra.mxu0 %v1262
    %v1821 = vpop.f32.mrf.mxu0
    %v1822 = vadd.f32 %v1793, %v1821
    %1823 = vmatmul.f32.gmra.mxu0 %v1266
    %v1824 = vpop.f32.mrf.mxu0
    %v1825 = vadd.f32 %v1796, %v1824
    %1826 = vmatmul.f32.gmra.mxu0 %v1270
    %v1827 = vpop.f32.mrf.mxu0
    %v1828 = vadd.f32 %v1799, %v1827
    %1829 = vmatmul.f32.gmra.mxu0 %v1274
    %v1830 = vpop.f32.mrf.mxu0
    %v1831 = vadd.f32 %v1802, %v1830
    %1832 = vdwg.mxu0
    %1833 = vmatpush.msra.mxu0 %v1467
    %1834 = vmatpush.msra.mxu0 %v1463
    %1835 = vmatpush.msra.mxu0 %v1459
    %1836 = vmatpush.msra.mxu0 %v1455
    %1837 = vmatpush.msra.mxu0 %v1451
    %1838 = vmatpush.msra.mxu0 %v1447
    %1839 = vmatpush.msra.mxu0 %v1443
    %1840 = vmatpush.msra.mxu0 %v1439
    %1841 = vmatpush.msra.mxu0 %v1435
    %1842 = vmatpush.msra.mxu0 %v1431
    %1843 = vmatpush.msra.mxu0 %v1427
    %1844 = vmatpush.msra.mxu0 %v1423
    %1845 = vmatpush.msra.mxu0 %v1419
    %1846 = vmatpush.msra.mxu0 %v1415
    %1847 = vmatpush.msra.mxu0 %v1411
    %1848 = vmatpush.msra.mxu0 %v1407
    %1849 = vmatmul.f32.gmra.mxu0 %v1263
    %v1850 = vpop.f32.mrf.mxu0
    %v1851 = vadd.f32 %v1822, %v1850
    %1852 = vmatmul.f32.gmra.mxu0 %v1267
    %v1853 = vpop.f32.mrf.mxu0
    %v1854 = vadd.f32 %v1825, %v1853
    %1855 = vmatmul.f32.gmra.mxu0 %v1271
    %v1856 = vpop.f32.mrf.mxu0
    %v1857 = vadd.f32 %v1828, %v1856
    %1858 = vmatmul.f32.gmra.mxu0 %v1275
    %v1859 = vpop.f32.mrf.mxu0
    %v1860 = vadd.f32 %v1831, %v1859
    %1861 = vdwg.mxu0
    %1862 = vmatpush.msra.mxu0 %v1531
    %1863 = vmatpush.msra.mxu0 %v1527
    %1864 = vmatpush.msra.mxu0 %v1523
    %1865 = vmatpush.msra.mxu0 %v1519
    %1866 = vmatpush.msra.mxu0 %v1515
    %1867 = vmatpush.msra.mxu0 %v1511
    %1868 = vmatpush.msra.mxu0 %v1507
    %1869 = vmatpush.msra.mxu0 %v1503
    %1870 = vmatpush.msra.mxu0 %v1499
    %1871 = vmatpush.msra.mxu0 %v1495
    %1872 = vmatpush.msra.mxu0 %v1491
    %1873 = vmatpush.msra.mxu0 %v1487
    %1874 = vmatpush.msra.mxu0 %v1483
    %1875 = vmatpush.msra.mxu0 %v1479
    %1876 = vmatpush.msra.mxu0 %v1475
    %1877 = vmatpush.msra.mxu0 %v1471
    %1878 = vmatmul.f32.gmra.mxu0 %v1264
    %v1879 = vpop.f32.mrf.mxu0
    %v1880 = vadd.f32 %v1851, %v1879
    %1881 = vmatmul.f32.gmra.mxu0 %v1268
    %v1882 = vpop.f32.mrf.mxu0
    %v1883 = vadd.f32 %v1854, %v1882
    %1884 = vmatmul.f32.gmra.mxu0 %v1272
    %v1885 = vpop.f32.mrf.mxu0
    %v1886 = vadd.f32 %v1857, %v1885
    %1887 = vmatmul.f32.gmra.mxu0 %v1276
    %v1888 = vpop.f32.mrf.mxu0
    %v1889 = vadd.f32 %v1860, %v1888
    %1890 = vdwg.mxu0
    %1891 = vmatpush.msra.mxu0 %v1340
    %1892 = vmatpush.msra.mxu0 %v1336
    %1893 = vmatpush.msra.mxu0 %v1332
    %1894 = vmatpush.msra.mxu0 %v1328
    %1895 = vmatpush.msra.mxu0 %v1324
    %1896 = vmatpush.msra.mxu0 %v1320
    %1897 = vmatpush.msra.mxu0 %v1316
    %1898 = vmatpush.msra.mxu0 %v1312
    %1899 = vmatpush.msra.mxu0 %v1308
    %1900 = vmatpush.msra.mxu0 %v1304
    %1901 = vmatpush.msra.mxu0 %v1300
    %1902 = vmatpush.msra.mxu0 %v1296
    %1903 = vmatpush.msra.mxu0 %v1292
    %1904 = vmatpush.msra.mxu0 %v1288
    %1905 = vmatpush.msra.mxu0 %v1284
    %1906 = vmatpush.msra.mxu0 %v1280
    %1907 = vmatmul.f32.gmra.mxu0 %v1261
    %v1908 = vpop.f32.mrf.mxu0
    %v1909 = vadd.f32 %v1538, %v1908
    %1910 = vmatmul.f32.gmra.mxu0 %v1265
    %v1911 = vpop.f32.mrf.mxu0
    %v1912 = vadd.f32 %v1538, %v1911
    %1913 = vmatmul.f32.gmra.mxu0 %v1269
    %v1914 = vpop.f32.mrf.mxu0
    %v1915 = vadd.f32 %v1538, %v1914
    %1916 = vmatmul.f32.gmra.mxu0 %v1273
    %v1917 = vpop.f32.mrf.mxu0
    %v1918 = vadd.f32 %v1538, %v1917
    %1919 = vdwg.mxu0
    %1920 = vmatpush.msra.mxu0 %v1404
    %1921 = vmatpush.msra.mxu0 %v1400
    %1922 = vmatpush.msra.mxu0 %v1396
    %1923 = vmatpush.msra.mxu0 %v1392
    %1924 = vmatpush.msra.mxu0 %v1388
    %1925 = vmatpush.msra.mxu0 %v1384
    %1926 = vmatpush.msra.mxu0 %v1380
    %1927 = vmatpush.msra.mxu0 %v1376
    %1928 = vmatpush.msra.mxu0 %v1372
    %1929 = vmatpush.msra.mxu0 %v1368
    %1930 = vmatpush.msra.mxu0 %v1364
    %1931 = vmatpush.msra.mxu0 %v1360
    %1932 = vmatpush.msra.mxu0 %v1356
    %1933 = vmatpush.msra.mxu0 %v1352
    %1934 = vmatpush.msra.mxu0 %v1348
    %1935 = vmatpush.msra.mxu0 %v1344
    %1936 = vmatmul.f32.gmra.mxu0 %v1262
    %v1937 = vpop.f32.mrf.mxu0
    %v1938 = vadd.f32 %v1909, %v1937
    %1939 = vmatmul.f32.gmra.mxu0 %v1266
    %v1940 = vpop.f32.mrf.mxu0
    %v1941 = vadd.f32 %v1912, %v1940
    %1942 = vmatmul.f32.gmra.mxu0 %v1270
    %v1943 = vpop.f32.mrf.mxu0
    %v1944 = vadd.f32 %v1915, %v1943
    %1945 = vmatmul.f32.gmra.mxu0 %v1274
    %v1946 = vpop.f32.mrf.mxu0
    %v1947 = vadd.f32 %v1918, %v1946
    %1948 = vdwg.mxu0
    %1949 = vmatpush.msra.mxu0 %v1468
    %1950 = vmatpush.msra.mxu0 %v1464
    %1951 = vmatpush.msra.mxu0 %v1460
    %1952 = vmatpush.msra.mxu0 %v1456
    %1953 = vmatpush.msra.mxu0 %v1452
    %1954 = vmatpush.msra.mxu0 %v1448
    %1955 = vmatpush.msra.mxu0 %v1444
    %1956 = vmatpush.msra.mxu0 %v1440
    %1957 = vmatpush.msra.mxu0 %v1436
    %1958 = vmatpush.msra.mxu0 %v1432
    %1959 = vmatpush.msra.mxu0 %v1428
    %1960 = vmatpush.msra.mxu0 %v1424
    %1961 = vmatpush.msra.mxu0 %v1420
    %1962 = vmatpush.msra.mxu0 %v1416
    %1963 = vmatpush.msra.mxu0 %v1412
    %1964 = vmatpush.msra.mxu0 %v1408
    %1965 = vmatmul.f32.gmra.mxu0 %v1263
    %v1966 = vpop.f32.mrf.mxu0
    %v1967 = vadd.f32 %v1938, %v1966
    %1968 = vmatmul.f32.gmra.mxu0 %v1267
    %v1969 = vpop.f32.mrf.mxu0
    %v1970 = vadd.f32 %v1941, %v1969
    %1971 = vmatmul.f32.gmra.mxu0 %v1271
    %v1972 = vpop.f32.mrf.mxu0
    %v1973 = vadd.f32 %v1944, %v1972
    %1974 = vmatmul.f32.gmra.mxu0 %v1275
    %v1975 = vpop.f32.mrf.mxu0
    %v1976 = vadd.f32 %v1947, %v1975
    %1977 = vdwg.mxu0
    %1978 = vmatpush.msra.mxu0 %v1532
    %1979 = vmatpush.msra.mxu0 %v1528
    %1980 = vmatpush.msra.mxu0 %v1524
    %1981 = vmatpush.msra.mxu0 %v1520
    %1982 = vmatpush.msra.mxu0 %v1516
    %1983 = vmatpush.msra.mxu0 %v1512
    %1984 = vmatpush.msra.mxu0 %v1508
    %1985 = vmatpush.msra.mxu0 %v1504
    %1986 = vmatpush.msra.mxu0 %v1500
    %1987 = vmatpush.msra.mxu0 %v1496
    %1988 = vmatpush.msra.mxu0 %v1492
    %1989 = vmatpush.msra.mxu0 %v1488
    %1990 = vmatpush.msra.mxu0 %v1484
    %1991 = vmatpush.msra.mxu0 %v1480
    %1992 = vmatpush.msra.mxu0 %v1476
    %1993 = vmatpush.msra.mxu0 %v1472
    %1994 = vmatmul.f32.gmra.mxu0 %v1264
    %v1995 = vpop.f32.mrf.mxu0
    %v1996 = vadd.f32 %v1967, %v1995
    %1997 = vmatmul.f32.gmra.mxu0 %v1268
    %v1998 = vpop.f32.mrf.mxu0
    %v1999 = vadd.f32 %v1970, %v1998
    %2000 = vmatmul.f32.gmra.mxu0 %v1272
    %v2001 = vpop.f32.mrf.mxu0
    %v2002 = vadd.f32 %v1973, %v2001
    %2003 = vmatmul.f32.gmra.mxu0 %v1276
    %v2004 = vpop.f32.mrf.mxu0
    %v2005 = vadd.f32 %v1976, %v2004
    %2006 = vdwg.mxu0
    %v2007 = vmax.f32 %v1648, 0.0
    %v2008 = vmax.f32 %v1764, 0.0
    %v2009 = vmax.f32 %v1880, 0.0
    %v2010 = vmax.f32 %v1996, 0.0
    %v2011 = vmax.f32 %v1651, 0.0
    %v2012 = vmax.f32 %v1767, 0.0
    %v2013 = vmax.f32 %v1883, 0.0
    %v2014 = vmax.f32 %v1999, 0.0
    %v2015 = vmax.f32 %v1654, 0.0
    %v2016 = vmax.f32 %v1770, 0.0
    %v2017 = vmax.f32 %v1886, 0.0
    %v2018 = vmax.f32 %v2002, 0.0
    %v2019 = vmax.f32 %v1657, 0.0
    %v2020 = vmax.f32 %v1773, 0.0
    %v2021 = vmax.f32 %v1889, 0.0
    %v2022 = vmax.f32 %v2005, 0.0
    %v2023 = vld [vmem:[#allocation24] sm:$0xff]
    %v2024 = vld [vmem:[#allocation24 + $0x8] sm:$0xff]
    %v2025 = vld [vmem:[#allocation24 + $0x10] sm:$0xff]
    %v2026 = vld [vmem:[#allocation24 + $0x18] sm:$0xff]
    %v2027 = vld [vmem:[#allocation24 + $0x20] sm:$0xff]
    %v2028 = vld [vmem:[#allocation24 + $0x28] sm:$0xff]
    %v2029 = vld [vmem:[#allocation24 + $0x30] sm:$0xff]
    %v2030 = vld [vmem:[#allocation24 + $0x38] sm:$0xff]
    %v2031 = vld [vmem:[#allocation24 + $0x40] sm:$0xff]
    %v2032 = vld [vmem:[#allocation24 + $0x48] sm:$0xff]
    %v2033 = vld [vmem:[#allocation24 + $0x50] sm:$0xff]
    %v2034 = vld [vmem:[#allocation24 + $0x58] sm:$0xff]
    %v2035 = vld [vmem:[#allocation24 + $0x60] sm:$0xff]
    %v2036 = vld [vmem:[#allocation24 + $0x68] sm:$0xff]
    %v2037 = vld [vmem:[#allocation24 + $0x70] sm:$0xff]
    %v2038 = vld [vmem:[#allocation24 + $0x78] sm:$0xff]
    %v2039 = vld [vmem:[#allocation24 + $0x80] sm:$0xff]
    %v2040 = vld [vmem:[#allocation24 + $0x88] sm:$0xff]
    %v2041 = vld [vmem:[#allocation24 + $0x90] sm:$0xff]
    %v2042 = vld [vmem:[#allocation24 + $0x98] sm:$0xff]
    %v2043 = vld [vmem:[#allocation24 + $0xa0] sm:$0xff]
    %v2044 = vld [vmem:[#allocation24 + $0xa8] sm:$0xff]
    %v2045 = vld [vmem:[#allocation24 + $0xb0] sm:$0xff]
    %v2046 = vld [vmem:[#allocation24 + $0xb8] sm:$0xff]
    %v2047 = vld [vmem:[#allocation24 + $0xc0] sm:$0xff]
    %v2048 = vld [vmem:[#allocation24 + $0xc8] sm:$0xff]
    %v2049 = vld [vmem:[#allocation24 + $0xd0] sm:$0xff]
    %v2050 = vld [vmem:[#allocation24 + $0xd8] sm:$0xff]
    %v2051 = vld [vmem:[#allocation24 + $0xe0] sm:$0xff]
    %v2052 = vld [vmem:[#allocation24 + $0xe8] sm:$0xff]
    %v2053 = vld [vmem:[#allocation24 + $0xf0] sm:$0xff]
    %v2054 = vld [vmem:[#allocation24 + $0xf8] sm:$0xff]
    %v2055 = vld [vmem:[#allocation24 + $0x100] sm:$0xff]
    %v2056 = vld [vmem:[#allocation24 + $0x108] sm:$0xff]
    %v2057 = vld [vmem:[#allocation24 + $0x110] sm:$0xff]
    %v2058 = vld [vmem:[#allocation24 + $0x118] sm:$0xff]
    %v2059 = vld [vmem:[#allocation24 + $0x120] sm:$0xff]
    %v2060 = vld [vmem:[#allocation24 + $0x128] sm:$0xff]
    %v2061 = vld [vmem:[#allocation24 + $0x130] sm:$0xff]
    %v2062 = vld [vmem:[#allocation24 + $0x138] sm:$0xff]
    %v2063 = vld [vmem:[#allocation24 + $0x140] sm:$0xff]
    %v2064 = vld [vmem:[#allocation24 + $0x148] sm:$0xff]
    %v2065 = vld [vmem:[#allocation24 + $0x150] sm:$0xff]
    %v2066 = vld [vmem:[#allocation24 + $0x158] sm:$0xff]
    %v2067 = vld [vmem:[#allocation24 + $0x160] sm:$0xff]
    %v2068 = vld [vmem:[#allocation24 + $0x168] sm:$0xff]
    %v2069 = vld [vmem:[#allocation24 + $0x170] sm:$0xff]
    %v2070 = vld [vmem:[#allocation24 + $0x178] sm:$0xff]
    %v2071 = vld [vmem:[#allocation24 + $0x180] sm:$0xff]
    %v2072 = vld [vmem:[#allocation24 + $0x188] sm:$0xff]
    %v2073 = vld [vmem:[#allocation24 + $0x190] sm:$0xff]
    %v2074 = vld [vmem:[#allocation24 + $0x198] sm:$0xff]
    %v2075 = vld [vmem:[#allocation24 + $0x1a0] sm:$0xff]
    %v2076 = vld [vmem:[#allocation24 + $0x1a8] sm:$0xff]
    %v2077 = vld [vmem:[#allocation24 + $0x1b0] sm:$0xff]
    %v2078 = vld [vmem:[#allocation24 + $0x1b8] sm:$0xff]
    %v2079 = vld [vmem:[#allocation24 + $0x1c0] sm:$0xff]
    %v2080 = vld [vmem:[#allocation24 + $0x1c8] sm:$0xff]
    %v2081 = vld [vmem:[#allocation24 + $0x1d0] sm:$0xff]
    %v2082 = vld [vmem:[#allocation24 + $0x1d8] sm:$0xff]
    %v2083 = vld [vmem:[#allocation24 + $0x1e0] sm:$0xff]
    %v2084 = vld [vmem:[#allocation24 + $0x1e8] sm:$0xff]
    %v2085 = vld [vmem:[#allocation24 + $0x1f0] sm:$0xff]
    %v2086 = vld [vmem:[#allocation24 + $0x1f8] sm:$0xff]
    %v2087 = vld [vmem:[#allocation2] sm:$0x1]
    %v2089 = vperm.slane %v2087, 0
    %2091 = vmatpush.msra.mxu0 %v2038
    %2092 = vmatpush.msra.mxu0 %v2037
    %2093 = vmatpush.msra.mxu0 %v2036
    %2094 = vmatpush.msra.mxu0 %v2035
    %2095 = vmatpush.msra.mxu0 %v2034
    %2096 = vmatpush.msra.mxu0 %v2033
    %2097 = vmatpush.msra.mxu0 %v2032
    %2098 = vmatpush.msra.mxu0 %v2031
    %2099 = vmatpush.msra.mxu0 %v2030
    %2100 = vmatpush.msra.mxu0 %v2029
    %2101 = vmatpush.msra.mxu0 %v2028
    %2102 = vmatpush.msra.mxu0 %v2027
    %2103 = vmatpush.msra.mxu0 %v2026
    %2104 = vmatpush.msra.mxu0 %v2025
    %2105 = vmatpush.msra.mxu0 %v2024
    %2106 = vmatpush.msra.mxu0 %v2023
    %2107 = vmatmul.f32.gmra.mxu0 %v2007
    %v2108 = vpop.f32.mrf.mxu0
    %v2109 = vadd.f32 %v2089, %v2108
    %2110 = vmatmul.f32.gmra.mxu0 %v2011
    %v2111 = vpop.f32.mrf.mxu0
    %v2112 = vadd.f32 %v2089, %v2111
    %2113 = vmatmul.f32.gmra.mxu0 %v2015
    %v2114 = vpop.f32.mrf.mxu0
    %v2115 = vadd.f32 %v2089, %v2114
    %2116 = vmatmul.f32.gmra.mxu0 %v2019
    %v2117 = vpop.f32.mrf.mxu0
    %v2118 = vadd.f32 %v2089, %v2117
    %2119 = vdwg.mxu0
    %2120 = vmatpush.msra.mxu0 %v2054
    %2121 = vmatpush.msra.mxu0 %v2053
    %2122 = vmatpush.msra.mxu0 %v2052
    %2123 = vmatpush.msra.mxu0 %v2051
    %2124 = vmatpush.msra.mxu0 %v2050
    %2125 = vmatpush.msra.mxu0 %v2049
    %2126 = vmatpush.msra.mxu0 %v2048
    %2127 = vmatpush.msra.mxu0 %v2047
    %2128 = vmatpush.msra.mxu0 %v2046
    %2129 = vmatpush.msra.mxu0 %v2045
    %2130 = vmatpush.msra.mxu0 %v2044
    %2131 = vmatpush.msra.mxu0 %v2043
    %2132 = vmatpush.msra.mxu0 %v2042
    %2133 = vmatpush.msra.mxu0 %v2041
    %2134 = vmatpush.msra.mxu0 %v2040
    %2135 = vmatpush.msra.mxu0 %v2039
    %2136 = vmatmul.f32.gmra.mxu0 %v2008
    %v2137 = vpop.f32.mrf.mxu0
    %v2138 = vadd.f32 %v2109, %v2137
    %2139 = vmatmul.f32.gmra.mxu0 %v2012
    %v2140 = vpop.f32.mrf.mxu0
    %v2141 = vadd.f32 %v2112, %v2140
    %2142 = vmatmul.f32.gmra.mxu0 %v2016
    %v2143 = vpop.f32.mrf.mxu0
    %v2144 = vadd.f32 %v2115, %v2143
    %2145 = vmatmul.f32.gmra.mxu0 %v2020
    %v2146 = vpop.f32.mrf.mxu0
    %v2147 = vadd.f32 %v2118, %v2146
    %2148 = vdwg.mxu0
    %2149 = vmatpush.msra.mxu0 %v2070
    %2150 = vmatpush.msra.mxu0 %v2069
    %2151 = vmatpush.msra.mxu0 %v2068
    %2152 = vmatpush.msra.mxu0 %v2067
    %2153 = vmatpush.msra.mxu0 %v2066
    %2154 = vmatpush.msra.mxu0 %v2065
    %2155 = vmatpush.msra.mxu0 %v2064
    %2156 = vmatpush.msra.mxu0 %v2063
    %2157 = vmatpush.msra.mxu0 %v2062
    %2158 = vmatpush.msra.mxu0 %v2061
    %2159 = vmatpush.msra.mxu0 %v2060
    %2160 = vmatpush.msra.mxu0 %v2059
    %2161 = vmatpush.msra.mxu0 %v2058
    %2162 = vmatpush.msra.mxu0 %v2057
    %2163 = vmatpush.msra.mxu0 %v2056
    %2164 = vmatpush.msra.mxu0 %v2055
    %2165 = vmatmul.f32.gmra.mxu0 %v2009
    %v2166 = vpop.f32.mrf.mxu0
    %v2167 = vadd.f32 %v2138, %v2166
    %2168 = vmatmul.f32.gmra.mxu0 %v2013
    %v2169 = vpop.f32.mrf.mxu0
    %v2170 = vadd.f32 %v2141, %v2169
    %2171 = vmatmul.f32.gmra.mxu0 %v2017
    %v2172 = vpop.f32.mrf.mxu0
    %v2173 = vadd.f32 %v2144, %v2172
    %2174 = vmatmul.f32.gmra.mxu0 %v2021
    %v2175 = vpop.f32.mrf.mxu0
    %v2176 = vadd.f32 %v2147, %v2175
    %2177 = vdwg.mxu0
    %2178 = vmatpush.msra.mxu0 %v2086
    %2179 = vmatpush.msra.mxu0 %v2085
    %2180 = vmatpush.msra.mxu0 %v2084
    %2181 = vmatpush.msra.mxu0 %v2083
    %2182 = vmatpush.msra.mxu0 %v2082
    %2183 = vmatpush.msra.mxu0 %v2081
    %2184 = vmatpush.msra.mxu0 %v2080
    %2185 = vmatpush.msra.mxu0 %v2079
    %2186 = vmatpush.msra.mxu0 %v2078
    %2187 = vmatpush.msra.mxu0 %v2077
    %2188 = vmatpush.msra.mxu0 %v2076
    %2189 = vmatpush.msra.mxu0 %v2075
    %2190 = vmatpush.msra.mxu0 %v2074
    %2191 = vmatpush.msra.mxu0 %v2073
    %2192 = vmatpush.msra.mxu0 %v2072
    %2193 = vmatpush.msra.mxu0 %v2071
    %2194 = vmatmul.f32.gmra.mxu0 %v2010
    %v2195 = vpop.f32.mrf.mxu0
    %v2196 = vadd.f32 %v2167, %v2195
    %2197 = vmatmul.f32.gmra.mxu0 %v2014
    %v2198 = vpop.f32.mrf.mxu0
    %v2199 = vadd.f32 %v2170, %v2198
    %2200 = vmatmul.f32.gmra.mxu0 %v2018
    %v2201 = vpop.f32.mrf.mxu0
    %v2202 = vadd.f32 %v2173, %v2201
    %2203 = vmatmul.f32.gmra.mxu0 %v2022
    %v2204 = vpop.f32.mrf.mxu0
    %v2205 = vadd.f32 %v2176, %v2204
    %2206 = vdwg.mxu0
    %v2207 = vld [vmem:[#allocation25] sm:$0xff]
    %v2208 = vld [vmem:[#allocation25 + $0x8] sm:$0xff]
    %v2209 = vld [vmem:[#allocation25 + $0x10] sm:$0xff]
    %v2210 = vld [vmem:[#allocation25 + $0x18] sm:$0xff]
    %v2211 = vld [vmem:[#allocation25 + $0x20] sm:$0xff]
    %v2212 = vld [vmem:[#allocation25 + $0x28] sm:$0xff]
    %v2213 = vld [vmem:[#allocation25 + $0x30] sm:$0xff]
    %v2214 = vld [vmem:[#allocation25 + $0x38] sm:$0xff]
    %v2215 = vld [vmem:[#allocation25 + $0x40] sm:$0xff]
    %v2216 = vld [vmem:[#allocation25 + $0x48] sm:$0xff]
    %v2217 = vld [vmem:[#allocation25 + $0x50] sm:$0xff]
    %v2218 = vld [vmem:[#allocation25 + $0x58] sm:$0xff]
    %v2219 = vld [vmem:[#allocation25 + $0x60] sm:$0xff]
    %v2220 = vld [vmem:[#allocation25 + $0x68] sm:$0xff]
    %v2221 = vld [vmem:[#allocation25 + $0x70] sm:$0xff]
    %v2222 = vld [vmem:[#allocation25 + $0x78] sm:$0xff]
    %v2223 = vld [vmem:[#allocation25 + $0x80] sm:$0xff]
    %v2224 = vld [vmem:[#allocation25 + $0x88] sm:$0xff]
    %v2225 = vld [vmem:[#allocation25 + $0x90] sm:$0xff]
    %v2226 = vld [vmem:[#allocation25 + $0x98] sm:$0xff]
    %v2227 = vld [vmem:[#allocation25 + $0xa0] sm:$0xff]
    %v2228 = vld [vmem:[#allocation25 + $0xa8] sm:$0xff]
    %v2229 = vld [vmem:[#allocation25 + $0xb0] sm:$0xff]
    %v2230 = vld [vmem:[#allocation25 + $0xb8] sm:$0xff]
    %v2231 = vld [vmem:[#allocation25 + $0xc0] sm:$0xff]
    %v2232 = vld [vmem:[#allocation25 + $0xc8] sm:$0xff]
    %v2233 = vld [vmem:[#allocation25 + $0xd0] sm:$0xff]
    %v2234 = vld [vmem:[#allocation25 + $0xd8] sm:$0xff]
    %v2235 = vld [vmem:[#allocation25 + $0xe0] sm:$0xff]
    %v2236 = vld [vmem:[#allocation25 + $0xe8] sm:$0xff]
    %v2237 = vld [vmem:[#allocation25 + $0xf0] sm:$0xff]
    %v2238 = vld [vmem:[#allocation25 + $0xf8] sm:$0xff]
    %v2239 = vld [vmem:[#allocation25 + $0x100] sm:$0xff]
    %v2240 = vld [vmem:[#allocation25 + $0x108] sm:$0xff]
    %v2241 = vld [vmem:[#allocation25 + $0x110] sm:$0xff]
    %v2242 = vld [vmem:[#allocation25 + $0x118] sm:$0xff]
    %v2243 = vld [vmem:[#allocation25 + $0x120] sm:$0xff]
    %v2244 = vld [vmem:[#allocation25 + $0x128] sm:$0xff]
    %v2245 = vld [vmem:[#allocation25 + $0x130] sm:$0xff]
    %v2246 = vld [vmem:[#allocation25 + $0x138] sm:$0xff]
    %v2247 = vld [vmem:[#allocation25 + $0x140] sm:$0xff]
    %v2248 = vld [vmem:[#allocation25 + $0x148] sm:$0xff]
    %v2249 = vld [vmem:[#allocation25 + $0x150] sm:$0xff]
    %v2250 = vld [vmem:[#allocation25 + $0x158] sm:$0xff]
    %v2251 = vld [vmem:[#allocation25 + $0x160] sm:$0xff]
    %v2252 = vld [vmem:[#allocation25 + $0x168] sm:$0xff]
    %v2253 = vld [vmem:[#allocation25 + $0x170] sm:$0xff]
    %v2254 = vld [vmem:[#allocation25 + $0x178] sm:$0xff]
    %v2255 = vld [vmem:[#allocation25 + $0x180] sm:$0xff]
    %v2256 = vld [vmem:[#allocation25 + $0x188] sm:$0xff]
    %v2257 = vld [vmem:[#allocation25 + $0x190] sm:$0xff]
    %v2258 = vld [vmem:[#allocation25 + $0x198] sm:$0xff]
    %v2259 = vld [vmem:[#allocation25 + $0x1a0] sm:$0xff]
    %v2260 = vld [vmem:[#allocation25 + $0x1a8] sm:$0xff]
    %v2261 = vld [vmem:[#allocation25 + $0x1b0] sm:$0xff]
    %v2262 = vld [vmem:[#allocation25 + $0x1b8] sm:$0xff]
    %v2263 = vld [vmem:[#allocation25 + $0x1c0] sm:$0xff]
    %v2264 = vld [vmem:[#allocation25 + $0x1c8] sm:$0xff]
    %v2265 = vld [vmem:[#allocation25 + $0x1d0] sm:$0xff]
    %v2266 = vld [vmem:[#allocation25 + $0x1d8] sm:$0xff]
    %v2267 = vld [vmem:[#allocation25 + $0x1e0] sm:$0xff]
    %v2268 = vld [vmem:[#allocation25 + $0x1e8] sm:$0xff]
    %v2269 = vld [vmem:[#allocation25 + $0x1f0] sm:$0xff]
    %v2270 = vld [vmem:[#allocation25 + $0x1f8] sm:$0xff]
    %v2271 = vld [vmem:[#allocation3] sm:$0x1]
    %v2273 = vperm.slane %v2271, 0
    %2275 = vmatpush.msra.mxu0 %v2222
    %2276 = vmatpush.msra.mxu0 %v2221
    %2277 = vmatpush.msra.mxu0 %v2220
    %2278 = vmatpush.msra.mxu0 %v2219
    %2279 = vmatpush.msra.mxu0 %v2218
    %2280 = vmatpush.msra.mxu0 %v2217
    %2281 = vmatpush.msra.mxu0 %v2216
    %2282 = vmatpush.msra.mxu0 %v2215
    %2283 = vmatpush.msra.mxu0 %v2214
    %2284 = vmatpush.msra.mxu0 %v2213
    %2285 = vmatpush.msra.mxu0 %v2212
    %2286 = vmatpush.msra.mxu0 %v2211
    %2287 = vmatpush.msra.mxu0 %v2210
    %2288 = vmatpush.msra.mxu0 %v2209
    %2289 = vmatpush.msra.mxu0 %v2208
    %2290 = vmatpush.msra.mxu0 %v2207
    %2291 = vmatmul.f32.gmra.mxu0 %v2007
    %v2292 = vpop.f32.mrf.mxu0
    %v2293 = vadd.f32 %v2273, %v2292
    %2294 = vmatmul.f32.gmra.mxu0 %v2011
    %v2295 = vpop.f32.mrf.mxu0
    %v2296 = vadd.f32 %v2273, %v2295
    %2297 = vmatmul.f32.gmra.mxu0 %v2015
    %v2298 = vpop.f32.mrf.mxu0
    %v2299 = vadd.f32 %v2273, %v2298
    %2300 = vmatmul.f32.gmra.mxu0 %v2019
    %v2301 = vpop.f32.mrf.mxu0
    %v2302 = vadd.f32 %v2273, %v2301
    %2303 = vdwg.mxu0
    %2304 = vmatpush.msra.mxu0 %v2238
    %2305 = vmatpush.msra.mxu0 %v2237
    %2306 = vmatpush.msra.mxu0 %v2236
    %2307 = vmatpush.msra.mxu0 %v2235
    %2308 = vmatpush.msra.mxu0 %v2234
    %2309 = vmatpush.msra.mxu0 %v2233
    %2310 = vmatpush.msra.mxu0 %v2232
    %2311 = vmatpush.msra.mxu0 %v2231
    %2312 = vmatpush.msra.mxu0 %v2230
    %2313 = vmatpush.msra.mxu0 %v2229
    %2314 = vmatpush.msra.mxu0 %v2228
    %2315 = vmatpush.msra.mxu0 %v2227
    %2316 = vmatpush.msra.mxu0 %v2226
    %2317 = vmatpush.msra.mxu0 %v2225
    %2318 = vmatpush.msra.mxu0 %v2224
    %2319 = vmatpush.msra.mxu0 %v2223
    %2320 = vmatmul.f32.gmra.mxu0 %v2008
    %v2321 = vpop.f32.mrf.mxu0
    %v2322 = vadd.f32 %v2293, %v2321
    %2323 = vmatmul.f32.gmra.mxu0 %v2012
    %v2324 = vpop.f32.mrf.mxu0
    %v2325 = vadd.f32 %v2296, %v2324
    %2326 = vmatmul.f32.gmra.mxu0 %v2016
    %v2327 = vpop.f32.mrf.mxu0
    %v2328 = vadd.f32 %v2299, %v2327
    %2329 = vmatmul.f32.gmra.mxu0 %v2020
    %v2330 = vpop.f32.mrf.mxu0
    %v2331 = vadd.f32 %v2302, %v2330
    %2332 = vdwg.mxu0
    %2333 = vmatpush.msra.mxu0 %v2254
    %2334 = vmatpush.msra.mxu0 %v2253
    %2335 = vmatpush.msra.mxu0 %v2252
    %2336 = vmatpush.msra.mxu0 %v2251
    %2337 = vmatpush.msra.mxu0 %v2250
    %2338 = vmatpush.msra.mxu0 %v2249
    %2339 = vmatpush.msra.mxu0 %v2248
    %2340 = vmatpush.msra.mxu0 %v2247
    %2341 = vmatpush.msra.mxu0 %v2246
    %2342 = vmatpush.msra.mxu0 %v2245
    %2343 = vmatpush.msra.mxu0 %v2244
    %2344 = vmatpush.msra.mxu0 %v2243
    %2345 = vmatpush.msra.mxu0 %v2242
    %2346 = vmatpush.msra.mxu0 %v2241
    %2347 = vmatpush.msra.mxu0 %v2240
    %2348 = vmatpush.msra.mxu0 %v2239
    %2349 = vmatmul.f32.gmra.mxu0 %v2009
    %v2350 = vpop.f32.mrf.mxu0
    %v2351 = vadd.f32 %v2322, %v2350
    %2352 = vmatmul.f32.gmra.mxu0 %v2013
    %v2353 = vpop.f32.mrf.mxu0
    %v2354 = vadd.f32 %v2325, %v2353
    %2355 = vmatmul.f32.gmra.mxu0 %v2017
    %v2356 = vpop.f32.mrf.mxu0
    %v2357 = vadd.f32 %v2328, %v2356
    %2358 = vmatmul.f32.gmra.mxu0 %v2021
    %v2359 = vpop.f32.mrf.mxu0
    %v2360 = vadd.f32 %v2331, %v2359
    %2361 = vdwg.mxu0
    %2362 = vmatpush.msra.mxu0 %v2270
    %2363 = vmatpush.msra.mxu0 %v2269
    %2364 = vmatpush.msra.mxu0 %v2268
    %2365 = vmatpush.msra.mxu0 %v2267
    %2366 = vmatpush.msra.mxu0 %v2266
    %2367 = vmatpush.msra.mxu0 %v2265
    %2368 = vmatpush.msra.mxu0 %v2264
    %2369 = vmatpush.msra.mxu0 %v2263
    %2370 = vmatpush.msra.mxu0 %v2262
    %2371 = vmatpush.msra.mxu0 %v2261
    %2372 = vmatpush.msra.mxu0 %v2260
    %2373 = vmatpush.msra.mxu0 %v2259
    %2374 = vmatpush.msra.mxu0 %v2258
    %2375 = vmatpush.msra.mxu0 %v2257
    %2376 = vmatpush.msra.mxu0 %v2256
    %2377 = vmatpush.msra.mxu0 %v2255
    %2378 = vmatmul.f32.gmra.mxu0 %v2010
    %v2379 = vpop.f32.mrf.mxu0
    %v2380 = vadd.f32 %v2351, %v2379
    %2381 = vmatmul.f32.gmra.mxu0 %v2014
    %v2382 = vpop.f32.mrf.mxu0
    %v2383 = vadd.f32 %v2354, %v2382
    %2384 = vmatmul.f32.gmra.mxu0 %v2018
    %v2385 = vpop.f32.mrf.mxu0
    %v2386 = vadd.f32 %v2357, %v2385
    %2387 = vmatmul.f32.gmra.mxu0 %v2022
    %v2388 = vpop.f32.mrf.mxu0
    %v2389 = vadd.f32 %v2360, %v2388
    %2390 = vdwg.mxu0
    %vm2391 = vcmask 7168
    %v2392 = vsel %vm2391, %v2196, 0.0
    %v2393 = vsel %vm2391, %v2199, 0.0
    %v2394 = vadd.f32 %v2392, %v2393
    %v2395 = vsel %vm2391, %v2202, 0.0
    %v2396 = vadd.f32 %v2394, %v2395
    %v2397 = vsel %vm2391, %v2205, 0.0
    %v2398 = vadd.f32 %v2396, %v2397
    %v2399 = vrot.slane %v2398, 4
    %v2400 = vadd.f32 %v2398, %v2399
    %v2401 = vrot.slane %v2400, 2
    %v2402 = vadd.f32 %v2400, %v2401
    %v2403 = vrot.slane %v2402, 1
    %v2404 = vadd.f32 %v2402, %v2403
    %v2405 = vrcp.pop 32.0
    %v2406 = vmul.f32 32.0, %v2405
    %v2407 = vsub.f32 1.0, %v2406
    %v2408 = vmul.f32 %v2405, %v2407
    %v2409 = vadd.f32 %v2405, %v2408
    %vm2410 = vweird.f32 %v2405
    %v2411 = vsel %vm2410, %v2405, %v2409
    %v2412 = vmul.f32 %v2404, %v2411
    %v2413 = vsub.f32 %v2196, %v2412
    %v2414 = vsub.f32 %v2199, %v2412
    %v2415 = vsub.f32 %v2202, %v2412
    %v2416 = vsub.f32 %v2205, %v2412
    %v2417 = vsel %vm2391, %v2380, 0.0
    %v2418 = vsel %vm2391, %v2383, 0.0
    %v2419 = vadd.f32 %v2417, %v2418
    %v2420 = vsel %vm2391, %v2386, 0.0
    %v2421 = vadd.f32 %v2419, %v2420
    %v2422 = vsel %vm2391, %v2389, 0.0
    %v2423 = vadd.f32 %v2421, %v2422
    %v2424 = vrot.slane %v2423, 4
    %v2425 = vadd.f32 %v2423, %v2424
    %v2426 = vrot.slane %v2425, 2
    %v2427 = vadd.f32 %v2425, %v2426
    %v2428 = vrot.slane %v2427, 1
    %v2429 = vadd.f32 %v2427, %v2428
    %v2430 = vmul.f32 %v2429, %v2411
    %v2431 = vsub.f32 %v2380, %v2430
    %v2432 = vsub.f32 %v2383, %v2430
    %v2433 = vsub.f32 %v2386, %v2430
    %v2434 = vsub.f32 %v2389, %v2430
    %v2435 = vmul.f32 %v2413, %v2431
    %v2436 = vmul.f32 %v2414, %v2432
    %v2437 = vmul.f32 %v2415, %v2433
    %v2438 = vmul.f32 %v2416, %v2434
    %v2439 = vsel %vm2391, %v2435, 0.0
    %v2440 = vsel %vm2391, %v2436, 0.0
    %v2441 = vadd.f32 %v2439, %v2440
    %v2442 = vsel %vm2391, %v2437, 0.0
    %v2443 = vadd.f32 %v2441, %v2442
    %v2444 = vsel %vm2391, %v2438, 0.0
    %v2445 = vadd.f32 %v2443, %v2444
    %v2446 = vrot.slane %v2445, 4
    %v2447 = vadd.f32 %v2445, %v2446
    %v2448 = vrot.slane %v2447, 2
    %v2449 = vadd.f32 %v2447, %v2448
    %v2450 = vrot.slane %v2449, 1
    %v2451 = vadd.f32 %v2449, %v2450
    %v2452 = vmul.f32 %v2451, %v2411
    %v2453 = vmul.f32 %v2413, %v2413
    %v2454 = vmul.f32 %v2414, %v2414
    %v2455 = vmul.f32 %v2415, %v2415
    %v2456 = vmul.f32 %v2416, %v2416
    %v2457 = vsel %vm2391, %v2453, 0.0
    %v2458 = vsel %vm2391, %v2454, 0.0
    %v2459 = vadd.f32 %v2457, %v2458
    %v2460 = vsel %vm2391, %v2455, 0.0
    %v2461 = vadd.f32 %v2459, %v2460
    %v2462 = vsel %vm2391, %v2456, 0.0
    %v2463 = vadd.f32 %v2461, %v2462
    %v2464 = vrot.slane %v2463, 4
    %v2465 = vadd.f32 %v2463, %v2464
    %v2466 = vrot.slane %v2465, 2
    %v2467 = vadd.f32 %v2465, %v2466
    %v2468 = vrot.slane %v2467, 1
    %v2469 = vadd.f32 %v2467, %v2468
    %v2470 = vmul.f32 %v2469, %v2411
    %v2471 = vmul.f32 %v2431, %v2431
    %v2472 = vmul.f32 %v2432, %v2432
    %v2473 = vmul.f32 %v2433, %v2433
    %v2474 = vmul.f32 %v2434, %v2434
    %v2475 = vsel %vm2391, %v2471, 0.0
    %v2476 = vsel %vm2391, %v2472, 0.0
    %v2477 = vadd.f32 %v2475, %v2476
    %v2478 = vsel %vm2391, %v2473, 0.0
    %v2479 = vadd.f32 %v2477, %v2478
    %v2480 = vsel %vm2391, %v2474, 0.0
    %v2481 = vadd.f32 %v2479, %v2480
    %v2482 = vrot.slane %v2481, 4
    %v2483 = vadd.f32 %v2481, %v2482
    %v2484 = vrot.slane %v2483, 2
    %v2485 = vadd.f32 %v2483, %v2484
    %v2486 = vrot.slane %v2485, 1
    %v2487 = vadd.f32 %v2485, %v2486
    %v2488 = vmul.f32 %v2487, %v2411
    %v2489 = vand.u32 2147483647, %v2452
    %v2490 = vmul.f32 %v2470, %v2488
    %v2491 = vrsqrt.pop %v2490
    %v2492 = vmul.f32 %v2491, %v2490
    %v2493 = vmul.f32 %v2492, %v2491
    %v2494 = vmul.f32 0.5, %v2493
    %v2495 = vsub.f32 1.5, %v2494
    %v2496 = vmul.f32 %v2491, %v2495
    %v2497 = vmul.f32 %v2490, %v2496
    %vm2498 = vcmp.eq.f32.partialorder %v2490, inf
    %v2499 = vsel %vm2498, %v2490, %v2497
    %vm2500 = vcmp.eq.f32.partialorder %v2490, 0.0
    %v2501 = vand.u32 %v2490, 2147483648
    %v2502 = vsel %vm2500, %v2501, %v2499
    %v2503 = vadd.f32 %v2502, 1e-12
    %v2504 = vrcp.pop %v2503
    %v2505 = vmul.f32 %v2503, %v2504
    %v2506 = vsub.f32 1.0, %v2505
    %v2507 = vmul.f32 %v2504, %v2506
    %v2508 = vadd.f32 %v2504, %v2507
    %vm2509 = vweird.f32 %v2503
    %vm2510 = vweird.f32 %v2504
    %vm2511 = vmor %vm2509, %vm2510
    %v2512 = vsel %vm2511, %v2504, %v2508
    %v2513 = vand.u32 2147483647, %v2503
    %vm2514 = vcmp.eq.f32.partialorder %v2513, 8.507059e+37
    %v2515 = vand.u32 %v2503, 2147483648
    %v2516 = vor.u32 1.1754944e-38, %v2515
    %v2517 = vsel %vm2514, %v2516, %v2512
    %v2518 = vmul.f32 %v2489, %v2517
    %vm2519 = vcmask 0
    %2520 = vst.msk [vmem:[#allocation30] sm:$0x1] %vm2519, %v2518
    // Predicated region
    $region154: #{dsgnet_forward.2} parent=1 // pred_check
      _
    $region155: #{dsgnet_forward.2} parent=1 // pred_check_branch
      %2522 = sbr.rel (0) target = $region157
    $region156: #{dsgnet_forward.2} parent=1 // pred_region
      _
    $region157: #{dsgnet_forward.2} parent=1 // pred_fallthru
      _
    // Predicated region
    $region158: #{dsgnet_forward.2} parent=1 // pred_check
      _
    $region159: #{dsgnet_forward.2} parent=1 // pred_check_branch
      %2524 = sbr.rel (0) target = $region161
    $region160: #{dsgnet_forward.2} parent=1 // pred_region
      _
    $region161: #{dsgnet_forward.2} parent=1 // pred_fallthru
      _
    // Predicated region
    $region162: #{dsgnet_forward.2} parent=1 // pred_check
      _
    $region163: #{dsgnet_forward.2} parent=1 // pred_check_branch
      %2526 = sbr.rel (0) target = $region165
    $region164: #{dsgnet_forward.2} parent=1 // pred_region
      %2528 = vsyncadd [#allocation6], 0
      %s2530 = sshll.u32 [#allocation30], 4
      %s2531 = int_to_ptr.vmem [resolvable:$true] %s2530
      %s2532 = sshll.u32 %s24, 4
      %s2533 = int_to_ptr.hbm [resolvable:$true] %s2532
      %2535 = dma.vmem_to_hbm [thread:$0]  %s2531, 16, %s2533, [#allocation6]
    $region165: #{dsgnet_forward.2} parent=1 // pred_fallthru
      _
    // Predicated region
    $region166: #{dsgnet_forward.2} parent=1 // pred_check
      _
    $region167: #{dsgnet_forward.2} parent=1 // pred_check_branch
      %2537 = sbr.rel (0) target = $region169
    $region168: #{dsgnet_forward.2} parent=1 // pred_region
      _
    $region169: #{dsgnet_forward.2} parent=1 // pred_fallthru
      _
    // Predicated region
    $region170: #{dsgnet_forward.2} parent=1 // pred_check
      _
    $region171: #{dsgnet_forward.2} parent=1 // pred_check_branch
      %2539 = sbr.rel (0) target = $region173
    $region172: #{dsgnet_forward.2} parent=1 // pred_region
      _
    $region173: #{dsgnet_forward.2} parent=1 // pred_fallthru
      _
    // Predicated region
    $region174: #{dsgnet_forward.2} parent=1 // pred_check
      _
    $region175: #{dsgnet_forward.2} parent=1 // pred_check_branch
      %2541 = sbr.rel (0) target = $region177
    $region176: #{dsgnet_forward.2} parent=1 // pred_region
      %2543 = dma.done [#allocation6], 16
    $region177: #{dsgnet_forward.2} parent=1 // pred_fallthru
      _
    %2544 = vsyncpa [#allocation5], 1
    %2545 = vsyncpa [#allocation8], 1
    %2546 = vsyncpa [#allocation11], 1
    %2547 = vsyncpa [#allocation14], 1
    %2548 = vsyncpa [#allocation17], 1
    %2549 = vsyncpa [#allocation20], 1
    %2550 = vsyncpa [#allocation23], 1
    %2551 = vsyncpa [#allocation26], 1
    %2552 = vsyncpa [#allocation29], 1
    %2553 = vsyncpa [#allocation6], 1

</llo_original>
